<compile_context>
chip_gen: v7x
topology: tpu7x:2x2x1
jax: 0.10.0
libtpu: 0.0.40
codegen_flags: <defaults>
</compile_context>

<pallas_src>
import functools

import jax
import jax.numpy as jnp
from jax.experimental import pallas as pl
from jax.experimental.pallas import tpu as pltpu


# ----------------------------------------------------------------------------
# Pallas kernels
# ----------------------------------------------------------------------------
def conv_pool_kernel(col_ref, w_ref, b_ref, o_ref, *, pp, m):
    """3x3 conv (as matmul on precomputed im2col) + bias + max-pool + ReLU.

    col_ref: (1, 9*Cin, pp*m) bf16  im2col; lanes ordered (pool_pos q, item, ho, wo)
    w_ref  : (1, Cout, 9*Cin) bf16  rows = Cout, cols ordered (ky, kx, cin)
    b_ref  : (1, Cout, 1)     f32
    o_ref  : (1, Cout, m)     bf16  pooled+ReLU output, lanes = (item, ho, wo)
    """
    # One MXU matmul for all taps, items and pool-window positions.
    y = jnp.dot(w_ref[0], col_ref[0], preferred_element_type=jnp.float32)

    # Max over the pp pool-window positions (contiguous lane blocks), then
    # bias (constant across the window -> hoisted past the max) and ReLU
    # (monotone -> applied once after the max).
    acc = y[:, 0:m]
    for q in range(1, pp):
        acc = jnp.maximum(acc, y[:, q * m:(q + 1) * m])
    o_ref[0] = jnp.maximum(acc + b_ref[0], 0.0).astype(o_ref.dtype)


def classifier_kernel(x_ref, w1_ref, b1_ref, w2_ref, o_ref):
    """Dropout(eval: identity) -> Linear -> ReLU -> Linear, for one half of the
    hidden dimension; emits partial logits.  Grid axis is 'parallel' so the two
    halves run on both TensorCores on v7x."""
    h = jnp.dot(x_ref[...], w1_ref[...], preferred_element_type=jnp.float32)
    h = jnp.maximum(h + b1_ref[...], 0.0)
    o_ref[0] = jnp.dot(h.astype(jnp.bfloat16), w2_ref[...],
                       preferred_element_type=jnp.float32)


# ----------------------------------------------------------------------------
# Wrappers
# ----------------------------------------------------------------------------
def conv_stage(x_nhwc, w_sets, b_sets, pool):
    """Conv2d(k=3,s=1,p=1) -> ReLU -> MaxPool(pool) for a stack of items.

    x_nhwc: (N, H, W, Cin); item n uses weight set n // (N // S).
    w_sets: (S, Cout, 9*Cin) bf16, columns ordered (ky, kx, cin).
    b_sets: (S, Cout, 1) f32.
    Returns (S, Cout, G, HO, WO) bf16 with G = N // S, HO = H//pool, WO = W//pool.
    """
    N, H, W, Cin = x_nhwc.shape
    S, Cout, K9 = w_sets.shape
    p = pool
    assert K9 == 9 * Cin and N % S == 0 and H % p == 0 and W % p == 0
    G = N // S
    HO, WO = H // p, W // p
    PP = p * p
    M = G * HO * WO                       # lanes per pool-position block

    # --- wrapper-level im2col (cheap XLA glue on KB-sized tensors) ----------
    x = x_nhwc.astype(jnp.bfloat16)
    xp = jnp.pad(x, ((0, 0), (1, 1), (1, 1), (0, 0)))
    taps = [xp[:, dy:dy + H, dx:dx + W, :] for dy in range(3) for dx in range(3)]
    col = jnp.stack(taps, axis=0)                         # (9, N, H, W, Cin)
    col = col.reshape(9, S, G, HO, p, WO, p, Cin)          # (t,s,g,ho,py,wo,px,c)
    col = col.transpose(1, 0, 7, 4, 6, 2, 3, 5)            # (s,t,c,py,px,g,ho,wo)
    col = col.reshape(S, K9, PP * M)                       # contiguous lane rows

    kernel = functools.partial(conv_pool_kernel, pp=PP, m=M)
    out = pl.pallas_call(
        kernel,
        out_shape=jax.ShapeDtypeStruct((S, Cout, M), jnp.bfloat16),
        grid=(S,),
        in_specs=[
            pl.BlockSpec((1, K9, PP * M), lambda s: (s, 0, 0)),   # one contiguous DMA
            pl.BlockSpec((1, Cout, K9), lambda s: (s, 0, 0)),
            pl.BlockSpec((1, Cout, 1), lambda s: (s, 0, 0)),
        ],
        out_specs=pl.BlockSpec((1, Cout, M), lambda s: (s, 0, 0)),
        compiler_params=pltpu.CompilerParams(
            dimension_semantics=("parallel",)),
    )(col, w_sets, b_sets)

    return out.reshape(S, Cout, G, HO, WO)


def classifier_partial(x, w1, b1, w2, *, splits=2):
    """Returns partial logits (splits, B, O): split j uses hidden units
    [j*Hd/splits, (j+1)*Hd/splits).  Finalize with sum(0) + b2 + softmax."""
    B, F = x.shape
    F2, Hd = w1.shape
    Hd2, O = w2.shape
    assert F == F2 and Hd == Hd2 and b1.shape == (Hd,)
    assert Hd % splits == 0, "hidden dim must divide evenly across splits"
    Ht = Hd // splits
    return pl.pallas_call(
        classifier_kernel,
        out_shape=jax.ShapeDtypeStruct((splits, B, O), jnp.float32),
        grid=(splits,),
        in_specs=[
            pl.BlockSpec((B, F), lambda j: (0, 0)),         # bf16 activations
            pl.BlockSpec((F, Ht), lambda j: (0, j)),        # bf16 fc1 half
            pl.BlockSpec((1, Ht), lambda j: (0, j)),        # f32 fc1 bias half
            pl.BlockSpec((Ht, O), lambda j: (j, 0)),        # bf16 fc2 half
        ],
        out_specs=pl.BlockSpec((1, B, O), lambda j: (j, 0, 0)),
        compiler_params=pltpu.CompilerParams(
            dimension_semantics=("parallel",)),
    )(x, w1, b1.reshape(1, Hd), w2)


# ----------------------------------------------------------------------------
# Deterministic parameter init (PyTorch layout, repacked for the kernels)
# ----------------------------------------------------------------------------
def init_conv(key, cin, cout):
    k1, k2 = jax.random.split(key)
    fan_in = cin * 9
    w = jax.random.normal(k1, (cout, cin, 3, 3), jnp.float32) * (2.0 / fan_in) ** 0.5
    b = jax.random.normal(k2, (cout,), jnp.float32) * 0.01
    # (Cout, Cin, ky, kx) -> (Cout, ky, kx, cin) -> (Cout, 9*cin): matches the
    # im2col contraction order (ky, kx, cin).
    w_mat = jnp.transpose(w, (0, 2, 3, 1)).reshape(cout, 9 * cin)
    return w_mat.astype(jnp.bfloat16), b


def init_linear(key, fin, fout):
    k1, k2 = jax.random.split(key)
    w = jax.random.normal(k1, (fout, fin), jnp.float32) * (1.0 / fin) ** 0.5
    b = jax.random.normal(k2, (fout,), jnp.float32) * 0.01
    return jnp.transpose(w).astype(jnp.bfloat16), b        # (fin, fout) bf16


def init_params(key, in_dim, out_dim):
    ks = jax.random.split(key, 7)
    wi1, bi1 = init_conv(ks[0], in_dim, 16)
    wi2, bi2 = init_conv(ks[1], 16, 32)
    wi3, bi3 = init_conv(ks[2], 32, 64)
    wd1, bd1 = init_conv(ks[3], in_dim, 16)
    wd2, bd2 = init_conv(ks[4], 16, 32)
    w_fc1, b_fc1 = init_linear(ks[5], 32 * 8 * 8 + 64 * 2 * 2, 512)
    w_fc2, b_fc2 = init_linear(ks[6], 512, out_dim)
    return {
        # weight "sets": index 0 = img branch, index 1 = depth branch
        "w1": jnp.stack([wi1, wd1]), "b1": jnp.stack([bi1, bd1])[:, :, None],
        "w2": jnp.stack([wi2, wd2]), "b2": jnp.stack([bi2, bd2])[:, :, None],
        "w3": wi3[None], "b3": bi3[None, :, None],
        "fc1_w": w_fc1, "fc1_b": b_fc1,
        "fc2_w": w_fc2, "fc2_b": b_fc2,
    }


# ----------------------------------------------------------------------------
# Forward pass (== MultiInput.forward, inference mode)
# ----------------------------------------------------------------------------
def multi_input_forward(params, depth_nchw, img_nchw):
    B = img_nchw.shape[0]
    depth = jnp.transpose(depth_nchw, (0, 2, 3, 1))          # NCHW -> NHWC
    img = jnp.transpose(img_nchw, (0, 2, 3, 1))

    # Stages 1 & 2 of both branches share shapes -> one pallas_call each with
    # grid=(2,) (img set / depth set), items of a set stacked along lanes.
    s1_in = jnp.concatenate([img, depth], axis=0)            # (2B, 32, 32, C)
    s1 = conv_stage(s1_in, params["w1"], params["b1"], 2)    # (2, 16, B, 16, 16)
    s1_nhwc = s1.transpose(0, 2, 3, 4, 1).reshape(2 * B, 16, 16, 16)
    s2 = conv_stage(s1_nhwc, params["w2"], params["b2"], 2)  # (2, 32, B, 8, 8)

    # Stage 3, img branch only (set 0).
    x_img2 = s2[0].transpose(1, 2, 3, 0)                     # (B, 8, 8, 32) NHWC
    s3 = conv_stage(x_img2, params["w3"], params["b3"], 4)   # (1, 64, B, 2, 2)

    # Flatten each item in PyTorch's (C, H, W) order and concat (img first).
    f_img = s3[0].transpose(1, 0, 2, 3).reshape(B, -1)       # (B, 256)  bf16
    f_dep = s2[1].transpose(1, 0, 2, 3).reshape(B, -1)       # (B, 2048) bf16
    feats = jnp.concatenate([f_img, f_dep], axis=1)          # (B, 2304) bf16

    # TODO(synk): Dropout(p=0.5) is identity in eval mode; training-mode RNG
    # dropout not implemented.
    partial = classifier_partial(feats, params["fc1_w"], params["fc1_b"],
                                 params["fc2_w"])            # (2, B, out) f32
    logits = partial.sum(axis=0) + params["fc2_b"][None, :]
    m = jnp.max(logits, axis=-1, keepdims=True)
    e = jnp.exp(logits - m)
    return e / jnp.sum(e, axis=-1, keepdims=True)


if __name__ == "__main__":
    in_dim, out_dim = 4, 10
    batch, spatial = 2, 32   # spatial=32 is implied by the classifier in-features

    key = jax.random.PRNGKey(0)
    kp, kd, ki = jax.random.split(key, 3)
    params = init_params(kp, in_dim, out_dim)
    depth = jax.random.normal(kd, (batch, in_dim, spatial, spatial), jnp.float32)
    img = jax.random.normal(ki, (batch, in_dim, spatial, spatial), jnp.float32)

    forward = jax.jit(multi_input_forward)
    out = jax.block_until_ready(forward(params, depth, img))

    assert out.shape == (batch, out_dim)
    assert jnp.allclose(jnp.sum(out, axis=1), 1.0, atol=1e-5)  # softmax rows sum to 1
    assert bool(jnp.all(jnp.isfinite(out)))
    print("KERNEL_OK")
</pallas_src>

<mosaic_0001>
module attributes {stable_mosaic.version = 11 : i64} {
  func.func @conv_pool_kernel(%arg0: i32, %arg1: memref<1x36x2048xbf16, #tpu.memory_space<vmem>>, %arg2: memref<1x16x36xbf16, #tpu.memory_space<vmem>>, %arg3: memref<1x16x1xf32, #tpu.memory_space<vmem>>, %arg4: memref<1x16x512xbf16, #tpu.memory_space<vmem>>) attributes {dimension_semantics = [#tpu.dimension_semantics<parallel>], iteration_bounds = array<i64: 2>, scalar_prefetch = 0 : i64, scratch_operands = 0 : i64, tpu.core_type = #tpu.core_type<tc>, window_params = [{transform_indices = @transform_0, window_bounds = array<i64: 1, 36, 2048>}, {transform_indices = @transform_1, window_bounds = array<i64: 1, 16, 36>}, {transform_indices = @transform_2, window_bounds = array<i64: 1, 16, 1>}, {transform_indices = @transform_3, window_bounds = array<i64: 1, 16, 512>}]} {
    %c0 = arith.constant 0 : index
    %c0_0 = arith.constant 0 : index
    %c0_1 = arith.constant 0 : index
    %0 = vector.load %arg2[%c0, %c0_0, %c0_1] : memref<1x16x36xbf16, #tpu.memory_space<vmem>>, vector<1x16x36xbf16>
    %1 = vector.shape_cast %0 : vector<1x16x36xbf16> to vector<16x36xbf16>
    %c0_2 = arith.constant 0 : index
    %c0_3 = arith.constant 0 : index
    %c0_4 = arith.constant 0 : index
    %2 = vector.load %arg1[%c0_2, %c0_3, %c0_4] : memref<1x36x2048xbf16, #tpu.memory_space<vmem>>, vector<1x36x2048xbf16>
    %3 = vector.shape_cast %2 : vector<1x36x2048xbf16> to vector<36x2048xbf16>
    %cst = arith.constant dense<0.000000e+00> : vector<16x2048xf32>
    %4 = tpu.matmul %1, %3, %cst {dimension_numbers = #tpu.dot_dimension_numbers<[1], [0], [0], [1], [0, 0, 1, 1], [], []>} : vector<16x36xbf16>, vector<36x2048xbf16>, vector<16x2048xf32> -> vector<16x2048xf32>
    %5 = vector.extract_strided_slice %4 {offsets = [0, 0], sizes = [16, 512], strides = [1, 1]} : vector<16x2048xf32> to vector<16x512xf32>
    %6 = vector.extract_strided_slice %4 {offsets = [0, 512], sizes = [16, 512], strides = [1, 1]} : vector<16x2048xf32> to vector<16x512xf32>
    %7 = arith.maximumf %5, %6 : vector<16x512xf32>
    %8 = vector.extract_strided_slice %4 {offsets = [0, 1024], sizes = [16, 512], strides = [1, 1]} : vector<16x2048xf32> to vector<16x512xf32>
    %9 = arith.maximumf %7, %8 : vector<16x512xf32>
    %10 = vector.extract_strided_slice %4 {offsets = [0, 1536], sizes = [16, 512], strides = [1, 1]} : vector<16x2048xf32> to vector<16x512xf32>
    %11 = arith.maximumf %9, %10 : vector<16x512xf32>
    %c0_5 = arith.constant 0 : index
    %c0_6 = arith.constant 0 : index
    %c0_7 = arith.constant 0 : index
    %12 = vector.load %arg3[%c0_5, %c0_6, %c0_7] : memref<1x16x1xf32, #tpu.memory_space<vmem>>, vector<1x16x1xf32>
    %13 = vector.shape_cast %12 : vector<1x16x1xf32> to vector<16x1xf32>
    %14 = vector.broadcast %13 : vector<16x1xf32> to vector<16x512xf32>
    %15 = arith.addf %11, %14 : vector<16x512xf32>
    %cst_8 = arith.constant 0.000000e+00 : f32
    %16 = vector.broadcast %cst_8 : f32 to vector<16x512xf32>
    %17 = arith.maximumf %15, %16 : vector<16x512xf32>
    %18 = arith.truncf %17 : vector<16x512xf32> to vector<16x512xbf16>
    %c0_9 = arith.constant 0 : index
    %c0_10 = arith.constant 0 : index
    %c0_11 = arith.constant 0 : index
    %19 = vector.load %arg4[%c0_9, %c0_10, %c0_11] : memref<1x16x512xbf16, #tpu.memory_space<vmem>>, vector<1x16x512xbf16>
    %20 = vector.shape_cast %19 : vector<1x16x512xbf16> to vector<16x512xbf16>
    %21 = vector.shape_cast %18 : vector<16x512xbf16> to vector<1x16x512xbf16>
    tpu.vector_store %arg4[%c0_9, %c0_10, %c0_11], %21 {strides = array<i32>} : memref<1x16x512xbf16, #tpu.memory_space<vmem>>, vector<1x16x512xbf16>,
    return
  }
  func.func @transform_0(%arg0: i32) -> (i32, i32, i32) {
    %c0_i32 = arith.constant 0 : i32
    %c0_i32_0 = arith.constant 0 : i32
    %c0_i32_1 = arith.constant 0 : i32
    return %arg0, %c0_i32, %c0_i32_0 : i32, i32, i32
  }
  func.func @transform_1(%arg0: i32) -> (i32, i32, i32) {
    %c0_i32 = arith.constant 0 : i32
    %c0_i32_0 = arith.constant 0 : i32
    %c0_i32_1 = arith.constant 0 : i32
    return %arg0, %c0_i32, %c0_i32_0 : i32, i32, i32
  }
  func.func @transform_2(%arg0: i32) -> (i32, i32, i32) {
    %c0_i32 = arith.constant 0 : i32
    %c0_i32_0 = arith.constant 0 : i32
    %c0_i32_1 = arith.constant 0 : i32
    return %arg0, %c0_i32, %c0_i32_0 : i32, i32, i32
  }
  func.func @transform_3(%arg0: i32) -> (i32, i32, i32) {
    %c0_i32 = arith.constant 0 : i32
    %c0_i32_0 = arith.constant 0 : i32
    %c0_i32_1 = arith.constant 0 : i32
    return %arg0, %c0_i32, %c0_i32_0 : i32, i32, i32
  }
}

module attributes {stable_mosaic.version = 11 : i64} {
  func.func @conv_pool_kernel(%arg0: i32, %arg1: memref<1x144x512xbf16, #tpu.memory_space<vmem>>, %arg2: memref<1x32x144xbf16, #tpu.memory_space<vmem>>, %arg3: memref<1x32x1xf32, #tpu.memory_space<vmem>>, %arg4: memref<1x32x128xbf16, #tpu.memory_space<vmem>>) attributes {dimension_semantics = [#tpu.dimension_semantics<parallel>], iteration_bounds = array<i64: 2>, scalar_prefetch = 0 : i64, scratch_operands = 0 : i64, tpu.core_type = #tpu.core_type<tc>, window_params = [{transform_indices = @transform_0, window_bounds = array<i64: 1, 144, 512>}, {transform_indices = @transform_1, window_bounds = array<i64: 1, 32, 144>}, {transform_indices = @transform_2, window_bounds = array<i64: 1, 32, 1>}, {transform_indices = @transform_3, window_bounds = array<i64: 1, 32, 128>}]} {
    %c0 = arith.constant 0 : index
    %c0_0 = arith.constant 0 : index
    %c0_1 = arith.constant 0 : index
    %0 = vector.load %arg2[%c0, %c0_0, %c0_1] : memref<1x32x144xbf16, #tpu.memory_space<vmem>>, vector<1x32x144xbf16>
    %1 = vector.shape_cast %0 : vector<1x32x144xbf16> to vector<32x144xbf16>
    %c0_2 = arith.constant 0 : index
    %c0_3 = arith.constant 0 : index
    %c0_4 = arith.constant 0 : index
    %2 = vector.load %arg1[%c0_2, %c0_3, %c0_4] : memref<1x144x512xbf16, #tpu.memory_space<vmem>>, vector<1x144x512xbf16>
    %3 = vector.shape_cast %2 : vector<1x144x512xbf16> to vector<144x512xbf16>
    %cst = arith.constant dense<0.000000e+00> : vector<32x512xf32>
    %4 = tpu.matmul %1, %3, %cst {dimension_numbers = #tpu.dot_dimension_numbers<[1], [0], [0], [1], [0, 0, 1, 1], [], []>} : vector<32x144xbf16>, vector<144x512xbf16>, vector<32x512xf32> -> vector<32x512xf32>
    %5 = vector.extract_strided_slice %4 {offsets = [0, 0], sizes = [32, 128], strides = [1, 1]} : vector<32x512xf32> to vector<32x128xf32>
    %6 = vector.extract_strided_slice %4 {offsets = [0, 128], sizes = [32, 128], strides = [1, 1]} : vector<32x512xf32> to vector<32x128xf32>
    %7 = arith.maximumf %5, %6 : vector<32x128xf32>
    %8 = vector.extract_strided_slice %4 {offsets = [0, 256], sizes = [32, 128], strides = [1, 1]} : vector<32x512xf32> to vector<32x128xf32>
    %9 = arith.maximumf %7, %8 : vector<32x128xf32>
    %10 = vector.extract_strided_slice %4 {offsets = [0, 384], sizes = [32, 128], strides = [1, 1]} : vector<32x512xf32> to vector<32x128xf32>
    %11 = arith.maximumf %9, %10 : vector<32x128xf32>
    %c0_5 = arith.constant 0 : index
    %c0_6 = arith.constant 0 : index
    %c0_7 = arith.constant 0 : index
    %12 = vector.load %arg3[%c0_5, %c0_6, %c0_7] : memref<1x32x1xf32, #tpu.memory_space<vmem>>, vector<1x32x1xf32>
    %13 = vector.shape_cast %12 : vector<1x32x1xf32> to vector<32x1xf32>
    %14 = vector.broadcast %13 : vector<32x1xf32> to vector<32x128xf32>
    %15 = arith.addf %11, %14 : vector<32x128xf32>
    %cst_8 = arith.constant 0.000000e+00 : f32
    %16 = vector.broadcast %cst_8 : f32 to vector<32x128xf32>
    %17 = arith.maximumf %15, %16 : vector<32x128xf32>
    %18 = arith.truncf %17 : vector<32x128xf32> to vector<32x128xbf16>
    %c0_9 = arith.constant 0 : index
    %c0_10 = arith.constant 0 : index
    %c0_11 = arith.constant 0 : index
    %19 = vector.load %arg4[%c0_9, %c0_10, %c0_11] : memref<1x32x128xbf16, #tpu.memory_space<vmem>>, vector<1x32x128xbf16>
    %20 = vector.shape_cast %19 : vector<1x32x128xbf16> to vector<32x128xbf16>
    %21 = vector.shape_cast %18 : vector<32x128xbf16> to vector<1x32x128xbf16>
    tpu.vector_store %arg4[%c0_9, %c0_10, %c0_11], %21 {strides = array<i32>} : memref<1x32x128xbf16, #tpu.memory_space<vmem>>, vector<1x32x128xbf16>,
    return
  }
  func.func @transform_0(%arg0: i32) -> (i32, i32, i32) {
    %c0_i32 = arith.constant 0 : i32
    %c0_i32_0 = arith.constant 0 : i32
    %c0_i32_1 = arith.constant 0 : i32
    return %arg0, %c0_i32, %c0_i32_0 : i32, i32, i32
  }
  func.func @transform_1(%arg0: i32) -> (i32, i32, i32) {
    %c0_i32 = arith.constant 0 : i32
    %c0_i32_0 = arith.constant 0 : i32
    %c0_i32_1 = arith.constant 0 : i32
    return %arg0, %c0_i32, %c0_i32_0 : i32, i32, i32
  }
  func.func @transform_2(%arg0: i32) -> (i32, i32, i32) {
    %c0_i32 = arith.constant 0 : i32
    %c0_i32_0 = arith.constant 0 : i32
    %c0_i32_1 = arith.constant 0 : i32
    return %arg0, %c0_i32, %c0_i32_0 : i32, i32, i32
  }
  func.func @transform_3(%arg0: i32) -> (i32, i32, i32) {
    %c0_i32 = arith.constant 0 : i32
    %c0_i32_0 = arith.constant 0 : i32
    %c0_i32_1 = arith.constant 0 : i32
    return %arg0, %c0_i32, %c0_i32_0 : i32, i32, i32
  }
}

module attributes {stable_mosaic.version = 11 : i64} {
  func.func @conv_pool_kernel(%arg0: i32, %arg1: memref<1x288x128xbf16, #tpu.memory_space<vmem>>, %arg2: memref<1x64x288xbf16, #tpu.memory_space<vmem>>, %arg3: memref<1x64x1xf32, #tpu.memory_space<vmem>>, %arg4: memref<1x64x8xbf16, #tpu.memory_space<vmem>>) attributes {dimension_semantics = [#tpu.dimension_semantics<parallel>], iteration_bounds = array<i64: 1>, scalar_prefetch = 0 : i64, scratch_operands = 0 : i64, tpu.core_type = #tpu.core_type<tc>, window_params = [{transform_indices = @transform_0, window_bounds = array<i64: 1, 288, 128>}, {transform_indices = @transform_1, window_bounds = array<i64: 1, 64, 288>}, {transform_indices = @transform_2, window_bounds = array<i64: 1, 64, 1>}, {transform_indices = @transform_3, window_bounds = array<i64: 1, 64, 8>}]} {
    %c0 = arith.constant 0 : index
    %c0_0 = arith.constant 0 : index
    %c0_1 = arith.constant 0 : index
    %0 = vector.load %arg2[%c0, %c0_0, %c0_1] : memref<1x64x288xbf16, #tpu.memory_space<vmem>>, vector<1x64x288xbf16>
    %1 = vector.shape_cast %0 : vector<1x64x288xbf16> to vector<64x288xbf16>
    %c0_2 = arith.constant 0 : index
    %c0_3 = arith.constant 0 : index
    %c0_4 = arith.constant 0 : index
    %2 = vector.load %arg1[%c0_2, %c0_3, %c0_4] : memref<1x288x128xbf16, #tpu.memory_space<vmem>>, vector<1x288x128xbf16>
    %3 = vector.shape_cast %2 : vector<1x288x128xbf16> to vector<288x128xbf16>
    %cst = arith.constant dense<0.000000e+00> : vector<64x128xf32>
    %4 = tpu.matmul %1, %3, %cst {dimension_numbers = #tpu.dot_dimension_numbers<[1], [0], [0], [1], [0, 0, 1, 1], [], []>} : vector<64x288xbf16>, vector<288x128xbf16>, vector<64x128xf32> -> vector<64x128xf32>
    %5 = vector.extract_strided_slice %4 {offsets = [0, 0], sizes = [64, 8], strides = [1, 1]} : vector<64x128xf32> to vector<64x8xf32>
    %6 = vector.extract_strided_slice %4 {offsets = [0, 8], sizes = [64, 8], strides = [1, 1]} : vector<64x128xf32> to vector<64x8xf32>
    %7 = arith.maximumf %5, %6 : vector<64x8xf32>
    %8 = vector.extract_strided_slice %4 {offsets = [0, 16], sizes = [64, 8], strides = [1, 1]} : vector<64x128xf32> to vector<64x8xf32>
    %9 = arith.maximumf %7, %8 : vector<64x8xf32>
    %10 = vector.extract_strided_slice %4 {offsets = [0, 24], sizes = [64, 8], strides = [1, 1]} : vector<64x128xf32> to vector<64x8xf32>
    %11 = arith.maximumf %9, %10 : vector<64x8xf32>
    %12 = vector.extract_strided_slice %4 {offsets = [0, 32], sizes = [64, 8], strides = [1, 1]} : vector<64x128xf32> to vector<64x8xf32>
    %13 = arith.maximumf %11, %12 : vector<64x8xf32>
    %14 = vector.extract_strided_slice %4 {offsets = [0, 40], sizes = [64, 8], strides = [1, 1]} : vector<64x128xf32> to vector<64x8xf32>
    %15 = arith.maximumf %13, %14 : vector<64x8xf32>
    %16 = vector.extract_strided_slice %4 {offsets = [0, 48], sizes = [64, 8], strides = [1, 1]} : vector<64x128xf32> to vector<64x8xf32>
    %17 = arith.maximumf %15, %16 : vector<64x8xf32>
    %18 = vector.extract_strided_slice %4 {offsets = [0, 56], sizes = [64, 8], strides = [1, 1]} : vector<64x128xf32> to vector<64x8xf32>
    %19 = arith.maximumf %17, %18 : vector<64x8xf32>
    %20 = vector.extract_strided_slice %4 {offsets = [0, 64], sizes = [64, 8], strides = [1, 1]} : vector<64x128xf32> to vector<64x8xf32>
    %21 = arith.maximumf %19, %20 : vector<64x8xf32>
    %22 = vector.extract_strided_slice %4 {offsets = [0, 72], sizes = [64, 8], strides = [1, 1]} : vector<64x128xf32> to vector<64x8xf32>
    %23 = arith.maximumf %21, %22 : vector<64x8xf32>
    %24 = vector.extract_strided_slice %4 {offsets = [0, 80], sizes = [64, 8], strides = [1, 1]} : vector<64x128xf32> to vector<64x8xf32>
    %25 = arith.maximumf %23, %24 : vector<64x8xf32>
    %26 = vector.extract_strided_slice %4 {offsets = [0, 88], sizes = [64, 8], strides = [1, 1]} : vector<64x128xf32> to vector<64x8xf32>
    %27 = arith.maximumf %25, %26 : vector<64x8xf32>
    %28 = vector.extract_strided_slice %4 {offsets = [0, 96], sizes = [64, 8], strides = [1, 1]} : vector<64x128xf32> to vector<64x8xf32>
    %29 = arith.maximumf %27, %28 : vector<64x8xf32>
    %30 = vector.extract_strided_slice %4 {offsets = [0, 104], sizes = [64, 8], strides = [1, 1]} : vector<64x128xf32> to vector<64x8xf32>
    %31 = arith.maximumf %29, %30 : vector<64x8xf32>
    %32 = vector.extract_strided_slice %4 {offsets = [0, 112], sizes = [64, 8], strides = [1, 1]} : vector<64x128xf32> to vector<64x8xf32>
    %33 = arith.maximumf %31, %32 : vector<64x8xf32>
    %34 = vector.extract_strided_slice %4 {offsets = [0, 120], sizes = [64, 8], strides = [1, 1]} : vector<64x128xf32> to vector<64x8xf32>
    %35 = arith.maximumf %33, %34 : vector<64x8xf32>
    %c0_5 = arith.constant 0 : index
    %c0_6 = arith.constant 0 : index
    %c0_7 = arith.constant 0 : index
    %36 = vector.load %arg3[%c0_5, %c0_6, %c0_7] : memref<1x64x1xf32, #tpu.memory_space<vmem>>, vector<1x64x1xf32>
    %37 = vector.shape_cast %36 : vector<1x64x1xf32> to vector<64x1xf32>
    %38 = vector.broadcast %37 : vector<64x1xf32> to vector<64x8xf32>
    %39 = arith.addf %35, %38 : vector<64x8xf32>
    %cst_8 = arith.constant 0.000000e+00 : f32
    %40 = vector.broadcast %cst_8 : f32 to vector<64x8xf32>
    %41 = arith.maximumf %39, %40 : vector<64x8xf32>
    %42 = arith.truncf %41 : vector<64x8xf32> to vector<64x8xbf16>
    %c0_9 = arith.constant 0 : index
    %c0_10 = arith.constant 0 : index
    %c0_11 = arith.constant 0 : index
    %43 = vector.load %arg4[%c0_9, %c0_10, %c0_11] : memref<1x64x8xbf16, #tpu.memory_space<vmem>>, vector<1x64x8xbf16>
    %44 = vector.shape_cast %43 : vector<1x64x8xbf16> to vector<64x8xbf16>
    %45 = vector.shape_cast %42 : vector<64x8xbf16> to vector<1x64x8xbf16>
    tpu.vector_store %arg4[%c0_9, %c0_10, %c0_11], %45 {strides = array<i32>} : memref<1x64x8xbf16, #tpu.memory_space<vmem>>, vector<1x64x8xbf16>,
    return
  }
  func.func @transform_0(%arg0: i32) -> (i32, i32, i32) {
    %c0_i32 = arith.constant 0 : i32
    %c0_i32_0 = arith.constant 0 : i32
    %c0_i32_1 = arith.constant 0 : i32
    return %arg0, %c0_i32, %c0_i32_0 : i32, i32, i32
  }
  func.func @transform_1(%arg0: i32) -> (i32, i32, i32) {
    %c0_i32 = arith.constant 0 : i32
    %c0_i32_0 = arith.constant 0 : i32
    %c0_i32_1 = arith.constant 0 : i32
    return %arg0, %c0_i32, %c0_i32_0 : i32, i32, i32
  }
  func.func @transform_2(%arg0: i32) -> (i32, i32, i32) {
    %c0_i32 = arith.constant 0 : i32
    %c0_i32_0 = arith.constant 0 : i32
    %c0_i32_1 = arith.constant 0 : i32
    return %arg0, %c0_i32, %c0_i32_0 : i32, i32, i32
  }
  func.func @transform_3(%arg0: i32) -> (i32, i32, i32) {
    %c0_i32 = arith.constant 0 : i32
    %c0_i32_0 = arith.constant 0 : i32
    %c0_i32_1 = arith.constant 0 : i32
    return %arg0, %c0_i32, %c0_i32_0 : i32, i32, i32
  }
}

module attributes {stable_mosaic.version = 11 : i64} {
  func.func @classifier_kernel(%arg0: i32, %arg1: memref<2x2304xbf16, #tpu.memory_space<vmem>>, %arg2: memref<2304x256xbf16, #tpu.memory_space<vmem>>, %arg3: memref<1x256xf32, #tpu.memory_space<vmem>>, %arg4: memref<256x10xbf16, #tpu.memory_space<vmem>>, %arg5: memref<1x2x10xf32, #tpu.memory_space<vmem>>) attributes {dimension_semantics = [#tpu.dimension_semantics<parallel>], iteration_bounds = array<i64: 2>, scalar_prefetch = 0 : i64, scratch_operands = 0 : i64, tpu.core_type = #tpu.core_type<tc>, window_params = [{pipeline_mode = #tpu.pipeline_mode<synchronous>, transform_indices = @transform_0, window_bounds = array<i64: 2, 2304>}, {transform_indices = @transform_1, window_bounds = array<i64: 2304, 256>}, {transform_indices = @transform_2, window_bounds = array<i64: 1, 256>}, {transform_indices = @transform_3, window_bounds = array<i64: 256, 10>}, {transform_indices = @transform_4, window_bounds = array<i64: 1, 2, 10>}]} {
    %c0 = arith.constant 0 : index
    %c0_0 = arith.constant 0 : index
    %0 = vector.load %arg1[%c0, %c0_0] : memref<2x2304xbf16, #tpu.memory_space<vmem>>, vector<2x2304xbf16>
    %c0_1 = arith.constant 0 : index
    %c0_2 = arith.constant 0 : index
    %1 = vector.load %arg2[%c0_1, %c0_2] : memref<2304x256xbf16, #tpu.memory_space<vmem>>, vector<2304x256xbf16>
    %cst = arith.constant dense<0.000000e+00> : vector<2x256xf32>
    %2 = tpu.matmul %0, %1, %cst {dimension_numbers = #tpu.dot_dimension_numbers<[1], [0], [0], [1], [0, 0, 1, 1], [], []>} : vector<2x2304xbf16>, vector<2304x256xbf16>, vector<2x256xf32> -> vector<2x256xf32>
    %c0_3 = arith.constant 0 : index
    %c0_4 = arith.constant 0 : index
    %3 = vector.load %arg3[%c0_3, %c0_4] : memref<1x256xf32, #tpu.memory_space<vmem>>, vector<1x256xf32>
    %4 = vector.broadcast %3 : vector<1x256xf32> to vector<2x256xf32>
    %5 = arith.addf %2, %4 : vector<2x256xf32>
    %cst_5 = arith.constant 0.000000e+00 : f32
    %6 = vector.broadcast %cst_5 : f32 to vector<2x256xf32>
    %7 = arith.maximumf %5, %6 : vector<2x256xf32>
    %8 = arith.truncf %7 : vector<2x256xf32> to vector<2x256xbf16>
    %c0_6 = arith.constant 0 : index
    %c0_7 = arith.constant 0 : index
    %9 = vector.load %arg4[%c0_6, %c0_7] : memref<256x10xbf16, #tpu.memory_space<vmem>>, vector<256x10xbf16>
    %cst_8 = arith.constant dense<0.000000e+00> : vector<2x10xf32>
    %10 = tpu.matmul %8, %9, %cst_8 {dimension_numbers = #tpu.dot_dimension_numbers<[1], [0], [0], [1], [0, 0, 1, 1], [], []>} : vector<2x256xbf16>, vector<256x10xbf16>, vector<2x10xf32> -> vector<2x10xf32>
    %c0_9 = arith.constant 0 : index
    %c0_10 = arith.constant 0 : index
    %c0_11 = arith.constant 0 : index
    %11 = vector.load %arg5[%c0_9, %c0_10, %c0_11] : memref<1x2x10xf32, #tpu.memory_space<vmem>>, vector<1x2x10xf32>
    %12 = vector.shape_cast %11 : vector<1x2x10xf32> to vector<2x10xf32>
    %13 = vector.shape_cast %10 : vector<2x10xf32> to vector<1x2x10xf32>
    tpu.vector_store %arg5[%c0_9, %c0_10, %c0_11], %13 {strides = array<i32>} : memref<1x2x10xf32, #tpu.memory_space<vmem>>, vector<1x2x10xf32>,
    return
  }
  func.func @transform_0(%arg0: i32) -> (i32, i32) {
    %c0_i32 = arith.constant 0 : i32
    %c0_i32_0 = arith.constant 0 : i32
    %c0_i32_1 = arith.constant 0 : i32
    return %c0_i32, %c0_i32_0 : i32, i32
  }
  func.func @transform_1(%arg0: i32) -> (i32, i32) {
    %c0_i32 = arith.constant 0 : i32
    %c0_i32_0 = arith.constant 0 : i32
    return %c0_i32, %arg0 : i32, i32
  }
  func.func @transform_2(%arg0: i32) -> (i32, i32) {
    %c0_i32 = arith.constant 0 : i32
    %c0_i32_0 = arith.constant 0 : i32
    return %c0_i32, %arg0 : i32, i32
  }
  func.func @transform_3(%arg0: i32) -> (i32, i32) {
    %c0_i32 = arith.constant 0 : i32
    %c0_i32_0 = arith.constant 0 : i32
    return %arg0, %c0_i32 : i32, i32
  }
  func.func @transform_4(%arg0: i32) -> (i32, i32, i32) {
    %c0_i32 = arith.constant 0 : i32
    %c0_i32_0 = arith.constant 0 : i32
    %c0_i32_1 = arith.constant 0 : i32
    return %arg0, %c0_i32, %c0_i32_0 : i32, i32, i32
  }
}

</mosaic_0001>

<llo_original>
// kernel: multi_input_forward.4
$region0: #{multi_input_forward.4}
  #allocation0 [shape = 'u32[]', space=smem, size = 0x4, offset = 0x4, fixed_abs, tag = 'smem constant byte address 0x4 - core index']
  #allocation1 [shape = 'u32[144,128]{1,0:T(1,128)}', space=vmem, size = 0x12000, scoped, tag = 'internal scratch']
  %s0 = inlined_call_operand.vmem [shape: bf16[2,36,2048], index: 0, kind: input, shape index: {}]
  %s1 = inlined_call_operand.vmem [shape: bf16[2,16,36], index: 1, kind: input, shape index: {}]
  %s2 = inlined_call_operand.vmem [shape: f32[2,16,1], index: 2, kind: input, shape index: {}]
  %s3 = inlined_call_operand.vmem [shape: bf16[2,16,512], index: 3, kind: output, shape index: {}]
  %s4 = sld [smem:[#allocation0]]
  $region45: #{multi_input_forward.4} parent=0
    _
  %s6 = ssub.s32 1, %s4
  %s7 = scalar_select 0, %s6, %s4
  loop: start=0, step=1, limit=4
  $region2: #{multi_input_forward.4} parent=0 // loop_pre_header
    _
  $region3: #{multi_input_forward.4} parent=0 // loop_header
    %s9 = sphi 0, %s13
    %p10 = scmp.ge.s32.totalorder %s9, 4
    %s19 = sphi 0, %s21
    %s22 = sphi 0, %s19
    %s23 = sphi 0, %s22
    %s39 = sphi 0, %s23
    %s45 = sphi 0, %s47
    %s48 = sphi 0, %s45
    %s49 = sphi 0, %s48
    %s65 = sphi 0, %s49
    %s71 = sphi 0, %s73
    %s74 = sphi 0, %s71
    %s75 = sphi 0, %s74
    %s91 = sphi 0, %s75
    %s97 = sphi 0, %s99
    %s100 = sphi 0, %s97
    %s101 = sphi 0, %s100
    %s117 = sphi 0, %s101
  $region4: #{multi_input_forward.4} parent=0 // loop_header_branch
    %12 = sbr.rel (%p10) target = $region8
  $region5: #{multi_input_forward.4} parent=0 // loop_body
    %s14 = ssub.s32 %s9, 1
    %s15 = ssub.s32 %s9, 2
    %s16 = sadd.s32 %s9, 1
    %s17 = ssub.s32 %s9, %s16
    %p18 = scmp.eq.s32.totalorder %s17, 0
    %s20 = sadd.s32 %s19, 1
    %s21 = scalar_select %p18, %s19, %s20
    %p24 = pneg %p18
    %p25 = scmp.eq.s32.totalorder %s9, 1
    %p26 = por %p24, %p25
    %p27 = scmp.ne.s32.totalorder %s19, %s22
    %p28 = scmp.eq.s32.totalorder %s9, 0
    %p29 = por %p27, %p28
    %p30 = scmp.ne.s32.totalorder %s19, %s22
    %p31 = scmp.eq.s32.totalorder %s14, 1
    %p32 = por %p30, %p31
    %p33 = scmp.ne.s32.totalorder %s22, %s23
    %p34 = scmp.eq.s32.totalorder %s14, 0
    %p35 = por %p33, %p34
    %p36 = scmp.ne.s32.totalorder %s22, %s23
    %p37 = scmp.eq.s32.totalorder %s15, 1
    %p38 = por %p36, %p37
    %p40 = scmp.ne.s32.totalorder %s23, %s39
    %p41 = scmp.eq.s32.totalorder %s15, 0
    %p42 = por %p40, %p41
    %s43 = ssub.s32 %s9, %s16
    %p44 = scmp.eq.s32.totalorder %s43, 0
    %s46 = sadd.s32 %s45, 1
    %s47 = scalar_select %p44, %s45, %s46
    %p50 = pneg %p44
    %p51 = scmp.eq.s32.totalorder %s9, 1
    %p52 = por %p50, %p51
    %p53 = scmp.ne.s32.totalorder %s45, %s48
    %p54 = scmp.eq.s32.totalorder %s9, 0
    %p55 = por %p53, %p54
    %p56 = scmp.ne.s32.totalorder %s45, %s48
    %p57 = scmp.eq.s32.totalorder %s14, 1
    %p58 = por %p56, %p57
    %p59 = scmp.ne.s32.totalorder %s48, %s49
    %p60 = scmp.eq.s32.totalorder %s14, 0
    %p61 = por %p59, %p60
    %p62 = scmp.ne.s32.totalorder %s48, %s49
    %p63 = scmp.eq.s32.totalorder %s15, 1
    %p64 = por %p62, %p63
    %p66 = scmp.ne.s32.totalorder %s49, %s65
    %p67 = scmp.eq.s32.totalorder %s15, 0
    %p68 = por %p66, %p67
    %s69 = ssub.s32 %s9, %s16
    %p70 = scmp.eq.s32.totalorder %s69, 0
    %s72 = sadd.s32 %s71, 1
    %s73 = scalar_select %p70, %s71, %s72
    %p76 = pneg %p70
    %p77 = scmp.eq.s32.totalorder %s9, 1
    %p78 = por %p76, %p77
    %p79 = scmp.ne.s32.totalorder %s71, %s74
    %p80 = scmp.eq.s32.totalorder %s9, 0
    %p81 = por %p79, %p80
    %p82 = scmp.ne.s32.totalorder %s71, %s74
    %p83 = scmp.eq.s32.totalorder %s14, 1
    %p84 = por %p82, %p83
    %p85 = scmp.ne.s32.totalorder %s74, %s75
    %p86 = scmp.eq.s32.totalorder %s14, 0
    %p87 = por %p85, %p86
    %p88 = scmp.ne.s32.totalorder %s74, %s75
    %p89 = scmp.eq.s32.totalorder %s15, 1
    %p90 = por %p88, %p89
    %p92 = scmp.ne.s32.totalorder %s75, %s91
    %p93 = scmp.eq.s32.totalorder %s15, 0
    %p94 = por %p92, %p93
    %s95 = ssub.s32 %s9, %s16
    %p96 = scmp.eq.s32.totalorder %s95, 0
    %s98 = sadd.s32 %s97, 1
    %s99 = scalar_select %p96, %s97, %s98
    %p102 = pneg %p96
    %p103 = scmp.eq.s32.totalorder %s9, 1
    %p104 = por %p102, %p103
    %p105 = scmp.ne.s32.totalorder %s97, %s100
    %p106 = scmp.eq.s32.totalorder %s9, 0
    %p107 = por %p105, %p106
    %p108 = scmp.ne.s32.totalorder %s97, %s100
    %p109 = scmp.eq.s32.totalorder %s14, 1
    %p110 = por %p108, %p109
    %p111 = scmp.ne.s32.totalorder %s100, %s101
    %p112 = scmp.eq.s32.totalorder %s14, 0
    %p113 = por %p111, %p112
    %p114 = scmp.ne.s32.totalorder %s100, %s101
    %p115 = scmp.eq.s32.totalorder %s15, 1
    %p116 = por %p114, %p115
    %p118 = scmp.ne.s32.totalorder %s101, %s117
    %p119 = scmp.eq.s32.totalorder %s15, 0
    %p120 = por %p118, %p119
    %p121 = scmp.le.s32.totalorder 1, %s9
    %p122 = scmp.lt.s32.totalorder %s9, 3
    %p123 = pnand %p121, %p122
    %p124 = pneg %p123
    // Predicated region
    $region9: #{multi_input_forward.4} parent=5 // pred_check
      _
    $region10: #{multi_input_forward.4} parent=5 // pred_check_branch
      %126 = sbr.rel (%p123) target = $region12
    $region11: #{multi_input_forward.4} parent=5 // pred_region
      %s127 = ssub.s32 %s9, 1
    $region12: #{multi_input_forward.4} parent=5 // pred_fallthru
      _
    %p128 = scmp.lt.s32.totalorder %s9, 2
    // Predicated region
    $region13: #{multi_input_forward.4} parent=5 // pred_check
      %p129 = pneg %p128
    $region14: #{multi_input_forward.4} parent=5 // pred_check_branch
      %131 = sbr.rel (%p129) target = $region16
    $region15: #{multi_input_forward.4} parent=5 // pred_region
      // Predicated region
      $region17: #{multi_input_forward.4} parent=15 // pred_check
        %p132 = pneg %p29
      $region18: #{multi_input_forward.4} parent=15 // pred_check_branch
        %134 = sbr.rel (%p132) target = $region20
      $region19: #{multi_input_forward.4} parent=15 // pred_region
        %p135 = scmp.lt.s32.totalorder %s9, 1
        %s136 = scalar_select %p135, %s9, 1
        %s137 = smul.addr %s136, 80
        %s138 = smul.addr %s137, 4
        %s139 = scalar_lea.vmem %s0, %s138
      $region20: #{multi_input_forward.4} parent=15 // pred_fallthru
        _
      // Predicated region
      $region21: #{multi_input_forward.4} parent=15 // pred_check
        %p140 = pneg %p55
      $region22: #{multi_input_forward.4} parent=15 // pred_check_branch
        %142 = sbr.rel (%p140) target = $region24
      $region23: #{multi_input_forward.4} parent=15 // pred_region
        %p143 = scmp.lt.s32.totalorder %s9, 1
        %s144 = scalar_select %p143, %s9, 1
        %s145 = smul.addr %s144, 2
        %s146 = smul.addr %s145, 4
        %s147 = scalar_lea.vmem %s1, %s146
      $region24: #{multi_input_forward.4} parent=15 // pred_fallthru
        _
      // Predicated region
      $region25: #{multi_input_forward.4} parent=15 // pred_check
        %p148 = pneg %p81
      $region26: #{multi_input_forward.4} parent=15 // pred_check_branch
        %150 = sbr.rel (%p148) target = $region28
      $region27: #{multi_input_forward.4} parent=15 // pred_region
        %p151 = scmp.lt.s32.totalorder %s9, 1
        %s152 = scalar_select %p151, %s9, 1
        %s153 = smul.addr %s152, 2
        %s154 = smul.addr %s153, 8
        %s155 = scalar_lea.vmem %s2, %s154
      $region28: #{multi_input_forward.4} parent=15 // pred_fallthru
        _
    $region16: #{multi_input_forward.4} parent=5 // pred_fallthru
      _
    %p156 = scmp.le.s32.totalorder 1, %s9
    %p157 = scmp.lt.s32.totalorder %s9, 3
    %p158 = pnand %p156, %p157
    %p159 = pneg %p158
    // Predicated region
    $region29: #{multi_input_forward.4} parent=5 // pred_check
      _
    $region30: #{multi_input_forward.4} parent=5 // pred_check_branch
      %161 = sbr.rel (%p158) target = $region32
    $region31: #{multi_input_forward.4} parent=5 // pred_region
      %s162 = ssub.s32 %s9, 1
      %p163 = scmp.lt.s32.totalorder %s14, 1
      %s164 = scalar_select %p163, %s14, 1
      %s165 = smul.addr %s164, 80
      %s166 = smul.addr %s165, 4
      %s167 = scalar_lea.vmem %s0, %s166
      %p168 = pneg %p35
      %p169 = pneg %p32
      %p170 = scmp.lt.s32.totalorder %s14, 1
      %s171 = scalar_select %p170, %s14, 1
      %s172 = smul.addr %s171, 2
      %s173 = smul.addr %s172, 4
      %s174 = scalar_lea.vmem %s1, %s173
      %p175 = pneg %p61
      %p176 = pneg %p58
      %p177 = scmp.lt.s32.totalorder %s14, 1
      %s178 = scalar_select %p177, %s14, 1
      %s179 = smul.addr %s178, 2
      %s180 = smul.addr %s179, 8
      %s181 = scalar_lea.vmem %s2, %s180
      %p182 = pneg %p87
      %p183 = pneg %p84
      %p184 = pneg %p113
      %p185 = pneg %p110
      %p186 = scmp.lt.s32.totalorder %s14, 1
      %s187 = scalar_select %p186, %s14, 1
      %s188 = smul.addr %s187, 8
      %s189 = smul.addr %s188, 4
      %s190 = scalar_lea.vmem %s3, %s189
      %p191 = scmp.lt.s32.totalorder %s14, 1
      %s192 = scalar_select %p191, %s14, 1
      %s193 = smul.addr %s192, 80
      %s194 = smul.addr %s193, 4
      %s195 = scalar_lea.vmem %s0, %s194
      %p196 = scmp.lt.s32.totalorder %s14, 1
      %s197 = scalar_select %p196, %s14, 1
      %s198 = smul.addr %s197, 2
      %s199 = smul.addr %s198, 4
      %s200 = scalar_lea.vmem %s1, %s199
      %p201 = scmp.lt.s32.totalorder %s14, 1
      %s202 = scalar_select %p201, %s14, 1
      %s203 = smul.addr %s202, 2
      %s204 = smul.addr %s203, 8
      %s205 = scalar_lea.vmem %s2, %s204
      %p206 = scmp.lt.s32.totalorder %s14, 1
      %s207 = scalar_select %p206, %s14, 1
      %s208 = smul.addr %s207, 8
      %s209 = smul.addr %s208, 4
      %s210 = scalar_lea.vmem %s3, %s209
      %v212 = vld [vmem:[%s200] sm:$0xf]
      %v213 = vld [vmem:[%s200 + $0x4] sm:$0xf]
      %v214 = vld [vmem:[%s195] sm:$0xff]
      %v215 = vld [vmem:[%s195 + $0x8] sm:$0xff]
      %v216 = vld [vmem:[%s195 + $0x10] sm:$0xff]
      %v217 = vld [vmem:[%s195 + $0x18] sm:$0xff]
      %v218 = vld [vmem:[%s195 + $0x20] sm:$0xff]
      %v219 = vld [vmem:[%s195 + $0x28] sm:$0xff]
      %v220 = vld [vmem:[%s195 + $0x30] sm:$0xff]
      %v221 = vld [vmem:[%s195 + $0x38] sm:$0xff]
      %v222 = vld [vmem:[%s195 + $0x40] sm:$0xff]
      %v223 = vld [vmem:[%s195 + $0x48] sm:$0xff]
      %v224 = vld [vmem:[%s195 + $0x50] sm:$0xff]
      %v225 = vld [vmem:[%s195 + $0x58] sm:$0xff]
      %v226 = vld [vmem:[%s195 + $0x60] sm:$0xff]
      %v227 = vld [vmem:[%s195 + $0x68] sm:$0xff]
      %v228 = vld [vmem:[%s195 + $0x70] sm:$0xff]
      %v229 = vld [vmem:[%s195 + $0x78] sm:$0xff]
      %v230 = vld [vmem:[%s195 + $0x80] sm:$0xff]
      %v231 = vld [vmem:[%s195 + $0x88] sm:$0xff]
      %v232 = vld [vmem:[%s195 + $0x90] sm:$0xff]
      %v233 = vld [vmem:[%s195 + $0x98] sm:$0xff]
      %v234 = vld [vmem:[%s195 + $0xa0] sm:$0xff]
      %v235 = vld [vmem:[%s195 + $0xa8] sm:$0xff]
      %v236 = vld [vmem:[%s195 + $0xb0] sm:$0xff]
      %v237 = vld [vmem:[%s195 + $0xb8] sm:$0xff]
      %v238 = vld [vmem:[%s195 + $0xc0] sm:$0xff]
      %v239 = vld [vmem:[%s195 + $0xc8] sm:$0xff]
      %v240 = vld [vmem:[%s195 + $0xd0] sm:$0xff]
      %v241 = vld [vmem:[%s195 + $0xd8] sm:$0xff]
      %v242 = vld [vmem:[%s195 + $0xe0] sm:$0xff]
      %v243 = vld [vmem:[%s195 + $0xe8] sm:$0xff]
      %v244 = vld [vmem:[%s195 + $0xf0] sm:$0xff]
      %v245 = vld [vmem:[%s195 + $0xf8] sm:$0xff]
      %v246 = vld [vmem:[%s195 + $0x100] sm:$0x33]
      %v247 = vld [vmem:[%s195 + $0x108] sm:$0x33]
      %v248 = vld [vmem:[%s195 + $0x110] sm:$0x33]
      %v249 = vld [vmem:[%s195 + $0x118] sm:$0x33]
      %v250 = vld [vmem:[%s195 + $0x120] sm:$0x33]
      %v251 = vld [vmem:[%s195 + $0x128] sm:$0x33]
      %v252 = vld [vmem:[%s195 + $0x130] sm:$0x33]
      %v253 = vld [vmem:[%s195 + $0x138] sm:$0x33]
      %v256 = vunpack.c.l.b16 %v212
      %v257 = vunpack.c.l.b16 %v213
      %v258 = vpack.c.b16 %v257, %v256
      %v299 = vunpack.c.l.b16 %v214
      %v300 = vunpack.c.h.b16 %v214
      %v301 = vunpack.c.l.b16 %v215
      %v302 = vunpack.c.h.b16 %v215
      %v303 = vunpack.c.l.b16 %v216
      %v304 = vunpack.c.h.b16 %v216
      %v305 = vunpack.c.l.b16 %v217
      %v306 = vunpack.c.h.b16 %v217
      %v307 = vunpack.c.l.b16 %v218
      %v308 = vunpack.c.h.b16 %v218
      %v309 = vunpack.c.l.b16 %v219
      %v310 = vunpack.c.h.b16 %v219
      %v311 = vunpack.c.l.b16 %v220
      %v312 = vunpack.c.h.b16 %v220
      %v313 = vunpack.c.l.b16 %v221
      %v314 = vunpack.c.h.b16 %v221
      %v315 = vunpack.c.l.b16 %v222
      %v316 = vunpack.c.h.b16 %v222
      %v317 = vunpack.c.l.b16 %v223
      %v318 = vunpack.c.h.b16 %v223
      %v319 = vunpack.c.l.b16 %v224
      %v320 = vunpack.c.h.b16 %v224
      %v321 = vunpack.c.l.b16 %v225
      %v322 = vunpack.c.h.b16 %v225
      %v323 = vunpack.c.l.b16 %v226
      %v324 = vunpack.c.h.b16 %v226
      %v325 = vunpack.c.l.b16 %v227
      %v326 = vunpack.c.h.b16 %v227
      %v327 = vunpack.c.l.b16 %v228
      %v328 = vunpack.c.h.b16 %v228
      %v329 = vunpack.c.l.b16 %v229
      %v330 = vunpack.c.h.b16 %v229
      %v331 = vunpack.c.l.b16 %v230
      %v332 = vunpack.c.h.b16 %v230
      %v333 = vunpack.c.l.b16 %v231
      %v334 = vunpack.c.h.b16 %v231
      %v335 = vunpack.c.l.b16 %v232
      %v336 = vunpack.c.h.b16 %v232
      %v337 = vunpack.c.l.b16 %v233
      %v338 = vunpack.c.h.b16 %v233
      %v339 = vunpack.c.l.b16 %v234
      %v340 = vunpack.c.h.b16 %v234
      %v341 = vunpack.c.l.b16 %v235
      %v342 = vunpack.c.h.b16 %v235
      %v343 = vunpack.c.l.b16 %v236
      %v344 = vunpack.c.h.b16 %v236
      %v345 = vunpack.c.l.b16 %v237
      %v346 = vunpack.c.h.b16 %v237
      %v347 = vunpack.c.l.b16 %v238
      %v348 = vunpack.c.h.b16 %v238
      %v349 = vunpack.c.l.b16 %v239
      %v350 = vunpack.c.h.b16 %v239
      %v351 = vunpack.c.l.b16 %v240
      %v352 = vunpack.c.h.b16 %v240
      %v353 = vunpack.c.l.b16 %v241
      %v354 = vunpack.c.h.b16 %v241
      %v355 = vunpack.c.l.b16 %v242
      %v356 = vunpack.c.h.b16 %v242
      %v357 = vunpack.c.l.b16 %v243
      %v358 = vunpack.c.h.b16 %v243
      %v359 = vunpack.c.l.b16 %v244
      %v360 = vunpack.c.h.b16 %v244
      %v361 = vunpack.c.l.b16 %v245
      %v362 = vunpack.c.h.b16 %v245
      %v363 = vunpack.c.l.b16 %v246
      %v364 = vunpack.c.h.b16 %v246
      %v365 = vunpack.c.l.b16 %v247
      %v366 = vunpack.c.h.b16 %v247
      %v367 = vunpack.c.l.b16 %v248
      %v368 = vunpack.c.h.b16 %v248
      %v369 = vunpack.c.l.b16 %v249
      %v370 = vunpack.c.h.b16 %v249
      %v371 = vunpack.c.l.b16 %v250
      %v372 = vunpack.c.h.b16 %v250
      %v373 = vunpack.c.l.b16 %v251
      %v374 = vunpack.c.h.b16 %v251
      %v375 = vunpack.c.l.b16 %v252
      %v376 = vunpack.c.h.b16 %v252
      %v377 = vunpack.c.l.b16 %v253
      %v378 = vunpack.c.h.b16 %v253
      %v379 = vpack.c.b16 %v315, %v299
      %v380 = vpack.c.b16 %v316, %v300
      %v381 = vpack.c.b16 %v317, %v301
      %v382 = vpack.c.b16 %v318, %v302
      %v383 = vpack.c.b16 %v319, %v303
      %v384 = vpack.c.b16 %v320, %v304
      %v385 = vpack.c.b16 %v321, %v305
      %v386 = vpack.c.b16 %v322, %v306
      %v387 = vpack.c.b16 %v323, %v307
      %v388 = vpack.c.b16 %v324, %v308
      %v389 = vpack.c.b16 %v325, %v309
      %v390 = vpack.c.b16 %v326, %v310
      %v391 = vpack.c.b16 %v327, %v311
      %v392 = vpack.c.b16 %v328, %v312
      %v393 = vpack.c.b16 %v329, %v313
      %v394 = vpack.c.b16 %v330, %v314
      %v395 = vpack.c.b16 %v347, %v331
      %v396 = vpack.c.b16 %v348, %v332
      %v397 = vpack.c.b16 %v349, %v333
      %v398 = vpack.c.b16 %v350, %v334
      %v399 = vpack.c.b16 %v351, %v335
      %v400 = vpack.c.b16 %v352, %v336
      %v401 = vpack.c.b16 %v353, %v337
      %v402 = vpack.c.b16 %v354, %v338
      %v403 = vpack.c.b16 %v355, %v339
      %v404 = vpack.c.b16 %v356, %v340
      %v405 = vpack.c.b16 %v357, %v341
      %v406 = vpack.c.b16 %v358, %v342
      %v407 = vpack.c.b16 %v359, %v343
      %v408 = vpack.c.b16 %v360, %v344
      %v409 = vpack.c.b16 %v361, %v345
      %v410 = vpack.c.b16 %v362, %v346
      %v411 = vpack.c.b16 %v363, %v363
      %v412 = vpack.c.b16 %v364, %v364
      %v413 = vpack.c.b16 %v365, %v365
      %v414 = vpack.c.b16 %v366, %v366
      %v415 = vpack.c.b16 %v367, %v367
      %v416 = vpack.c.b16 %v368, %v368
      %v417 = vpack.c.b16 %v369, %v369
      %v418 = vpack.c.b16 %v370, %v370
      %v419 = vpack.c.b16 %v371, %v371
      %v420 = vpack.c.b16 %v372, %v372
      %v421 = vpack.c.b16 %v373, %v373
      %v422 = vpack.c.b16 %v374, %v374
      %v423 = vpack.c.b16 %v375, %v375
      %v424 = vpack.c.b16 %v376, %v376
      %v425 = vpack.c.b16 %v377, %v377
      %v426 = vpack.c.b16 %v378, %v378
      %vm459 = vcmask 293888
      %v461 = vsel %vm459, %v258, 0
      %vm463 = vcmask 1041408
      %v465 = vsel %vm463, %v411, 0
      %v468 = vsel %vm463, %v412, 0
      %v471 = vsel %vm463, %v413, 0
      %v474 = vsel %vm463, %v414, 0
      %v477 = vsel %vm463, %v415, 0
      %v480 = vsel %vm463, %v416, 0
      %v483 = vsel %vm463, %v417, 0
      %v486 = vsel %vm463, %v418, 0
      %v489 = vsel %vm463, %v419, 0
      %v492 = vsel %vm463, %v420, 0
      %v495 = vsel %vm463, %v421, 0
      %v498 = vsel %vm463, %v422, 0
      %v501 = vsel %vm463, %v423, 0
      %v504 = vsel %vm463, %v424, 0
      %v507 = vsel %vm463, %v425, 0
      %v510 = vsel %vm463, %v426, 0
      %512 = vmatprep.subr.bf16.mxu0 %v380
      %513 = vmatpush1.bf16.msra.mxu0 %v379
      %514 = vmatprep.subr.bf16.mxu0 %v396
      %515 = vmatpush1.bf16.msra.mxu0 %v395
      %516 = vmatprep.subr.bf16.mxu0 %v468
      %517 = vmatpush1.bf16.msra.mxu0 %v465
      %518 = vmatprep.subr.bf16.mxu0 0
      %519 = vmatpush1.bf16.msra.mxu0 0
      %520 = vmatprep.subr.bf16.mxu0 0
      %521 = vmatpush1.bf16.msra.mxu0 0
      %522 = vmatprep.subr.bf16.mxu0 0
      %523 = vmatpush1.bf16.msra.mxu0 0
      %524 = vmatprep.subr.bf16.mxu0 0
      %525 = vmatpush1.bf16.msra.mxu0 0
      %526 = vmatprep.subr.bf16.mxu0 0
      %527 = vmatpush1.bf16.msra.mxu0 0
      %528 = vmatprep.subr.bf16.mxu0 0
      %529 = vmatpush1.bf16.msra.mxu0 0
      %530 = vmatprep.subr.bf16.mxu0 0
      %531 = vmatpush1.bf16.msra.mxu0 0
      %532 = vmatprep.subr.bf16.mxu0 0
      %533 = vmatpush1.bf16.msra.mxu0 0
      %534 = vmatprep.subr.bf16.mxu0 0
      %535 = vmatpush1.bf16.msra.mxu0 0
      %536 = vmatprep.subr.bf16.mxu0 0
      %537 = vmatpush1.bf16.msra.mxu0 0
      %538 = vmatprep.subr.bf16.mxu0 0
      %539 = vmatpush1.bf16.msra.mxu0 0
      %540 = vmatprep.subr.bf16.mxu0 0
      %541 = vmatpush1.bf16.msra.mxu0 0
      %542 = vmatprep.subr.bf16.mxu0 0
      %543 = vmatpush1.bf16.msra.mxu0 0
      %544 = vmatprep.mubr.bf16.mxu0 0
      %545 = vmatmul.mubr.bf16.gmra.mrb[0].mxu0 %v461
      %v546 = vpop.f32.mrb[0].mxu0
      %v547 = vadd.f32 0.0, %v546
      %v548 = vpop.f32.mrb[0].mxu0
      %v549 = vadd.f32 0.0, %v548
      %v550 = vpop.f32.mrb[0].mxu0
      %v551 = vadd.f32 0.0, %v550
      %v552 = vpop.f32.mrb[0].mxu0
      %v553 = vadd.f32 0.0, %v552
      %554 = vdwg.mxu0
      %555 = vmatprep.subr.bf16.mxu0 %v382
      %556 = vmatpush1.bf16.msra.mxu0 %v381
      %557 = vmatprep.subr.bf16.mxu0 %v398
      %558 = vmatpush1.bf16.msra.mxu0 %v397
      %559 = vmatprep.subr.bf16.mxu0 %v474
      %560 = vmatpush1.bf16.msra.mxu0 %v471
      %561 = vmatprep.subr.bf16.mxu0 0
      %562 = vmatpush1.bf16.msra.mxu0 0
      %563 = vmatprep.subr.bf16.mxu0 0
      %564 = vmatpush1.bf16.msra.mxu0 0
      %565 = vmatprep.subr.bf16.mxu0 0
      %566 = vmatpush1.bf16.msra.mxu0 0
      %567 = vmatprep.subr.bf16.mxu0 0
      %568 = vmatpush1.bf16.msra.mxu0 0
      %569 = vmatprep.subr.bf16.mxu0 0
      %570 = vmatpush1.bf16.msra.mxu0 0
      %571 = vmatprep.subr.bf16.mxu0 0
      %572 = vmatpush1.bf16.msra.mxu0 0
      %573 = vmatprep.subr.bf16.mxu0 0
      %574 = vmatpush1.bf16.msra.mxu0 0
      %575 = vmatprep.subr.bf16.mxu0 0
      %576 = vmatpush1.bf16.msra.mxu0 0
      %577 = vmatprep.subr.bf16.mxu0 0
      %578 = vmatpush1.bf16.msra.mxu0 0
      %579 = vmatprep.subr.bf16.mxu0 0
      %580 = vmatpush1.bf16.msra.mxu0 0
      %581 = vmatprep.subr.bf16.mxu0 0
      %582 = vmatpush1.bf16.msra.mxu0 0
      %583 = vmatprep.subr.bf16.mxu0 0
      %584 = vmatpush1.bf16.msra.mxu0 0
      %585 = vmatprep.subr.bf16.mxu0 0
      %586 = vmatpush1.bf16.msra.mxu0 0
      %587 = vmatprep.mubr.bf16.mxu0 0
      %588 = vmatmul.mubr.bf16.gmra.mrb[0].mxu0 %v461
      %v589 = vpop.f32.mrb[0].mxu0
      %v590 = vadd.f32 0.0, %v589
      %v591 = vpop.f32.mrb[0].mxu0
      %v592 = vadd.f32 0.0, %v591
      %v593 = vpop.f32.mrb[0].mxu0
      %v594 = vadd.f32 0.0, %v593
      %v595 = vpop.f32.mrb[0].mxu0
      %v596 = vadd.f32 0.0, %v595
      %597 = vdwg.mxu0
      %598 = vmatprep.subr.bf16.mxu0 %v384
      %599 = vmatpush1.bf16.msra.mxu0 %v383
      %600 = vmatprep.subr.bf16.mxu0 %v400
      %601 = vmatpush1.bf16.msra.mxu0 %v399
      %602 = vmatprep.subr.bf16.mxu0 %v480
      %603 = vmatpush1.bf16.msra.mxu0 %v477
      %604 = vmatprep.subr.bf16.mxu0 0
      %605 = vmatpush1.bf16.msra.mxu0 0
      %606 = vmatprep.subr.bf16.mxu0 0
      %607 = vmatpush1.bf16.msra.mxu0 0
      %608 = vmatprep.subr.bf16.mxu0 0
      %609 = vmatpush1.bf16.msra.mxu0 0
      %610 = vmatprep.subr.bf16.mxu0 0
      %611 = vmatpush1.bf16.msra.mxu0 0
      %612 = vmatprep.subr.bf16.mxu0 0
      %613 = vmatpush1.bf16.msra.mxu0 0
      %614 = vmatprep.subr.bf16.mxu0 0
      %615 = vmatpush1.bf16.msra.mxu0 0
      %616 = vmatprep.subr.bf16.mxu0 0
      %617 = vmatpush1.bf16.msra.mxu0 0
      %618 = vmatprep.subr.bf16.mxu0 0
      %619 = vmatpush1.bf16.msra.mxu0 0
      %620 = vmatprep.subr.bf16.mxu0 0
      %621 = vmatpush1.bf16.msra.mxu0 0
      %622 = vmatprep.subr.bf16.mxu0 0
      %623 = vmatpush1.bf16.msra.mxu0 0
      %624 = vmatprep.subr.bf16.mxu0 0
      %625 = vmatpush1.bf16.msra.mxu0 0
      %626 = vmatprep.subr.bf16.mxu0 0
      %627 = vmatpush1.bf16.msra.mxu0 0
      %628 = vmatprep.subr.bf16.mxu0 0
      %629 = vmatpush1.bf16.msra.mxu0 0
      %630 = vmatprep.mubr.bf16.mxu0 0
      %631 = vmatmul.mubr.bf16.gmra.mrb[0].mxu0 %v461
      %v632 = vpop.f32.mrb[0].mxu0
      %v633 = vadd.f32 0.0, %v632
      %v634 = vpop.f32.mrb[0].mxu0
      %v635 = vadd.f32 0.0, %v634
      %v636 = vpop.f32.mrb[0].mxu0
      %v637 = vadd.f32 0.0, %v636
      %v638 = vpop.f32.mrb[0].mxu0
      %v639 = vadd.f32 0.0, %v638
      %640 = vdwg.mxu0
      %641 = vmatprep.subr.bf16.mxu0 %v386
      %642 = vmatpush1.bf16.msra.mxu0 %v385
      %643 = vmatprep.subr.bf16.mxu0 %v402
      %644 = vmatpush1.bf16.msra.mxu0 %v401
      %645 = vmatprep.subr.bf16.mxu0 %v486
      %646 = vmatpush1.bf16.msra.mxu0 %v483
      %647 = vmatprep.subr.bf16.mxu0 0
      %648 = vmatpush1.bf16.msra.mxu0 0
      %649 = vmatprep.subr.bf16.mxu0 0
      %650 = vmatpush1.bf16.msra.mxu0 0
      %651 = vmatprep.subr.bf16.mxu0 0
      %652 = vmatpush1.bf16.msra.mxu0 0
      %653 = vmatprep.subr.bf16.mxu0 0
      %654 = vmatpush1.bf16.msra.mxu0 0
      %655 = vmatprep.subr.bf16.mxu0 0
      %656 = vmatpush1.bf16.msra.mxu0 0
      %657 = vmatprep.subr.bf16.mxu0 0
      %658 = vmatpush1.bf16.msra.mxu0 0
      %659 = vmatprep.subr.bf16.mxu0 0
      %660 = vmatpush1.bf16.msra.mxu0 0
      %661 = vmatprep.subr.bf16.mxu0 0
      %662 = vmatpush1.bf16.msra.mxu0 0
      %663 = vmatprep.subr.bf16.mxu0 0
      %664 = vmatpush1.bf16.msra.mxu0 0
      %665 = vmatprep.subr.bf16.mxu0 0
      %666 = vmatpush1.bf16.msra.mxu0 0
      %667 = vmatprep.subr.bf16.mxu0 0
      %668 = vmatpush1.bf16.msra.mxu0 0
      %669 = vmatprep.subr.bf16.mxu0 0
      %670 = vmatpush1.bf16.msra.mxu0 0
      %671 = vmatprep.subr.bf16.mxu0 0
      %672 = vmatpush1.bf16.msra.mxu0 0
      %673 = vmatprep.mubr.bf16.mxu0 0
      %674 = vmatmul.mubr.bf16.gmra.mrb[0].mxu0 %v461
      %v675 = vpop.f32.mrb[0].mxu0
      %v676 = vadd.f32 0.0, %v675
      %v677 = vpop.f32.mrb[0].mxu0
      %v678 = vadd.f32 0.0, %v677
      %v679 = vpop.f32.mrb[0].mxu0
      %v680 = vadd.f32 0.0, %v679
      %v681 = vpop.f32.mrb[0].mxu0
      %v682 = vadd.f32 0.0, %v681
      %683 = vdwg.mxu0
      %684 = vmatprep.subr.bf16.mxu0 %v388
      %685 = vmatpush1.bf16.msra.mxu0 %v387
      %686 = vmatprep.subr.bf16.mxu0 %v404
      %687 = vmatpush1.bf16.msra.mxu0 %v403
      %688 = vmatprep.subr.bf16.mxu0 %v492
      %689 = vmatpush1.bf16.msra.mxu0 %v489
      %690 = vmatprep.subr.bf16.mxu0 0
      %691 = vmatpush1.bf16.msra.mxu0 0
      %692 = vmatprep.subr.bf16.mxu0 0
      %693 = vmatpush1.bf16.msra.mxu0 0
      %694 = vmatprep.subr.bf16.mxu0 0
      %695 = vmatpush1.bf16.msra.mxu0 0
      %696 = vmatprep.subr.bf16.mxu0 0
      %697 = vmatpush1.bf16.msra.mxu0 0
      %698 = vmatprep.subr.bf16.mxu0 0
      %699 = vmatpush1.bf16.msra.mxu0 0
      %700 = vmatprep.subr.bf16.mxu0 0
      %701 = vmatpush1.bf16.msra.mxu0 0
      %702 = vmatprep.subr.bf16.mxu0 0
      %703 = vmatpush1.bf16.msra.mxu0 0
      %704 = vmatprep.subr.bf16.mxu0 0
      %705 = vmatpush1.bf16.msra.mxu0 0
      %706 = vmatprep.subr.bf16.mxu0 0
      %707 = vmatpush1.bf16.msra.mxu0 0
      %708 = vmatprep.subr.bf16.mxu0 0
      %709 = vmatpush1.bf16.msra.mxu0 0
      %710 = vmatprep.subr.bf16.mxu0 0
      %711 = vmatpush1.bf16.msra.mxu0 0
      %712 = vmatprep.subr.bf16.mxu0 0
      %713 = vmatpush1.bf16.msra.mxu0 0
      %714 = vmatprep.subr.bf16.mxu0 0
      %715 = vmatpush1.bf16.msra.mxu0 0
      %716 = vmatprep.mubr.bf16.mxu0 0
      %717 = vmatmul.mubr.bf16.gmra.mrb[0].mxu0 %v461
      %v718 = vpop.f32.mrb[0].mxu0
      %v719 = vadd.f32 0.0, %v718
      %v720 = vpop.f32.mrb[0].mxu0
      %v721 = vadd.f32 0.0, %v720
      %v722 = vpop.f32.mrb[0].mxu0
      %v723 = vadd.f32 0.0, %v722
      %v724 = vpop.f32.mrb[0].mxu0
      %v725 = vadd.f32 0.0, %v724
      %726 = vdwg.mxu0
      %727 = vmatprep.subr.bf16.mxu0 %v390
      %728 = vmatpush1.bf16.msra.mxu0 %v389
      %729 = vmatprep.subr.bf16.mxu0 %v406
      %730 = vmatpush1.bf16.msra.mxu0 %v405
      %731 = vmatprep.subr.bf16.mxu0 %v498
      %732 = vmatpush1.bf16.msra.mxu0 %v495
      %733 = vmatprep.subr.bf16.mxu0 0
      %734 = vmatpush1.bf16.msra.mxu0 0
      %735 = vmatprep.subr.bf16.mxu0 0
      %736 = vmatpush1.bf16.msra.mxu0 0
      %737 = vmatprep.subr.bf16.mxu0 0
      %738 = vmatpush1.bf16.msra.mxu0 0
      %739 = vmatprep.subr.bf16.mxu0 0
      %740 = vmatpush1.bf16.msra.mxu0 0
      %741 = vmatprep.subr.bf16.mxu0 0
      %742 = vmatpush1.bf16.msra.mxu0 0
      %743 = vmatprep.subr.bf16.mxu0 0
      %744 = vmatpush1.bf16.msra.mxu0 0
      %745 = vmatprep.subr.bf16.mxu0 0
      %746 = vmatpush1.bf16.msra.mxu0 0
      %747 = vmatprep.subr.bf16.mxu0 0
      %748 = vmatpush1.bf16.msra.mxu0 0
      %749 = vmatprep.subr.bf16.mxu0 0
      %750 = vmatpush1.bf16.msra.mxu0 0
      %751 = vmatprep.subr.bf16.mxu0 0
      %752 = vmatpush1.bf16.msra.mxu0 0
      %753 = vmatprep.subr.bf16.mxu0 0
      %754 = vmatpush1.bf16.msra.mxu0 0
      %755 = vmatprep.subr.bf16.mxu0 0
      %756 = vmatpush1.bf16.msra.mxu0 0
      %757 = vmatprep.subr.bf16.mxu0 0
      %758 = vmatpush1.bf16.msra.mxu0 0
      %759 = vmatprep.mubr.bf16.mxu0 0
      %760 = vmatmul.mubr.bf16.gmra.mrb[0].mxu0 %v461
      %v761 = vpop.f32.mrb[0].mxu0
      %v762 = vadd.f32 0.0, %v761
      %v763 = vpop.f32.mrb[0].mxu0
      %v764 = vadd.f32 0.0, %v763
      %v765 = vpop.f32.mrb[0].mxu0
      %v766 = vadd.f32 0.0, %v765
      %v767 = vpop.f32.mrb[0].mxu0
      %v768 = vadd.f32 0.0, %v767
      %769 = vdwg.mxu0
      %770 = vmatprep.subr.bf16.mxu0 %v392
      %771 = vmatpush1.bf16.msra.mxu0 %v391
      %772 = vmatprep.subr.bf16.mxu0 %v408
      %773 = vmatpush1.bf16.msra.mxu0 %v407
      %774 = vmatprep.subr.bf16.mxu0 %v504
      %775 = vmatpush1.bf16.msra.mxu0 %v501
      %776 = vmatprep.subr.bf16.mxu0 0
      %777 = vmatpush1.bf16.msra.mxu0 0
      %778 = vmatprep.subr.bf16.mxu0 0
      %779 = vmatpush1.bf16.msra.mxu0 0
      %780 = vmatprep.subr.bf16.mxu0 0
      %781 = vmatpush1.bf16.msra.mxu0 0
      %782 = vmatprep.subr.bf16.mxu0 0
      %783 = vmatpush1.bf16.msra.mxu0 0
      %784 = vmatprep.subr.bf16.mxu0 0
      %785 = vmatpush1.bf16.msra.mxu0 0
      %786 = vmatprep.subr.bf16.mxu0 0
      %787 = vmatpush1.bf16.msra.mxu0 0
      %788 = vmatprep.subr.bf16.mxu0 0
      %789 = vmatpush1.bf16.msra.mxu0 0
      %790 = vmatprep.subr.bf16.mxu0 0
      %791 = vmatpush1.bf16.msra.mxu0 0
      %792 = vmatprep.subr.bf16.mxu0 0
      %793 = vmatpush1.bf16.msra.mxu0 0
      %794 = vmatprep.subr.bf16.mxu0 0
      %795 = vmatpush1.bf16.msra.mxu0 0
      %796 = vmatprep.subr.bf16.mxu0 0
      %797 = vmatpush1.bf16.msra.mxu0 0
      %798 = vmatprep.subr.bf16.mxu0 0
      %799 = vmatpush1.bf16.msra.mxu0 0
      %800 = vmatprep.subr.bf16.mxu0 0
      %801 = vmatpush1.bf16.msra.mxu0 0
      %802 = vmatprep.mubr.bf16.mxu0 0
      %803 = vmatmul.mubr.bf16.gmra.mrb[0].mxu0 %v461
      %v804 = vpop.f32.mrb[0].mxu0
      %v805 = vadd.f32 0.0, %v804
      %v806 = vpop.f32.mrb[0].mxu0
      %v807 = vadd.f32 0.0, %v806
      %v808 = vpop.f32.mrb[0].mxu0
      %v809 = vadd.f32 0.0, %v808
      %v810 = vpop.f32.mrb[0].mxu0
      %v811 = vadd.f32 0.0, %v810
      %812 = vdwg.mxu0
      %813 = vmatprep.subr.bf16.mxu0 %v394
      %814 = vmatpush1.bf16.msra.mxu0 %v393
      %815 = vmatprep.subr.bf16.mxu0 %v410
      %816 = vmatpush1.bf16.msra.mxu0 %v409
      %817 = vmatprep.subr.bf16.mxu0 %v510
      %818 = vmatpush1.bf16.msra.mxu0 %v507
      %819 = vmatprep.subr.bf16.mxu0 0
      %820 = vmatpush1.bf16.msra.mxu0 0
      %821 = vmatprep.subr.bf16.mxu0 0
      %822 = vmatpush1.bf16.msra.mxu0 0
      %823 = vmatprep.subr.bf16.mxu0 0
      %824 = vmatpush1.bf16.msra.mxu0 0
      %825 = vmatprep.subr.bf16.mxu0 0
      %826 = vmatpush1.bf16.msra.mxu0 0
      %827 = vmatprep.subr.bf16.mxu0 0
      %828 = vmatpush1.bf16.msra.mxu0 0
      %829 = vmatprep.subr.bf16.mxu0 0
      %830 = vmatpush1.bf16.msra.mxu0 0
      %831 = vmatprep.subr.bf16.mxu0 0
      %832 = vmatpush1.bf16.msra.mxu0 0
      %833 = vmatprep.subr.bf16.mxu0 0
      %834 = vmatpush1.bf16.msra.mxu0 0
      %835 = vmatprep.subr.bf16.mxu0 0
      %836 = vmatpush1.bf16.msra.mxu0 0
      %837 = vmatprep.subr.bf16.mxu0 0
      %838 = vmatpush1.bf16.msra.mxu0 0
      %839 = vmatprep.subr.bf16.mxu0 0
      %840 = vmatpush1.bf16.msra.mxu0 0
      %841 = vmatprep.subr.bf16.mxu0 0
      %842 = vmatpush1.bf16.msra.mxu0 0
      %843 = vmatprep.subr.bf16.mxu0 0
      %844 = vmatpush1.bf16.msra.mxu0 0
      %845 = vmatprep.mubr.bf16.mxu0 0
      %846 = vmatmul.mubr.bf16.gmra.mrb[0].mxu0 %v461
      %v847 = vpop.f32.mrb[0].mxu0
      %v848 = vadd.f32 0.0, %v847
      %v849 = vpop.f32.mrb[0].mxu0
      %v850 = vadd.f32 0.0, %v849
      %v851 = vpop.f32.mrb[0].mxu0
      %v852 = vadd.f32 0.0, %v851
      %v853 = vpop.f32.mrb[0].mxu0
      %v854 = vadd.f32 0.0, %v853
      %855 = vdwg.mxu0
      %v856 = vmax.f32 %v547, %v633
      %v857 = vmax.f32 %v549, %v635
      %v858 = vmax.f32 %v590, %v676
      %v859 = vmax.f32 %v592, %v678
      %v860 = vmax.f32 %v551, %v637
      %v861 = vmax.f32 %v553, %v639
      %v862 = vmax.f32 %v594, %v680
      %v863 = vmax.f32 %v596, %v682
      %v864 = vmax.f32 %v856, %v719
      %v865 = vmax.f32 %v857, %v721
      %v866 = vmax.f32 %v858, %v762
      %v867 = vmax.f32 %v859, %v764
      %v868 = vmax.f32 %v860, %v723
      %v869 = vmax.f32 %v861, %v725
      %v870 = vmax.f32 %v862, %v766
      %v871 = vmax.f32 %v863, %v768
      %v872 = vmax.f32 %v864, %v805
      %v873 = vmax.f32 %v865, %v807
      %v874 = vmax.f32 %v866, %v848
      %v875 = vmax.f32 %v867, %v850
      %v876 = vmax.f32 %v868, %v809
      %v877 = vmax.f32 %v869, %v811
      %v878 = vmax.f32 %v870, %v852
      %v879 = vmax.f32 %v871, %v854
      %v880 = vld [vmem:[%s205] sm:$0xff]
      %v881 = vld [vmem:[%s205 + $0x8] sm:$0xff]
      %883 = vset.pattern.permute.xlu0 0
      %884 = vperm.xlu0 %883, %v880
      %v885 = vpop.permute.xlu0 %884
      %888 = vset.pattern.permute.xlu0 0
      %889 = vperm.xlu0 %888, %v881
      %v890 = vpop.permute.xlu0 %889
      %v892 = vadd.f32 %v872, %v885
      %v893 = vadd.f32 %v873, %v885
      %v894 = vadd.f32 %v874, %v885
      %v895 = vadd.f32 %v875, %v885
      %v896 = vadd.f32 %v876, %v890
      %v897 = vadd.f32 %v877, %v890
      %v898 = vadd.f32 %v878, %v890
      %v899 = vadd.f32 %v879, %v890
      %v900 = vmax.f32 %v892, 0.0
      %v901 = vmax.f32 %v893, 0.0
      %v902 = vmax.f32 %v894, 0.0
      %v903 = vmax.f32 %v895, 0.0
      %v904 = vmax.f32 %v896, 0.0
      %v905 = vmax.f32 %v897, 0.0
      %v906 = vmax.f32 %v898, 0.0
      %v907 = vmax.f32 %v899, 0.0
      %v908 = vpack.c.bf16 %v904, %v900
      %v909 = vpack.c.bf16 %v905, %v901
      %v910 = vpack.c.bf16 %v906, %v902
      %v911 = vpack.c.bf16 %v907, %v903
      %v916 = vunpack.c.l.b16 %v908
      %v917 = vunpack.c.l.b16 %v909
      %v918 = vunpack.c.l.b16 %v910
      %v919 = vunpack.c.l.b16 %v911
      %v920 = vunpack.c.h.b16 %v908
      %v921 = vunpack.c.h.b16 %v909
      %v922 = vunpack.c.h.b16 %v910
      %v923 = vunpack.c.h.b16 %v911
      %v924 = vpack.c.b16 %v917, %v916
      %v925 = vpack.c.b16 %v919, %v918
      %v926 = vpack.c.b16 %v921, %v920
      %v927 = vpack.c.b16 %v923, %v922
      %932 = vst [vmem:[%s210] sm:$0xff] %v924
      %933 = vst [vmem:[%s210 + $0x8] sm:$0xff] %v925
      %934 = vst [vmem:[%s210 + $0x10] sm:$0xff] %v926
      %935 = vst [vmem:[%s210 + $0x18] sm:$0xff] %v927
      %p936 = scmp.lt.s32.totalorder %s14, 1
      %s937 = scalar_select %p936, %s14, 1
      %s938 = smul.addr %s937, 8
      %s939 = smul.addr %s938, 4
      %s940 = scalar_lea.vmem %s3, %s939
      // Predicated region
      $region33: #{multi_input_forward.4} parent=31 // pred_check
        %p941 = pneg %p110
      $region34: #{multi_input_forward.4} parent=31 // pred_check_branch
        %943 = sbr.rel (%p941) target = $region36
      $region35: #{multi_input_forward.4} parent=31 // pred_region
        _
      $region36: #{multi_input_forward.4} parent=31 // pred_fallthru
        _
    $region32: #{multi_input_forward.4} parent=5 // pred_fallthru
      _
    %p944 = scmp.le.s32.totalorder 2, %s9
    // Predicated region
    $region37: #{multi_input_forward.4} parent=5 // pred_check
      %p945 = pneg %p944
    $region38: #{multi_input_forward.4} parent=5 // pred_check_branch
      %947 = sbr.rel (%p945) target = $region40
    $region39: #{multi_input_forward.4} parent=5 // pred_region
      %s948 = ssub.s32 %s9, 2
      // Predicated region
      $region41: #{multi_input_forward.4} parent=39 // pred_check
        %p949 = pneg %p116
      $region42: #{multi_input_forward.4} parent=39 // pred_check_branch
        %951 = sbr.rel (%p949) target = $region44
      $region43: #{multi_input_forward.4} parent=39 // pred_region
        %p952 = scmp.lt.s32.totalorder %s15, 1
        %s953 = scalar_select %p952, %s15, 1
        %s954 = smul.addr %s953, 8
        %s955 = smul.addr %s954, 4
        %s956 = scalar_lea.vmem %s3, %s955
      $region44: #{multi_input_forward.4} parent=39 // pred_fallthru
        _
    $region40: #{multi_input_forward.4} parent=5 // pred_fallthru
      _
  $region6: #{multi_input_forward.4} parent=0 // loop_footer
    %s13 = sadd.s32 1, %s9
  $region7: #{multi_input_forward.4} parent=0 // loop_footer_branch
    %8 = sbr.rel target = $region3
  $region8: #{multi_input_forward.4} parent=0 // loop_exit
    _

// kernel: multi_input_forward.5
$region0: #{multi_input_forward.5}
  #allocation0 [shape = 'u32[]', space=smem, size = 0x4, offset = 0x4, fixed_abs, tag = 'smem constant byte address 0x4 - core index']
  #allocation1 [shape = 'u32[144,128]{1,0:T(1,128)}', space=vmem, size = 0x12000, scoped, tag = 'internal scratch']
  %s0 = inlined_call_operand.vmem [shape: bf16[2,144,512], index: 0, kind: input, shape index: {}]
  %s1 = inlined_call_operand.vmem [shape: bf16[2,32,144], index: 1, kind: input, shape index: {}]
  %s2 = inlined_call_operand.vmem [shape: f32[2,32,1], index: 2, kind: input, shape index: {}]
  %s3 = inlined_call_operand.vmem [shape: bf16[2,32,128], index: 3, kind: output, shape index: {}]
  %s4 = sld [smem:[#allocation0]]
  $region45: #{multi_input_forward.5} parent=0
    _
  %s6 = ssub.s32 1, %s4
  %s7 = scalar_select 0, %s6, %s4
  loop: start=0, step=1, limit=4
  $region2: #{multi_input_forward.5} parent=0 // loop_pre_header
    _
  $region3: #{multi_input_forward.5} parent=0 // loop_header
    %s9 = sphi 0, %s13
    %p10 = scmp.ge.s32.totalorder %s9, 4
    %s19 = sphi 0, %s21
    %s22 = sphi 0, %s19
    %s23 = sphi 0, %s22
    %s39 = sphi 0, %s23
    %s45 = sphi 0, %s47
    %s48 = sphi 0, %s45
    %s49 = sphi 0, %s48
    %s65 = sphi 0, %s49
    %s71 = sphi 0, %s73
    %s74 = sphi 0, %s71
    %s75 = sphi 0, %s74
    %s91 = sphi 0, %s75
    %s97 = sphi 0, %s99
    %s100 = sphi 0, %s97
    %s101 = sphi 0, %s100
    %s117 = sphi 0, %s101
  $region4: #{multi_input_forward.5} parent=0 // loop_header_branch
    %12 = sbr.rel (%p10) target = $region8
  $region5: #{multi_input_forward.5} parent=0 // loop_body
    %s14 = ssub.s32 %s9, 1
    %s15 = ssub.s32 %s9, 2
    %s16 = sadd.s32 %s9, 1
    %s17 = ssub.s32 %s9, %s16
    %p18 = scmp.eq.s32.totalorder %s17, 0
    %s20 = sadd.s32 %s19, 1
    %s21 = scalar_select %p18, %s19, %s20
    %p24 = pneg %p18
    %p25 = scmp.eq.s32.totalorder %s9, 1
    %p26 = por %p24, %p25
    %p27 = scmp.ne.s32.totalorder %s19, %s22
    %p28 = scmp.eq.s32.totalorder %s9, 0
    %p29 = por %p27, %p28
    %p30 = scmp.ne.s32.totalorder %s19, %s22
    %p31 = scmp.eq.s32.totalorder %s14, 1
    %p32 = por %p30, %p31
    %p33 = scmp.ne.s32.totalorder %s22, %s23
    %p34 = scmp.eq.s32.totalorder %s14, 0
    %p35 = por %p33, %p34
    %p36 = scmp.ne.s32.totalorder %s22, %s23
    %p37 = scmp.eq.s32.totalorder %s15, 1
    %p38 = por %p36, %p37
    %p40 = scmp.ne.s32.totalorder %s23, %s39
    %p41 = scmp.eq.s32.totalorder %s15, 0
    %p42 = por %p40, %p41
    %s43 = ssub.s32 %s9, %s16
    %p44 = scmp.eq.s32.totalorder %s43, 0
    %s46 = sadd.s32 %s45, 1
    %s47 = scalar_select %p44, %s45, %s46
    %p50 = pneg %p44
    %p51 = scmp.eq.s32.totalorder %s9, 1
    %p52 = por %p50, %p51
    %p53 = scmp.ne.s32.totalorder %s45, %s48
    %p54 = scmp.eq.s32.totalorder %s9, 0
    %p55 = por %p53, %p54
    %p56 = scmp.ne.s32.totalorder %s45, %s48
    %p57 = scmp.eq.s32.totalorder %s14, 1
    %p58 = por %p56, %p57
    %p59 = scmp.ne.s32.totalorder %s48, %s49
    %p60 = scmp.eq.s32.totalorder %s14, 0
    %p61 = por %p59, %p60
    %p62 = scmp.ne.s32.totalorder %s48, %s49
    %p63 = scmp.eq.s32.totalorder %s15, 1
    %p64 = por %p62, %p63
    %p66 = scmp.ne.s32.totalorder %s49, %s65
    %p67 = scmp.eq.s32.totalorder %s15, 0
    %p68 = por %p66, %p67
    %s69 = ssub.s32 %s9, %s16
    %p70 = scmp.eq.s32.totalorder %s69, 0
    %s72 = sadd.s32 %s71, 1
    %s73 = scalar_select %p70, %s71, %s72
    %p76 = pneg %p70
    %p77 = scmp.eq.s32.totalorder %s9, 1
    %p78 = por %p76, %p77
    %p79 = scmp.ne.s32.totalorder %s71, %s74
    %p80 = scmp.eq.s32.totalorder %s9, 0
    %p81 = por %p79, %p80
    %p82 = scmp.ne.s32.totalorder %s71, %s74
    %p83 = scmp.eq.s32.totalorder %s14, 1
    %p84 = por %p82, %p83
    %p85 = scmp.ne.s32.totalorder %s74, %s75
    %p86 = scmp.eq.s32.totalorder %s14, 0
    %p87 = por %p85, %p86
    %p88 = scmp.ne.s32.totalorder %s74, %s75
    %p89 = scmp.eq.s32.totalorder %s15, 1
    %p90 = por %p88, %p89
    %p92 = scmp.ne.s32.totalorder %s75, %s91
    %p93 = scmp.eq.s32.totalorder %s15, 0
    %p94 = por %p92, %p93
    %s95 = ssub.s32 %s9, %s16
    %p96 = scmp.eq.s32.totalorder %s95, 0
    %s98 = sadd.s32 %s97, 1
    %s99 = scalar_select %p96, %s97, %s98
    %p102 = pneg %p96
    %p103 = scmp.eq.s32.totalorder %s9, 1
    %p104 = por %p102, %p103
    %p105 = scmp.ne.s32.totalorder %s97, %s100
    %p106 = scmp.eq.s32.totalorder %s9, 0
    %p107 = por %p105, %p106
    %p108 = scmp.ne.s32.totalorder %s97, %s100
    %p109 = scmp.eq.s32.totalorder %s14, 1
    %p110 = por %p108, %p109
    %p111 = scmp.ne.s32.totalorder %s100, %s101
    %p112 = scmp.eq.s32.totalorder %s14, 0
    %p113 = por %p111, %p112
    %p114 = scmp.ne.s32.totalorder %s100, %s101
    %p115 = scmp.eq.s32.totalorder %s15, 1
    %p116 = por %p114, %p115
    %p118 = scmp.ne.s32.totalorder %s101, %s117
    %p119 = scmp.eq.s32.totalorder %s15, 0
    %p120 = por %p118, %p119
    %p121 = scmp.le.s32.totalorder 1, %s9
    %p122 = scmp.lt.s32.totalorder %s9, 3
    %p123 = pnand %p121, %p122
    %p124 = pneg %p123
    // Predicated region
    $region9: #{multi_input_forward.5} parent=5 // pred_check
      _
    $region10: #{multi_input_forward.5} parent=5 // pred_check_branch
      %126 = sbr.rel (%p123) target = $region12
    $region11: #{multi_input_forward.5} parent=5 // pred_region
      %s127 = ssub.s32 %s9, 1
    $region12: #{multi_input_forward.5} parent=5 // pred_fallthru
      _
    %p128 = scmp.lt.s32.totalorder %s9, 2
    // Predicated region
    $region13: #{multi_input_forward.5} parent=5 // pred_check
      %p129 = pneg %p128
    $region14: #{multi_input_forward.5} parent=5 // pred_check_branch
      %131 = sbr.rel (%p129) target = $region16
    $region15: #{multi_input_forward.5} parent=5 // pred_region
      // Predicated region
      $region17: #{multi_input_forward.5} parent=15 // pred_check
        %p132 = pneg %p29
      $region18: #{multi_input_forward.5} parent=15 // pred_check_branch
        %134 = sbr.rel (%p132) target = $region20
      $region19: #{multi_input_forward.5} parent=15 // pred_region
        %p135 = scmp.lt.s32.totalorder %s9, 1
        %s136 = scalar_select %p135, %s9, 1
        %s137 = smul.addr %s136, 72
        %s138 = smul.addr %s137, 4
        %s139 = scalar_lea.vmem %s0, %s138
      $region20: #{multi_input_forward.5} parent=15 // pred_fallthru
        _
      // Predicated region
      $region21: #{multi_input_forward.5} parent=15 // pred_check
        %p140 = pneg %p55
      $region22: #{multi_input_forward.5} parent=15 // pred_check_branch
        %142 = sbr.rel (%p140) target = $region24
      $region23: #{multi_input_forward.5} parent=15 // pred_region
        %p143 = scmp.lt.s32.totalorder %s9, 1
        %s144 = scalar_select %p143, %s9, 1
        %s145 = smul.addr %s144, 8
        %s146 = smul.addr %s145, 4
        %s147 = scalar_lea.vmem %s1, %s146
      $region24: #{multi_input_forward.5} parent=15 // pred_fallthru
        _
      // Predicated region
      $region25: #{multi_input_forward.5} parent=15 // pred_check
        %p148 = pneg %p81
      $region26: #{multi_input_forward.5} parent=15 // pred_check_branch
        %150 = sbr.rel (%p148) target = $region28
      $region27: #{multi_input_forward.5} parent=15 // pred_region
        %p151 = scmp.lt.s32.totalorder %s9, 1
        %s152 = scalar_select %p151, %s9, 1
        %s153 = smul.addr %s152, 4
        %s154 = smul.addr %s153, 8
        %s155 = scalar_lea.vmem %s2, %s154
      $region28: #{multi_input_forward.5} parent=15 // pred_fallthru
        _
    $region16: #{multi_input_forward.5} parent=5 // pred_fallthru
      _
    %p156 = scmp.le.s32.totalorder 1, %s9
    %p157 = scmp.lt.s32.totalorder %s9, 3
    %p158 = pnand %p156, %p157
    %p159 = pneg %p158
    // Predicated region
    $region29: #{multi_input_forward.5} parent=5 // pred_check
      _
    $region30: #{multi_input_forward.5} parent=5 // pred_check_branch
      %161 = sbr.rel (%p158) target = $region32
    $region31: #{multi_input_forward.5} parent=5 // pred_region
      %s162 = ssub.s32 %s9, 1
      %p163 = scmp.lt.s32.totalorder %s14, 1
      %s164 = scalar_select %p163, %s14, 1
      %s165 = smul.addr %s164, 72
      %s166 = smul.addr %s165, 4
      %s167 = scalar_lea.vmem %s0, %s166
      %p168 = pneg %p35
      %p169 = pneg %p32
      %p170 = scmp.lt.s32.totalorder %s14, 1
      %s171 = scalar_select %p170, %s14, 1
      %s172 = smul.addr %s171, 8
      %s173 = smul.addr %s172, 4
      %s174 = scalar_lea.vmem %s1, %s173
      %p175 = pneg %p61
      %p176 = pneg %p58
      %p177 = scmp.lt.s32.totalorder %s14, 1
      %s178 = scalar_select %p177, %s14, 1
      %s179 = smul.addr %s178, 4
      %s180 = smul.addr %s179, 8
      %s181 = scalar_lea.vmem %s2, %s180
      %p182 = pneg %p87
      %p183 = pneg %p84
      %p184 = pneg %p113
      %p185 = pneg %p110
      %p186 = scmp.lt.s32.totalorder %s14, 1
      %s187 = scalar_select %p186, %s14, 1
      %s188 = smul.addr %s187, 4
      %s189 = smul.addr %s188, 4
      %s190 = scalar_lea.vmem %s3, %s189
      %p191 = scmp.lt.s32.totalorder %s14, 1
      %s192 = scalar_select %p191, %s14, 1
      %s193 = smul.addr %s192, 72
      %s194 = smul.addr %s193, 4
      %s195 = scalar_lea.vmem %s0, %s194
      %p196 = scmp.lt.s32.totalorder %s14, 1
      %s197 = scalar_select %p196, %s14, 1
      %s198 = smul.addr %s197, 8
      %s199 = smul.addr %s198, 4
      %s200 = scalar_lea.vmem %s1, %s199
      %p201 = scmp.lt.s32.totalorder %s14, 1
      %s202 = scalar_select %p201, %s14, 1
      %s203 = smul.addr %s202, 4
      %s204 = smul.addr %s203, 8
      %s205 = scalar_lea.vmem %s2, %s204
      %p206 = scmp.lt.s32.totalorder %s14, 1
      %s207 = scalar_select %p206, %s14, 1
      %s208 = smul.addr %s207, 4
      %s209 = smul.addr %s208, 4
      %s210 = scalar_lea.vmem %s3, %s209
      %v212 = vld [vmem:[%s200] sm:$0xff]
      %v213 = vld [vmem:[%s200 + $0x8] sm:$0xff]
      %v214 = vld [vmem:[%s200 + $0x10] sm:$0xff]
      %v215 = vld [vmem:[%s200 + $0x18] sm:$0xff]
      %v216 = vld [vmem:[%s195] sm:$0xff]
      %v217 = vld [vmem:[%s195 + $0x8] sm:$0xff]
      %v218 = vld [vmem:[%s195 + $0x10] sm:$0xff]
      %v219 = vld [vmem:[%s195 + $0x18] sm:$0xff]
      %v220 = vld [vmem:[%s195 + $0x20] sm:$0xff]
      %v221 = vld [vmem:[%s195 + $0x28] sm:$0xff]
      %v222 = vld [vmem:[%s195 + $0x30] sm:$0xff]
      %v223 = vld [vmem:[%s195 + $0x38] sm:$0xff]
      %v224 = vld [vmem:[%s195 + $0x40] sm:$0xff]
      %v225 = vld [vmem:[%s195 + $0x48] sm:$0xff]
      %v226 = vld [vmem:[%s195 + $0x50] sm:$0xff]
      %v227 = vld [vmem:[%s195 + $0x58] sm:$0xff]
      %v228 = vld [vmem:[%s195 + $0x60] sm:$0xff]
      %v229 = vld [vmem:[%s195 + $0x68] sm:$0xff]
      %v230 = vld [vmem:[%s195 + $0x70] sm:$0xff]
      %v231 = vld [vmem:[%s195 + $0x78] sm:$0xff]
      %v232 = vld [vmem:[%s195 + $0x80] sm:$0xff]
      %v233 = vld [vmem:[%s195 + $0x88] sm:$0xff]
      %v234 = vld [vmem:[%s195 + $0x90] sm:$0xff]
      %v235 = vld [vmem:[%s195 + $0x98] sm:$0xff]
      %v236 = vld [vmem:[%s195 + $0xa0] sm:$0xff]
      %v237 = vld [vmem:[%s195 + $0xa8] sm:$0xff]
      %v238 = vld [vmem:[%s195 + $0xb0] sm:$0xff]
      %v239 = vld [vmem:[%s195 + $0xb8] sm:$0xff]
      %v240 = vld [vmem:[%s195 + $0xc0] sm:$0xff]
      %v241 = vld [vmem:[%s195 + $0xc8] sm:$0xff]
      %v242 = vld [vmem:[%s195 + $0xd0] sm:$0xff]
      %v243 = vld [vmem:[%s195 + $0xd8] sm:$0xff]
      %v244 = vld [vmem:[%s195 + $0xe0] sm:$0xff]
      %v245 = vld [vmem:[%s195 + $0xe8] sm:$0xff]
      %v246 = vld [vmem:[%s195 + $0xf0] sm:$0xff]
      %v247 = vld [vmem:[%s195 + $0xf8] sm:$0xff]
      %v248 = vld [vmem:[%s195 + $0x100] sm:$0xff]
      %v249 = vld [vmem:[%s195 + $0x108] sm:$0xff]
      %v250 = vld [vmem:[%s195 + $0x110] sm:$0xff]
      %v251 = vld [vmem:[%s195 + $0x118] sm:$0xff]
      %v256 = vunpack.c.l.b16 %v212
      %v257 = vunpack.c.h.b16 %v212
      %v258 = vunpack.c.l.b16 %v213
      %v259 = vunpack.c.h.b16 %v213
      %v260 = vunpack.c.l.b16 %v214
      %v261 = vunpack.c.h.b16 %v214
      %v262 = vunpack.c.l.b16 %v215
      %v263 = vunpack.c.h.b16 %v215
      %v264 = vpack.c.b16 %v258, %v256
      %v265 = vpack.c.b16 %v259, %v257
      %v266 = vpack.c.b16 %v262, %v260
      %v267 = vpack.c.b16 %v263, %v261
      %v306 = vunpack.c.l.b16 %v216
      %v307 = vunpack.c.h.b16 %v216
      %v308 = vunpack.c.l.b16 %v217
      %v309 = vunpack.c.h.b16 %v217
      %v310 = vunpack.c.l.b16 %v218
      %v311 = vunpack.c.h.b16 %v218
      %v312 = vunpack.c.l.b16 %v219
      %v313 = vunpack.c.h.b16 %v219
      %v314 = vunpack.c.l.b16 %v220
      %v315 = vunpack.c.h.b16 %v220
      %v316 = vunpack.c.l.b16 %v221
      %v317 = vunpack.c.h.b16 %v221
      %v318 = vunpack.c.l.b16 %v222
      %v319 = vunpack.c.h.b16 %v222
      %v320 = vunpack.c.l.b16 %v223
      %v321 = vunpack.c.h.b16 %v223
      %v322 = vunpack.c.l.b16 %v224
      %v323 = vunpack.c.h.b16 %v224
      %v324 = vunpack.c.l.b16 %v225
      %v325 = vunpack.c.h.b16 %v225
      %v326 = vunpack.c.l.b16 %v226
      %v327 = vunpack.c.h.b16 %v226
      %v328 = vunpack.c.l.b16 %v227
      %v329 = vunpack.c.h.b16 %v227
      %v330 = vunpack.c.l.b16 %v228
      %v331 = vunpack.c.h.b16 %v228
      %v332 = vunpack.c.l.b16 %v229
      %v333 = vunpack.c.h.b16 %v229
      %v334 = vunpack.c.l.b16 %v230
      %v335 = vunpack.c.h.b16 %v230
      %v336 = vunpack.c.l.b16 %v231
      %v337 = vunpack.c.h.b16 %v231
      %v338 = vunpack.c.l.b16 %v232
      %v339 = vunpack.c.h.b16 %v232
      %v340 = vunpack.c.l.b16 %v233
      %v341 = vunpack.c.h.b16 %v233
      %v342 = vunpack.c.l.b16 %v234
      %v343 = vunpack.c.h.b16 %v234
      %v344 = vunpack.c.l.b16 %v235
      %v345 = vunpack.c.h.b16 %v235
      %v346 = vunpack.c.l.b16 %v236
      %v347 = vunpack.c.h.b16 %v236
      %v348 = vunpack.c.l.b16 %v237
      %v349 = vunpack.c.h.b16 %v237
      %v350 = vunpack.c.l.b16 %v238
      %v351 = vunpack.c.h.b16 %v238
      %v352 = vunpack.c.l.b16 %v239
      %v353 = vunpack.c.h.b16 %v239
      %v354 = vunpack.c.l.b16 %v240
      %v355 = vunpack.c.h.b16 %v240
      %v356 = vunpack.c.l.b16 %v241
      %v357 = vunpack.c.h.b16 %v241
      %v358 = vunpack.c.l.b16 %v242
      %v359 = vunpack.c.h.b16 %v242
      %v360 = vunpack.c.l.b16 %v243
      %v361 = vunpack.c.h.b16 %v243
      %v362 = vunpack.c.l.b16 %v244
      %v363 = vunpack.c.h.b16 %v244
      %v364 = vunpack.c.l.b16 %v245
      %v365 = vunpack.c.h.b16 %v245
      %v366 = vunpack.c.l.b16 %v246
      %v367 = vunpack.c.h.b16 %v246
      %v368 = vunpack.c.l.b16 %v247
      %v369 = vunpack.c.h.b16 %v247
      %v370 = vunpack.c.l.b16 %v248
      %v371 = vunpack.c.h.b16 %v248
      %v372 = vunpack.c.l.b16 %v249
      %v373 = vunpack.c.h.b16 %v249
      %v374 = vunpack.c.l.b16 %v250
      %v375 = vunpack.c.h.b16 %v250
      %v376 = vunpack.c.l.b16 %v251
      %v377 = vunpack.c.h.b16 %v251
      %v378 = vpack.c.b16 %v310, %v306
      %v379 = vpack.c.b16 %v311, %v307
      %v380 = vpack.c.b16 %v312, %v308
      %v381 = vpack.c.b16 %v313, %v309
      %v382 = vpack.c.b16 %v318, %v314
      %v383 = vpack.c.b16 %v319, %v315
      %v384 = vpack.c.b16 %v320, %v316
      %v385 = vpack.c.b16 %v321, %v317
      %v386 = vpack.c.b16 %v326, %v322
      %v387 = vpack.c.b16 %v327, %v323
      %v388 = vpack.c.b16 %v328, %v324
      %v389 = vpack.c.b16 %v329, %v325
      %v390 = vpack.c.b16 %v334, %v330
      %v391 = vpack.c.b16 %v335, %v331
      %v392 = vpack.c.b16 %v336, %v332
      %v393 = vpack.c.b16 %v337, %v333
      %v394 = vpack.c.b16 %v342, %v338
      %v395 = vpack.c.b16 %v343, %v339
      %v396 = vpack.c.b16 %v344, %v340
      %v397 = vpack.c.b16 %v345, %v341
      %v398 = vpack.c.b16 %v350, %v346
      %v399 = vpack.c.b16 %v351, %v347
      %v400 = vpack.c.b16 %v352, %v348
      %v401 = vpack.c.b16 %v353, %v349
      %v402 = vpack.c.b16 %v358, %v354
      %v403 = vpack.c.b16 %v359, %v355
      %v404 = vpack.c.b16 %v360, %v356
      %v405 = vpack.c.b16 %v361, %v357
      %v406 = vpack.c.b16 %v366, %v362
      %v407 = vpack.c.b16 %v367, %v363
      %v408 = vpack.c.b16 %v368, %v364
      %v409 = vpack.c.b16 %v369, %v365
      %v410 = vpack.c.b16 %v374, %v370
      %v411 = vpack.c.b16 %v375, %v371
      %v412 = vpack.c.b16 %v376, %v372
      %v413 = vpack.c.b16 %v377, %v373
      %vm450 = vcmask 130048
      %v452 = vsel %vm450, %v265, 0
      %v455 = vsel %vm450, %v267, 0
      %457 = vmatprep.subr.bf16.mxu0 %v379
      %458 = vmatpush1.bf16.msra.mxu0 %v378
      %459 = vmatprep.subr.bf16.mxu0 %v383
      %460 = vmatpush1.bf16.msra.mxu0 %v382
      %461 = vmatprep.subr.bf16.mxu0 %v387
      %462 = vmatpush1.bf16.msra.mxu0 %v386
      %463 = vmatprep.subr.bf16.mxu0 %v391
      %464 = vmatpush1.bf16.msra.mxu0 %v390
      %465 = vmatprep.subr.bf16.mxu0 %v395
      %466 = vmatpush1.bf16.msra.mxu0 %v394
      %467 = vmatprep.subr.bf16.mxu0 %v399
      %468 = vmatpush1.bf16.msra.mxu0 %v398
      %469 = vmatprep.subr.bf16.mxu0 %v403
      %470 = vmatpush1.bf16.msra.mxu0 %v402
      %471 = vmatprep.subr.bf16.mxu0 %v407
      %472 = vmatpush1.bf16.msra.mxu0 %v406
      %473 = vmatprep.subr.bf16.mxu0 %v411
      %474 = vmatpush1.bf16.msra.mxu0 %v410
      %475 = vmatprep.subr.bf16.mxu0 0
      %476 = vmatpush1.bf16.msra.mxu0 0
      %477 = vmatprep.subr.bf16.mxu0 0
      %478 = vmatpush1.bf16.msra.mxu0 0
      %479 = vmatprep.subr.bf16.mxu0 0
      %480 = vmatpush1.bf16.msra.mxu0 0
      %481 = vmatprep.subr.bf16.mxu0 0
      %482 = vmatpush1.bf16.msra.mxu0 0
      %483 = vmatprep.subr.bf16.mxu0 0
      %484 = vmatpush1.bf16.msra.mxu0 0
      %485 = vmatprep.subr.bf16.mxu0 0
      %486 = vmatpush1.bf16.msra.mxu0 0
      %487 = vmatprep.subr.bf16.mxu0 0
      %488 = vmatpush1.bf16.msra.mxu0 0
      %489 = vmatprep.mubr.bf16.mxu0 %v452
      %490 = vmatmul.mubr.bf16.gmra.mrb[0].mxu0 %v264
      %v491 = vpop.f32.mrb[0].mxu0
      %v492 = vadd.f32 0.0, %v491
      %v493 = vpop.f32.mrb[0].mxu0
      %v494 = vadd.f32 0.0, %v493
      %v495 = vpop.f32.mrb[0].mxu0
      %v496 = vadd.f32 0.0, %v495
      %v497 = vpop.f32.mrb[0].mxu0
      %v498 = vadd.f32 0.0, %v497
      %499 = vmatprep.mubr.bf16.mxu0 %v455
      %500 = vmatmul.mubr.bf16.gmra.mrb[0].mxu0 %v266
      %v501 = vpop.f32.mrb[0].mxu0
      %v502 = vadd.f32 0.0, %v501
      %v503 = vpop.f32.mrb[0].mxu0
      %v504 = vadd.f32 0.0, %v503
      %v505 = vpop.f32.mrb[0].mxu0
      %v506 = vadd.f32 0.0, %v505
      %v507 = vpop.f32.mrb[0].mxu0
      %v508 = vadd.f32 0.0, %v507
      %509 = vdwg.mxu0
      %510 = vmatprep.subr.bf16.mxu0 %v381
      %511 = vmatpush1.bf16.msra.mxu0 %v380
      %512 = vmatprep.subr.bf16.mxu0 %v385
      %513 = vmatpush1.bf16.msra.mxu0 %v384
      %514 = vmatprep.subr.bf16.mxu0 %v389
      %515 = vmatpush1.bf16.msra.mxu0 %v388
      %516 = vmatprep.subr.bf16.mxu0 %v393
      %517 = vmatpush1.bf16.msra.mxu0 %v392
      %518 = vmatprep.subr.bf16.mxu0 %v397
      %519 = vmatpush1.bf16.msra.mxu0 %v396
      %520 = vmatprep.subr.bf16.mxu0 %v401
      %521 = vmatpush1.bf16.msra.mxu0 %v400
      %522 = vmatprep.subr.bf16.mxu0 %v405
      %523 = vmatpush1.bf16.msra.mxu0 %v404
      %524 = vmatprep.subr.bf16.mxu0 %v409
      %525 = vmatpush1.bf16.msra.mxu0 %v408
      %526 = vmatprep.subr.bf16.mxu0 %v413
      %527 = vmatpush1.bf16.msra.mxu0 %v412
      %528 = vmatprep.subr.bf16.mxu0 0
      %529 = vmatpush1.bf16.msra.mxu0 0
      %530 = vmatprep.subr.bf16.mxu0 0
      %531 = vmatpush1.bf16.msra.mxu0 0
      %532 = vmatprep.subr.bf16.mxu0 0
      %533 = vmatpush1.bf16.msra.mxu0 0
      %534 = vmatprep.subr.bf16.mxu0 0
      %535 = vmatpush1.bf16.msra.mxu0 0
      %536 = vmatprep.subr.bf16.mxu0 0
      %537 = vmatpush1.bf16.msra.mxu0 0
      %538 = vmatprep.subr.bf16.mxu0 0
      %539 = vmatpush1.bf16.msra.mxu0 0
      %540 = vmatprep.subr.bf16.mxu0 0
      %541 = vmatpush1.bf16.msra.mxu0 0
      %542 = vmatprep.mubr.bf16.mxu0 %v452
      %543 = vmatmul.mubr.bf16.gmra.mrb[0].mxu0 %v264
      %v544 = vpop.f32.mrb[0].mxu0
      %v545 = vadd.f32 0.0, %v544
      %v546 = vpop.f32.mrb[0].mxu0
      %v547 = vadd.f32 0.0, %v546
      %v548 = vpop.f32.mrb[0].mxu0
      %v549 = vadd.f32 0.0, %v548
      %v550 = vpop.f32.mrb[0].mxu0
      %v551 = vadd.f32 0.0, %v550
      %552 = vmatprep.mubr.bf16.mxu0 %v455
      %553 = vmatmul.mubr.bf16.gmra.mrb[0].mxu0 %v266
      %v554 = vpop.f32.mrb[0].mxu0
      %v555 = vadd.f32 0.0, %v554
      %v556 = vpop.f32.mrb[0].mxu0
      %v557 = vadd.f32 0.0, %v556
      %v558 = vpop.f32.mrb[0].mxu0
      %v559 = vadd.f32 0.0, %v558
      %v560 = vpop.f32.mrb[0].mxu0
      %v561 = vadd.f32 0.0, %v560
      %562 = vdwg.mxu0
      %v563 = vmax.f32 %v492, %v494
      %v564 = vmax.f32 %v496, %v498
      %v565 = vmax.f32 %v502, %v504
      %v566 = vmax.f32 %v506, %v508
      %v567 = vmax.f32 %v563, %v545
      %v568 = vmax.f32 %v564, %v549
      %v569 = vmax.f32 %v565, %v555
      %v570 = vmax.f32 %v566, %v559
      %v571 = vmax.f32 %v567, %v547
      %v572 = vmax.f32 %v568, %v551
      %v573 = vmax.f32 %v569, %v557
      %v574 = vmax.f32 %v570, %v561
      %v575 = vld [vmem:[%s205] sm:$0xff]
      %v576 = vld [vmem:[%s205 + $0x8] sm:$0xff]
      %v577 = vld [vmem:[%s205 + $0x10] sm:$0xff]
      %v578 = vld [vmem:[%s205 + $0x18] sm:$0xff]
      %580 = vset.pattern.permute.xlu0 0
      %581 = vperm.xlu0 %580, %v575
      %v582 = vpop.permute.xlu0 %581
      %585 = vset.pattern.permute.xlu0 0
      %586 = vperm.xlu0 %585, %v576
      %v587 = vpop.permute.xlu0 %586
      %590 = vset.pattern.permute.xlu0 0
      %591 = vperm.xlu0 %590, %v577
      %v592 = vpop.permute.xlu0 %591
      %595 = vset.pattern.permute.xlu0 0
      %596 = vperm.xlu0 %595, %v578
      %v597 = vpop.permute.xlu0 %596
      %v599 = vadd.f32 %v571, %v582
      %v600 = vadd.f32 %v572, %v587
      %v601 = vadd.f32 %v573, %v592
      %v602 = vadd.f32 %v574, %v597
      %v603 = vmax.f32 %v599, 0.0
      %v604 = vmax.f32 %v600, 0.0
      %v605 = vmax.f32 %v601, 0.0
      %v606 = vmax.f32 %v602, 0.0
      %v607 = vpack.c.bf16 %v604, %v603
      %v608 = vpack.c.bf16 %v606, %v605
      %v611 = vunpack.c.l.b16 %v607
      %v612 = vunpack.c.h.b16 %v607
      %v613 = vunpack.c.l.b16 %v608
      %v614 = vunpack.c.h.b16 %v608
      %v615 = vpack.c.b16 %v611, %v611
      %v616 = vpack.c.b16 %v612, %v612
      %v617 = vpack.c.b16 %v613, %v613
      %v618 = vpack.c.b16 %v614, %v614
      %623 = vst [vmem:[%s210] sm:$0xf] %v615
      %624 = vst [vmem:[%s210 + $0x4] sm:$0xf] %v616
      %625 = vst [vmem:[%s210 + $0x8] sm:$0xf] %v617
      %626 = vst [vmem:[%s210 + $0xc] sm:$0xf] %v618
      %p627 = scmp.lt.s32.totalorder %s14, 1
      %s628 = scalar_select %p627, %s14, 1
      %s629 = smul.addr %s628, 4
      %s630 = smul.addr %s629, 4
      %s631 = scalar_lea.vmem %s3, %s630
      // Predicated region
      $region33: #{multi_input_forward.5} parent=31 // pred_check
        %p632 = pneg %p110
      $region34: #{multi_input_forward.5} parent=31 // pred_check_branch
        %634 = sbr.rel (%p632) target = $region36
      $region35: #{multi_input_forward.5} parent=31 // pred_region
        _
      $region36: #{multi_input_forward.5} parent=31 // pred_fallthru
        _
    $region32: #{multi_input_forward.5} parent=5 // pred_fallthru
      _
    %p635 = scmp.le.s32.totalorder 2, %s9
    // Predicated region
    $region37: #{multi_input_forward.5} parent=5 // pred_check
      %p636 = pneg %p635
    $region38: #{multi_input_forward.5} parent=5 // pred_check_branch
      %638 = sbr.rel (%p636) target = $region40
    $region39: #{multi_input_forward.5} parent=5 // pred_region
      %s639 = ssub.s32 %s9, 2
      // Predicated region
      $region41: #{multi_input_forward.5} parent=39 // pred_check
        %p640 = pneg %p116
      $region42: #{multi_input_forward.5} parent=39 // pred_check_branch
        %642 = sbr.rel (%p640) target = $region44
      $region43: #{multi_input_forward.5} parent=39 // pred_region
        %p643 = scmp.lt.s32.totalorder %s15, 1
        %s644 = scalar_select %p643, %s15, 1
        %s645 = smul.addr %s644, 4
        %s646 = smul.addr %s645, 4
        %s647 = scalar_lea.vmem %s3, %s646
      $region44: #{multi_input_forward.5} parent=39 // pred_fallthru
        _
    $region40: #{multi_input_forward.5} parent=5 // pred_fallthru
      _
  $region6: #{multi_input_forward.5} parent=0 // loop_footer
    %s13 = sadd.s32 1, %s9
  $region7: #{multi_input_forward.5} parent=0 // loop_footer_branch
    %8 = sbr.rel target = $region3
  $region8: #{multi_input_forward.5} parent=0 // loop_exit
    _

// kernel: multi_input_forward.6
$region0: #{multi_input_forward.6}
  #allocation0 [shape = 'u32[]', space=smem, size = 0x4, offset = 0x4, fixed_abs, tag = 'smem constant byte address 0x4 - core index']
  #allocation1 [shape = 'u32[144,128]{1,0:T(1,128)}', space=vmem, size = 0x12000, scoped, tag = 'internal scratch']
  %s0 = inlined_call_operand.vmem [shape: bf16[1,288,128], index: 0, kind: input, shape index: {}]
  %s1 = inlined_call_operand.vmem [shape: bf16[1,64,288], index: 1, kind: input, shape index: {}]
  %s2 = inlined_call_operand.vmem [shape: f32[1,64,1], index: 2, kind: input, shape index: {}]
  %s3 = inlined_call_operand.vmem [shape: bf16[1,64,8], index: 3, kind: output, shape index: {}]
  %s4 = sld [smem:[#allocation0]]
  $region22: #{multi_input_forward.6} parent=0
    _
  %s6 = ssub.s32 1, %s4
  %s7 = scalar_select 0, %s6, %s4
  // Predicated region
  $region2: #{multi_input_forward.6} parent=0 // pred_check
    _
  $region3: #{multi_input_forward.6} parent=0 // pred_check_branch
    %9 = sbr.rel (0) target = $region5
  $region4: #{multi_input_forward.6} parent=0 // pred_region
    _
  $region5: #{multi_input_forward.6} parent=0 // pred_fallthru
    _
  // Predicated region
  $region6: #{multi_input_forward.6} parent=0 // pred_check
    _
  $region7: #{multi_input_forward.6} parent=0 // pred_check_branch
    %11 = sbr.rel (0) target = $region9
  $region8: #{multi_input_forward.6} parent=0 // pred_region
    _
  $region9: #{multi_input_forward.6} parent=0 // pred_fallthru
    _
  // Predicated region
  $region10: #{multi_input_forward.6} parent=0 // pred_check
    _
  $region11: #{multi_input_forward.6} parent=0 // pred_check_branch
    %13 = sbr.rel (0) target = $region13
  $region12: #{multi_input_forward.6} parent=0 // pred_region
    _
  $region13: #{multi_input_forward.6} parent=0 // pred_fallthru
    _
  %v15 = vld [vmem:[%s1] sm:$0xff]
  %v16 = vld [vmem:[%s1 + $0x8] sm:$0xf]
  %v17 = vld [vmem:[%s1 + $0xc] sm:$0xff]
  %v18 = vld [vmem:[%s1 + $0x14] sm:$0xf]
  %v19 = vld [vmem:[%s1 + $0x18] sm:$0xff]
  %v20 = vld [vmem:[%s1 + $0x20] sm:$0xf]
  %v21 = vld [vmem:[%s1 + $0x24] sm:$0xff]
  %v22 = vld [vmem:[%s1 + $0x2c] sm:$0xf]
  %v23 = vld [vmem:[%s1 + $0x30] sm:$0xff]
  %v24 = vld [vmem:[%s1 + $0x38] sm:$0xf]
  %v25 = vld [vmem:[%s1 + $0x3c] sm:$0xff]
  %v26 = vld [vmem:[%s1 + $0x44] sm:$0xf]
  %v27 = vld [vmem:[%s1 + $0x48] sm:$0xff]
  %v28 = vld [vmem:[%s1 + $0x50] sm:$0xf]
  %v29 = vld [vmem:[%s1 + $0x54] sm:$0xff]
  %v30 = vld [vmem:[%s1 + $0x5c] sm:$0xf]
  %v31 = vld [vmem:[%s0] sm:$0xf]
  %v32 = vld [vmem:[%s0 + $0x4] sm:$0xf]
  %v33 = vld [vmem:[%s0 + $0x8] sm:$0xf]
  %v34 = vld [vmem:[%s0 + $0xc] sm:$0xf]
  %v35 = vld [vmem:[%s0 + $0x10] sm:$0xf]
  %v36 = vld [vmem:[%s0 + $0x14] sm:$0xf]
  %v37 = vld [vmem:[%s0 + $0x18] sm:$0xf]
  %v38 = vld [vmem:[%s0 + $0x1c] sm:$0xf]
  %v39 = vld [vmem:[%s0 + $0x20] sm:$0xf]
  %v40 = vld [vmem:[%s0 + $0x24] sm:$0xf]
  %v41 = vld [vmem:[%s0 + $0x28] sm:$0xf]
  %v42 = vld [vmem:[%s0 + $0x2c] sm:$0xf]
  %v43 = vld [vmem:[%s0 + $0x30] sm:$0xf]
  %v44 = vld [vmem:[%s0 + $0x34] sm:$0xf]
  %v45 = vld [vmem:[%s0 + $0x38] sm:$0xf]
  %v46 = vld [vmem:[%s0 + $0x3c] sm:$0xf]
  %v47 = vld [vmem:[%s0 + $0x40] sm:$0xf]
  %v48 = vld [vmem:[%s0 + $0x44] sm:$0xf]
  %v49 = vld [vmem:[%s0 + $0x48] sm:$0xf]
  %v50 = vld [vmem:[%s0 + $0x4c] sm:$0xf]
  %v51 = vld [vmem:[%s0 + $0x50] sm:$0xf]
  %v52 = vld [vmem:[%s0 + $0x54] sm:$0xf]
  %v53 = vld [vmem:[%s0 + $0x58] sm:$0xf]
  %v54 = vld [vmem:[%s0 + $0x5c] sm:$0xf]
  %v55 = vld [vmem:[%s0 + $0x60] sm:$0xf]
  %v56 = vld [vmem:[%s0 + $0x64] sm:$0xf]
  %v57 = vld [vmem:[%s0 + $0x68] sm:$0xf]
  %v58 = vld [vmem:[%s0 + $0x6c] sm:$0xf]
  %v59 = vld [vmem:[%s0 + $0x70] sm:$0xf]
  %v60 = vld [vmem:[%s0 + $0x74] sm:$0xf]
  %v61 = vld [vmem:[%s0 + $0x78] sm:$0xf]
  %v62 = vld [vmem:[%s0 + $0x7c] sm:$0xf]
  %v63 = vld [vmem:[%s0 + $0x80] sm:$0xf]
  %v64 = vld [vmem:[%s0 + $0x84] sm:$0xf]
  %v65 = vld [vmem:[%s0 + $0x88] sm:$0xf]
  %v66 = vld [vmem:[%s0 + $0x8c] sm:$0xf]
  %v83 = vunpack.c.l.b16 %v15
  %v84 = vunpack.c.h.b16 %v15
  %v85 = vunpack.c.l.b16 %v16
  %v86 = vunpack.c.l.b16 %v17
  %v87 = vunpack.c.h.b16 %v17
  %v88 = vunpack.c.l.b16 %v18
  %v89 = vunpack.c.l.b16 %v19
  %v90 = vunpack.c.h.b16 %v19
  %v91 = vunpack.c.l.b16 %v20
  %v92 = vunpack.c.l.b16 %v21
  %v93 = vunpack.c.h.b16 %v21
  %v94 = vunpack.c.l.b16 %v22
  %v95 = vunpack.c.l.b16 %v23
  %v96 = vunpack.c.h.b16 %v23
  %v97 = vunpack.c.l.b16 %v24
  %v98 = vunpack.c.l.b16 %v25
  %v99 = vunpack.c.h.b16 %v25
  %v100 = vunpack.c.l.b16 %v26
  %v101 = vunpack.c.l.b16 %v27
  %v102 = vunpack.c.h.b16 %v27
  %v103 = vunpack.c.l.b16 %v28
  %v104 = vunpack.c.l.b16 %v29
  %v105 = vunpack.c.h.b16 %v29
  %v106 = vunpack.c.l.b16 %v30
  %v107 = vpack.c.b16 %v86, %v83
  %v108 = vpack.c.b16 %v87, %v84
  %v109 = vpack.c.b16 %v88, %v85
  %v110 = vpack.c.b16 %v92, %v89
  %v111 = vpack.c.b16 %v93, %v90
  %v112 = vpack.c.b16 %v94, %v91
  %v113 = vpack.c.b16 %v98, %v95
  %v114 = vpack.c.b16 %v99, %v96
  %v115 = vpack.c.b16 %v100, %v97
  %v116 = vpack.c.b16 %v104, %v101
  %v117 = vpack.c.b16 %v105, %v102
  %v118 = vpack.c.b16 %v106, %v103
  %v163 = vunpack.c.l.b16 %v31
  %v164 = vunpack.c.l.b16 %v32
  %v165 = vunpack.c.l.b16 %v33
  %v166 = vunpack.c.l.b16 %v34
  %v167 = vunpack.c.l.b16 %v35
  %v168 = vunpack.c.l.b16 %v36
  %v169 = vunpack.c.l.b16 %v37
  %v170 = vunpack.c.l.b16 %v38
  %v171 = vunpack.c.l.b16 %v39
  %v172 = vunpack.c.l.b16 %v40
  %v173 = vunpack.c.l.b16 %v41
  %v174 = vunpack.c.l.b16 %v42
  %v175 = vunpack.c.l.b16 %v43
  %v176 = vunpack.c.l.b16 %v44
  %v177 = vunpack.c.l.b16 %v45
  %v178 = vunpack.c.l.b16 %v46
  %v179 = vunpack.c.l.b16 %v47
  %v180 = vunpack.c.l.b16 %v48
  %v181 = vunpack.c.l.b16 %v49
  %v182 = vunpack.c.l.b16 %v50
  %v183 = vunpack.c.l.b16 %v51
  %v184 = vunpack.c.l.b16 %v52
  %v185 = vunpack.c.l.b16 %v53
  %v186 = vunpack.c.l.b16 %v54
  %v187 = vunpack.c.l.b16 %v55
  %v188 = vunpack.c.l.b16 %v56
  %v189 = vunpack.c.l.b16 %v57
  %v190 = vunpack.c.l.b16 %v58
  %v191 = vunpack.c.l.b16 %v59
  %v192 = vunpack.c.l.b16 %v60
  %v193 = vunpack.c.l.b16 %v61
  %v194 = vunpack.c.l.b16 %v62
  %v195 = vunpack.c.l.b16 %v63
  %v196 = vunpack.c.l.b16 %v64
  %v197 = vunpack.c.l.b16 %v65
  %v198 = vunpack.c.l.b16 %v66
  %v199 = vpack.c.b16 %v164, %v163
  %v200 = vpack.c.b16 %v166, %v165
  %v201 = vpack.c.b16 %v168, %v167
  %v202 = vpack.c.b16 %v170, %v169
  %v203 = vpack.c.b16 %v172, %v171
  %v204 = vpack.c.b16 %v174, %v173
  %v205 = vpack.c.b16 %v176, %v175
  %v206 = vpack.c.b16 %v178, %v177
  %v207 = vpack.c.b16 %v180, %v179
  %v208 = vpack.c.b16 %v182, %v181
  %v209 = vpack.c.b16 %v184, %v183
  %v210 = vpack.c.b16 %v186, %v185
  %v211 = vpack.c.b16 %v188, %v187
  %v212 = vpack.c.b16 %v190, %v189
  %v213 = vpack.c.b16 %v192, %v191
  %v214 = vpack.c.b16 %v194, %v193
  %v215 = vpack.c.b16 %v196, %v195
  %v216 = vpack.c.b16 %v198, %v197
  %vm235 = vcmask 261120
  %v237 = vsel %vm235, %v109, 0
  %v240 = vsel %vm235, %v112, 0
  %v243 = vsel %vm235, %v115, 0
  %v246 = vsel %vm235, %v118, 0
  %248 = vmatprep.subr.bf16.mxu0 0
  %249 = vmatpush1.bf16.msra.mxu0 %v199
  %250 = vmatprep.subr.bf16.mxu0 0
  %251 = vmatpush1.bf16.msra.mxu0 %v200
  %252 = vmatprep.subr.bf16.mxu0 0
  %253 = vmatpush1.bf16.msra.mxu0 %v201
  %254 = vmatprep.subr.bf16.mxu0 0
  %255 = vmatpush1.bf16.msra.mxu0 %v202
  %256 = vmatprep.subr.bf16.mxu0 0
  %257 = vmatpush1.bf16.msra.mxu0 %v203
  %258 = vmatprep.subr.bf16.mxu0 0
  %259 = vmatpush1.bf16.msra.mxu0 %v204
  %260 = vmatprep.subr.bf16.mxu0 0
  %261 = vmatpush1.bf16.msra.mxu0 %v205
  %262 = vmatprep.subr.bf16.mxu0 0
  %263 = vmatpush1.bf16.msra.mxu0 %v206
  %264 = vmatprep.subr.bf16.mxu0 0
  %265 = vmatpush1.bf16.msra.mxu0 %v207
  %266 = vmatprep.subr.bf16.mxu0 0
  %267 = vmatpush1.bf16.msra.mxu0 %v208
  %268 = vmatprep.subr.bf16.mxu0 0
  %269 = vmatpush1.bf16.msra.mxu0 %v209
  %270 = vmatprep.subr.bf16.mxu0 0
  %271 = vmatpush1.bf16.msra.mxu0 %v210
  %272 = vmatprep.subr.bf16.mxu0 0
  %273 = vmatpush1.bf16.msra.mxu0 %v211
  %274 = vmatprep.subr.bf16.mxu0 0
  %275 = vmatpush1.bf16.msra.mxu0 %v212
  %276 = vmatprep.subr.bf16.mxu0 0
  %277 = vmatpush1.bf16.msra.mxu0 %v213
  %278 = vmatprep.subr.bf16.mxu0 0
  %279 = vmatpush1.bf16.msra.mxu0 %v214
  %280 = vmatprep.mubr.bf16.mxu0 %v108
  %281 = vmatmul.mubr.bf16.gmra.mrb[0].mxu0 %v107
  %v282 = vpop.f32.mrb[0].mxu0
  %v283 = vadd.f32 0.0, %v282
  %v284 = vpop.f32.mrb[0].mxu0
  %v285 = vpop.f32.mrb[0].mxu0
  %v286 = vadd.f32 0.0, %v285
  %v287 = vpop.f32.mrb[0].mxu0
  %288 = vmatprep.mubr.bf16.mxu0 %v111
  %289 = vmatmul.mubr.bf16.gmra.mrb[0].mxu0 %v110
  %v290 = vpop.f32.mrb[0].mxu0
  %v291 = vadd.f32 0.0, %v290
  %v292 = vpop.f32.mrb[0].mxu0
  %v293 = vpop.f32.mrb[0].mxu0
  %v294 = vadd.f32 0.0, %v293
  %v295 = vpop.f32.mrb[0].mxu0
  %296 = vmatprep.mubr.bf16.mxu0 %v114
  %297 = vmatmul.mubr.bf16.gmra.mrb[0].mxu0 %v113
  %v298 = vpop.f32.mrb[0].mxu0
  %v299 = vadd.f32 0.0, %v298
  %v300 = vpop.f32.mrb[0].mxu0
  %v301 = vpop.f32.mrb[0].mxu0
  %v302 = vadd.f32 0.0, %v301
  %v303 = vpop.f32.mrb[0].mxu0
  %304 = vmatprep.mubr.bf16.mxu0 %v117
  %305 = vmatmul.mubr.bf16.gmra.mrb[0].mxu0 %v116
  %v306 = vpop.f32.mrb[0].mxu0
  %v307 = vadd.f32 0.0, %v306
  %v308 = vpop.f32.mrb[0].mxu0
  %v309 = vpop.f32.mrb[0].mxu0
  %v310 = vadd.f32 0.0, %v309
  %v311 = vpop.f32.mrb[0].mxu0
  %312 = vdwg.mxu0
  %313 = vmatprep.subr.bf16.mxu0 0
  %314 = vmatpush1.bf16.msra.mxu0 %v215
  %315 = vmatprep.subr.bf16.mxu0 0
  %316 = vmatpush1.bf16.msra.mxu0 %v216
  %317 = vmatprep.subr.bf16.mxu0 0
  %318 = vmatpush1.bf16.msra.mxu0 0
  %319 = vmatprep.subr.bf16.mxu0 0
  %320 = vmatpush1.bf16.msra.mxu0 0
  %321 = vmatprep.subr.bf16.mxu0 0
  %322 = vmatpush1.bf16.msra.mxu0 0
  %323 = vmatprep.subr.bf16.mxu0 0
  %324 = vmatpush1.bf16.msra.mxu0 0
  %325 = vmatprep.subr.bf16.mxu0 0
  %326 = vmatpush1.bf16.msra.mxu0 0
  %327 = vmatprep.subr.bf16.mxu0 0
  %328 = vmatpush1.bf16.msra.mxu0 0
  %329 = vmatprep.subr.bf16.mxu0 0
  %330 = vmatpush1.bf16.msra.mxu0 0
  %331 = vmatprep.subr.bf16.mxu0 0
  %332 = vmatpush1.bf16.msra.mxu0 0
  %333 = vmatprep.subr.bf16.mxu0 0
  %334 = vmatpush1.bf16.msra.mxu0 0
  %335 = vmatprep.subr.bf16.mxu0 0
  %336 = vmatpush1.bf16.msra.mxu0 0
  %337 = vmatprep.subr.bf16.mxu0 0
  %338 = vmatpush1.bf16.msra.mxu0 0
  %339 = vmatprep.subr.bf16.mxu0 0
  %340 = vmatpush1.bf16.msra.mxu0 0
  %341 = vmatprep.subr.bf16.mxu0 0
  %342 = vmatpush1.bf16.msra.mxu0 0
  %343 = vmatprep.subr.bf16.mxu0 0
  %344 = vmatpush1.bf16.msra.mxu0 0
  %345 = vmatprep.mubr.bf16.mxu0 0
  %346 = vmatmul.mubr.bf16.gmra.mrb[0].mxu0 %v237
  %v347 = vpop.f32.mrb[0].mxu0
  %v348 = vadd.f32 %v283, %v347
  %v349 = vpop.f32.mrb[0].mxu0
  %v350 = vpop.f32.mrb[0].mxu0
  %v351 = vadd.f32 %v286, %v350
  %v352 = vpop.f32.mrb[0].mxu0
  %353 = vmatprep.mubr.bf16.mxu0 0
  %354 = vmatmul.mubr.bf16.gmra.mrb[0].mxu0 %v240
  %v355 = vpop.f32.mrb[0].mxu0
  %v356 = vadd.f32 %v291, %v355
  %v357 = vpop.f32.mrb[0].mxu0
  %v358 = vpop.f32.mrb[0].mxu0
  %v359 = vadd.f32 %v294, %v358
  %v360 = vpop.f32.mrb[0].mxu0
  %361 = vmatprep.mubr.bf16.mxu0 0
  %362 = vmatmul.mubr.bf16.gmra.mrb[0].mxu0 %v243
  %v363 = vpop.f32.mrb[0].mxu0
  %v364 = vadd.f32 %v299, %v363
  %v365 = vpop.f32.mrb[0].mxu0
  %v366 = vpop.f32.mrb[0].mxu0
  %v367 = vadd.f32 %v302, %v366
  %v368 = vpop.f32.mrb[0].mxu0
  %369 = vmatprep.mubr.bf16.mxu0 0
  %370 = vmatmul.mubr.bf16.gmra.mrb[0].mxu0 %v246
  %v371 = vpop.f32.mrb[0].mxu0
  %v372 = vadd.f32 %v307, %v371
  %v373 = vpop.f32.mrb[0].mxu0
  %v374 = vpop.f32.mrb[0].mxu0
  %v375 = vadd.f32 %v310, %v374
  %v376 = vpop.f32.mrb[0].mxu0
  %377 = vdwg.mxu0
  %386 = vrot.lane.b32.xlu0 %v348, 120
  %v387 = vpop.permute.xlu0 %386
  %388 = vrot.lane.b32.xlu0 %v351, 120
  %v389 = vpop.permute.xlu0 %388
  %390 = vrot.lane.b32.xlu0 %v356, 120
  %v391 = vpop.permute.xlu0 %390
  %392 = vrot.lane.b32.xlu0 %v359, 120
  %v393 = vpop.permute.xlu0 %392
  %394 = vrot.lane.b32.xlu0 %v364, 120
  %v395 = vpop.permute.xlu0 %394
  %396 = vrot.lane.b32.xlu0 %v367, 120
  %v397 = vpop.permute.xlu0 %396
  %398 = vrot.lane.b32.xlu0 %v372, 120
  %v399 = vpop.permute.xlu0 %398
  %400 = vrot.lane.b32.xlu0 %v375, 120
  %v401 = vpop.permute.xlu0 %400
  %v410 = vmax.f32 %v348, %v387
  %v411 = vmax.f32 %v351, %v389
  %v412 = vmax.f32 %v356, %v391
  %v413 = vmax.f32 %v359, %v393
  %v414 = vmax.f32 %v364, %v395
  %v415 = vmax.f32 %v367, %v397
  %v416 = vmax.f32 %v372, %v399
  %v417 = vmax.f32 %v375, %v401
  %418 = vrot.lane.b32.xlu0 %v348, 112
  %v419 = vpop.permute.xlu0 %418
  %420 = vrot.lane.b32.xlu0 %v351, 112
  %v421 = vpop.permute.xlu0 %420
  %422 = vrot.lane.b32.xlu0 %v356, 112
  %v423 = vpop.permute.xlu0 %422
  %424 = vrot.lane.b32.xlu0 %v359, 112
  %v425 = vpop.permute.xlu0 %424
  %426 = vrot.lane.b32.xlu0 %v364, 112
  %v427 = vpop.permute.xlu0 %426
  %428 = vrot.lane.b32.xlu0 %v367, 112
  %v429 = vpop.permute.xlu0 %428
  %430 = vrot.lane.b32.xlu0 %v372, 112
  %v431 = vpop.permute.xlu0 %430
  %432 = vrot.lane.b32.xlu0 %v375, 112
  %v433 = vpop.permute.xlu0 %432
  %v442 = vmax.f32 %v410, %v419
  %v443 = vmax.f32 %v411, %v421
  %v444 = vmax.f32 %v412, %v423
  %v445 = vmax.f32 %v413, %v425
  %v446 = vmax.f32 %v414, %v427
  %v447 = vmax.f32 %v415, %v429
  %v448 = vmax.f32 %v416, %v431
  %v449 = vmax.f32 %v417, %v433
  %450 = vrot.lane.b32.xlu0 %v348, 104
  %v451 = vpop.permute.xlu0 %450
  %452 = vrot.lane.b32.xlu0 %v351, 104
  %v453 = vpop.permute.xlu0 %452
  %454 = vrot.lane.b32.xlu0 %v356, 104
  %v455 = vpop.permute.xlu0 %454
  %456 = vrot.lane.b32.xlu0 %v359, 104
  %v457 = vpop.permute.xlu0 %456
  %458 = vrot.lane.b32.xlu0 %v364, 104
  %v459 = vpop.permute.xlu0 %458
  %460 = vrot.lane.b32.xlu0 %v367, 104
  %v461 = vpop.permute.xlu0 %460
  %462 = vrot.lane.b32.xlu0 %v372, 104
  %v463 = vpop.permute.xlu0 %462
  %464 = vrot.lane.b32.xlu0 %v375, 104
  %v465 = vpop.permute.xlu0 %464
  %v474 = vmax.f32 %v442, %v451
  %v475 = vmax.f32 %v443, %v453
  %v476 = vmax.f32 %v444, %v455
  %v477 = vmax.f32 %v445, %v457
  %v478 = vmax.f32 %v446, %v459
  %v479 = vmax.f32 %v447, %v461
  %v480 = vmax.f32 %v448, %v463
  %v481 = vmax.f32 %v449, %v465
  %482 = vrot.lane.b32.xlu0 %v348, 96
  %v483 = vpop.permute.xlu0 %482
  %484 = vrot.lane.b32.xlu0 %v351, 96
  %v485 = vpop.permute.xlu0 %484
  %486 = vrot.lane.b32.xlu0 %v356, 96
  %v487 = vpop.permute.xlu0 %486
  %488 = vrot.lane.b32.xlu0 %v359, 96
  %v489 = vpop.permute.xlu0 %488
  %490 = vrot.lane.b32.xlu0 %v364, 96
  %v491 = vpop.permute.xlu0 %490
  %492 = vrot.lane.b32.xlu0 %v367, 96
  %v493 = vpop.permute.xlu0 %492
  %494 = vrot.lane.b32.xlu0 %v372, 96
  %v495 = vpop.permute.xlu0 %494
  %496 = vrot.lane.b32.xlu0 %v375, 96
  %v497 = vpop.permute.xlu0 %496
  %v506 = vmax.f32 %v474, %v483
  %v507 = vmax.f32 %v475, %v485
  %v508 = vmax.f32 %v476, %v487
  %v509 = vmax.f32 %v477, %v489
  %v510 = vmax.f32 %v478, %v491
  %v511 = vmax.f32 %v479, %v493
  %v512 = vmax.f32 %v480, %v495
  %v513 = vmax.f32 %v481, %v497
  %514 = vrot.lane.b32.xlu0 %v348, 88
  %v515 = vpop.permute.xlu0 %514
  %516 = vrot.lane.b32.xlu0 %v351, 88
  %v517 = vpop.permute.xlu0 %516
  %518 = vrot.lane.b32.xlu0 %v356, 88
  %v519 = vpop.permute.xlu0 %518
  %520 = vrot.lane.b32.xlu0 %v359, 88
  %v521 = vpop.permute.xlu0 %520
  %522 = vrot.lane.b32.xlu0 %v364, 88
  %v523 = vpop.permute.xlu0 %522
  %524 = vrot.lane.b32.xlu0 %v367, 88
  %v525 = vpop.permute.xlu0 %524
  %526 = vrot.lane.b32.xlu0 %v372, 88
  %v527 = vpop.permute.xlu0 %526
  %528 = vrot.lane.b32.xlu0 %v375, 88
  %v529 = vpop.permute.xlu0 %528
  %v538 = vmax.f32 %v506, %v515
  %v539 = vmax.f32 %v507, %v517
  %v540 = vmax.f32 %v508, %v519
  %v541 = vmax.f32 %v509, %v521
  %v542 = vmax.f32 %v510, %v523
  %v543 = vmax.f32 %v511, %v525
  %v544 = vmax.f32 %v512, %v527
  %v545 = vmax.f32 %v513, %v529
  %546 = vrot.lane.b32.xlu0 %v348, 80
  %v547 = vpop.permute.xlu0 %546
  %548 = vrot.lane.b32.xlu0 %v351, 80
  %v549 = vpop.permute.xlu0 %548
  %550 = vrot.lane.b32.xlu0 %v356, 80
  %v551 = vpop.permute.xlu0 %550
  %552 = vrot.lane.b32.xlu0 %v359, 80
  %v553 = vpop.permute.xlu0 %552
  %554 = vrot.lane.b32.xlu0 %v364, 80
  %v555 = vpop.permute.xlu0 %554
  %556 = vrot.lane.b32.xlu0 %v367, 80
  %v557 = vpop.permute.xlu0 %556
  %558 = vrot.lane.b32.xlu0 %v372, 80
  %v559 = vpop.permute.xlu0 %558
  %560 = vrot.lane.b32.xlu0 %v375, 80
  %v561 = vpop.permute.xlu0 %560
  %v570 = vmax.f32 %v538, %v547
  %v571 = vmax.f32 %v539, %v549
  %v572 = vmax.f32 %v540, %v551
  %v573 = vmax.f32 %v541, %v553
  %v574 = vmax.f32 %v542, %v555
  %v575 = vmax.f32 %v543, %v557
  %v576 = vmax.f32 %v544, %v559
  %v577 = vmax.f32 %v545, %v561
  %578 = vrot.lane.b32.xlu0 %v348, 72
  %v579 = vpop.permute.xlu0 %578
  %580 = vrot.lane.b32.xlu0 %v351, 72
  %v581 = vpop.permute.xlu0 %580
  %582 = vrot.lane.b32.xlu0 %v356, 72
  %v583 = vpop.permute.xlu0 %582
  %584 = vrot.lane.b32.xlu0 %v359, 72
  %v585 = vpop.permute.xlu0 %584
  %586 = vrot.lane.b32.xlu0 %v364, 72
  %v587 = vpop.permute.xlu0 %586
  %588 = vrot.lane.b32.xlu0 %v367, 72
  %v589 = vpop.permute.xlu0 %588
  %590 = vrot.lane.b32.xlu0 %v372, 72
  %v591 = vpop.permute.xlu0 %590
  %592 = vrot.lane.b32.xlu0 %v375, 72
  %v593 = vpop.permute.xlu0 %592
  %v602 = vmax.f32 %v570, %v579
  %v603 = vmax.f32 %v571, %v581
  %v604 = vmax.f32 %v572, %v583
  %v605 = vmax.f32 %v573, %v585
  %v606 = vmax.f32 %v574, %v587
  %v607 = vmax.f32 %v575, %v589
  %v608 = vmax.f32 %v576, %v591
  %v609 = vmax.f32 %v577, %v593
  %610 = vrot.lane.b32.xlu0 %v348, 64
  %v611 = vpop.permute.xlu0 %610
  %612 = vrot.lane.b32.xlu0 %v351, 64
  %v613 = vpop.permute.xlu0 %612
  %614 = vrot.lane.b32.xlu0 %v356, 64
  %v615 = vpop.permute.xlu0 %614
  %616 = vrot.lane.b32.xlu0 %v359, 64
  %v617 = vpop.permute.xlu0 %616
  %618 = vrot.lane.b32.xlu0 %v364, 64
  %v619 = vpop.permute.xlu0 %618
  %620 = vrot.lane.b32.xlu0 %v367, 64
  %v621 = vpop.permute.xlu0 %620
  %622 = vrot.lane.b32.xlu0 %v372, 64
  %v623 = vpop.permute.xlu0 %622
  %624 = vrot.lane.b32.xlu0 %v375, 64
  %v625 = vpop.permute.xlu0 %624
  %v634 = vmax.f32 %v602, %v611
  %v635 = vmax.f32 %v603, %v613
  %v636 = vmax.f32 %v604, %v615
  %v637 = vmax.f32 %v605, %v617
  %v638 = vmax.f32 %v606, %v619
  %v639 = vmax.f32 %v607, %v621
  %v640 = vmax.f32 %v608, %v623
  %v641 = vmax.f32 %v609, %v625
  %642 = vrot.lane.b32.xlu0 %v348, 56
  %v643 = vpop.permute.xlu0 %642
  %644 = vrot.lane.b32.xlu0 %v351, 56
  %v645 = vpop.permute.xlu0 %644
  %646 = vrot.lane.b32.xlu0 %v356, 56
  %v647 = vpop.permute.xlu0 %646
  %648 = vrot.lane.b32.xlu0 %v359, 56
  %v649 = vpop.permute.xlu0 %648
  %650 = vrot.lane.b32.xlu0 %v364, 56
  %v651 = vpop.permute.xlu0 %650
  %652 = vrot.lane.b32.xlu0 %v367, 56
  %v653 = vpop.permute.xlu0 %652
  %654 = vrot.lane.b32.xlu0 %v372, 56
  %v655 = vpop.permute.xlu0 %654
  %656 = vrot.lane.b32.xlu0 %v375, 56
  %v657 = vpop.permute.xlu0 %656
  %v666 = vmax.f32 %v634, %v643
  %v667 = vmax.f32 %v635, %v645
  %v668 = vmax.f32 %v636, %v647
  %v669 = vmax.f32 %v637, %v649
  %v670 = vmax.f32 %v638, %v651
  %v671 = vmax.f32 %v639, %v653
  %v672 = vmax.f32 %v640, %v655
  %v673 = vmax.f32 %v641, %v657
  %674 = vrot.lane.b32.xlu0 %v348, 48
  %v675 = vpop.permute.xlu0 %674
  %676 = vrot.lane.b32.xlu0 %v351, 48
  %v677 = vpop.permute.xlu0 %676
  %678 = vrot.lane.b32.xlu0 %v356, 48
  %v679 = vpop.permute.xlu0 %678
  %680 = vrot.lane.b32.xlu0 %v359, 48
  %v681 = vpop.permute.xlu0 %680
  %682 = vrot.lane.b32.xlu0 %v364, 48
  %v683 = vpop.permute.xlu0 %682
  %684 = vrot.lane.b32.xlu0 %v367, 48
  %v685 = vpop.permute.xlu0 %684
  %686 = vrot.lane.b32.xlu0 %v372, 48
  %v687 = vpop.permute.xlu0 %686
  %688 = vrot.lane.b32.xlu0 %v375, 48
  %v689 = vpop.permute.xlu0 %688
  %v698 = vmax.f32 %v666, %v675
  %v699 = vmax.f32 %v667, %v677
  %v700 = vmax.f32 %v668, %v679
  %v701 = vmax.f32 %v669, %v681
  %v702 = vmax.f32 %v670, %v683
  %v703 = vmax.f32 %v671, %v685
  %v704 = vmax.f32 %v672, %v687
  %v705 = vmax.f32 %v673, %v689
  %706 = vrot.lane.b32.xlu0 %v348, 40
  %v707 = vpop.permute.xlu0 %706
  %708 = vrot.lane.b32.xlu0 %v351, 40
  %v709 = vpop.permute.xlu0 %708
  %710 = vrot.lane.b32.xlu0 %v356, 40
  %v711 = vpop.permute.xlu0 %710
  %712 = vrot.lane.b32.xlu0 %v359, 40
  %v713 = vpop.permute.xlu0 %712
  %714 = vrot.lane.b32.xlu0 %v364, 40
  %v715 = vpop.permute.xlu0 %714
  %716 = vrot.lane.b32.xlu0 %v367, 40
  %v717 = vpop.permute.xlu0 %716
  %718 = vrot.lane.b32.xlu0 %v372, 40
  %v719 = vpop.permute.xlu0 %718
  %720 = vrot.lane.b32.xlu0 %v375, 40
  %v721 = vpop.permute.xlu0 %720
  %v730 = vmax.f32 %v698, %v707
  %v731 = vmax.f32 %v699, %v709
  %v732 = vmax.f32 %v700, %v711
  %v733 = vmax.f32 %v701, %v713
  %v734 = vmax.f32 %v702, %v715
  %v735 = vmax.f32 %v703, %v717
  %v736 = vmax.f32 %v704, %v719
  %v737 = vmax.f32 %v705, %v721
  %738 = vrot.lane.b32.xlu0 %v348, 32
  %v739 = vpop.permute.xlu0 %738
  %740 = vrot.lane.b32.xlu0 %v351, 32
  %v741 = vpop.permute.xlu0 %740
  %742 = vrot.lane.b32.xlu0 %v356, 32
  %v743 = vpop.permute.xlu0 %742
  %744 = vrot.lane.b32.xlu0 %v359, 32
  %v745 = vpop.permute.xlu0 %744
  %746 = vrot.lane.b32.xlu0 %v364, 32
  %v747 = vpop.permute.xlu0 %746
  %748 = vrot.lane.b32.xlu0 %v367, 32
  %v749 = vpop.permute.xlu0 %748
  %750 = vrot.lane.b32.xlu0 %v372, 32
  %v751 = vpop.permute.xlu0 %750
  %752 = vrot.lane.b32.xlu0 %v375, 32
  %v753 = vpop.permute.xlu0 %752
  %v762 = vmax.f32 %v730, %v739
  %v763 = vmax.f32 %v731, %v741
  %v764 = vmax.f32 %v732, %v743
  %v765 = vmax.f32 %v733, %v745
  %v766 = vmax.f32 %v734, %v747
  %v767 = vmax.f32 %v735, %v749
  %v768 = vmax.f32 %v736, %v751
  %v769 = vmax.f32 %v737, %v753
  %770 = vrot.lane.b32.xlu0 %v348, 24
  %v771 = vpop.permute.xlu0 %770
  %772 = vrot.lane.b32.xlu0 %v351, 24
  %v773 = vpop.permute.xlu0 %772
  %774 = vrot.lane.b32.xlu0 %v356, 24
  %v775 = vpop.permute.xlu0 %774
  %776 = vrot.lane.b32.xlu0 %v359, 24
  %v777 = vpop.permute.xlu0 %776
  %778 = vrot.lane.b32.xlu0 %v364, 24
  %v779 = vpop.permute.xlu0 %778
  %780 = vrot.lane.b32.xlu0 %v367, 24
  %v781 = vpop.permute.xlu0 %780
  %782 = vrot.lane.b32.xlu0 %v372, 24
  %v783 = vpop.permute.xlu0 %782
  %784 = vrot.lane.b32.xlu0 %v375, 24
  %v785 = vpop.permute.xlu0 %784
  %v794 = vmax.f32 %v762, %v771
  %v795 = vmax.f32 %v763, %v773
  %v796 = vmax.f32 %v764, %v775
  %v797 = vmax.f32 %v765, %v777
  %v798 = vmax.f32 %v766, %v779
  %v799 = vmax.f32 %v767, %v781
  %v800 = vmax.f32 %v768, %v783
  %v801 = vmax.f32 %v769, %v785
  %802 = vrot.lane.b32.xlu0 %v348, 16
  %v803 = vpop.permute.xlu0 %802
  %804 = vrot.lane.b32.xlu0 %v351, 16
  %v805 = vpop.permute.xlu0 %804
  %806 = vrot.lane.b32.xlu0 %v356, 16
  %v807 = vpop.permute.xlu0 %806
  %808 = vrot.lane.b32.xlu0 %v359, 16
  %v809 = vpop.permute.xlu0 %808
  %810 = vrot.lane.b32.xlu0 %v364, 16
  %v811 = vpop.permute.xlu0 %810
  %812 = vrot.lane.b32.xlu0 %v367, 16
  %v813 = vpop.permute.xlu0 %812
  %814 = vrot.lane.b32.xlu0 %v372, 16
  %v815 = vpop.permute.xlu0 %814
  %816 = vrot.lane.b32.xlu0 %v375, 16
  %v817 = vpop.permute.xlu0 %816
  %v826 = vmax.f32 %v794, %v803
  %v827 = vmax.f32 %v795, %v805
  %v828 = vmax.f32 %v796, %v807
  %v829 = vmax.f32 %v797, %v809
  %v830 = vmax.f32 %v798, %v811
  %v831 = vmax.f32 %v799, %v813
  %v832 = vmax.f32 %v800, %v815
  %v833 = vmax.f32 %v801, %v817
  %834 = vrot.lane.b32.xlu0 %v348, 8
  %v835 = vpop.permute.xlu0 %834
  %836 = vrot.lane.b32.xlu0 %v351, 8
  %v837 = vpop.permute.xlu0 %836
  %838 = vrot.lane.b32.xlu0 %v356, 8
  %v839 = vpop.permute.xlu0 %838
  %840 = vrot.lane.b32.xlu0 %v359, 8
  %v841 = vpop.permute.xlu0 %840
  %842 = vrot.lane.b32.xlu0 %v364, 8
  %v843 = vpop.permute.xlu0 %842
  %844 = vrot.lane.b32.xlu0 %v367, 8
  %v845 = vpop.permute.xlu0 %844
  %846 = vrot.lane.b32.xlu0 %v372, 8
  %v847 = vpop.permute.xlu0 %846
  %848 = vrot.lane.b32.xlu0 %v375, 8
  %v849 = vpop.permute.xlu0 %848
  %v858 = vmax.f32 %v826, %v835
  %v859 = vmax.f32 %v827, %v837
  %v860 = vmax.f32 %v828, %v839
  %v861 = vmax.f32 %v829, %v841
  %v862 = vmax.f32 %v830, %v843
  %v863 = vmax.f32 %v831, %v845
  %v864 = vmax.f32 %v832, %v847
  %v865 = vmax.f32 %v833, %v849
  %v866 = vld [vmem:[%s2] sm:$0xff]
  %v867 = vld [vmem:[%s2 + $0x8] sm:$0xff]
  %v868 = vld [vmem:[%s2 + $0x10] sm:$0xff]
  %v869 = vld [vmem:[%s2 + $0x18] sm:$0xff]
  %v870 = vld [vmem:[%s2 + $0x20] sm:$0xff]
  %v871 = vld [vmem:[%s2 + $0x28] sm:$0xff]
  %v872 = vld [vmem:[%s2 + $0x30] sm:$0xff]
  %v873 = vld [vmem:[%s2 + $0x38] sm:$0xff]
  %875 = vset.pattern.permute.xlu0 0
  %876 = vperm.xlu0 %875, %v866
  %v877 = vpop.permute.xlu0 %876
  %880 = vset.pattern.permute.xlu0 0
  %881 = vperm.xlu0 %880, %v867
  %v882 = vpop.permute.xlu0 %881
  %885 = vset.pattern.permute.xlu0 0
  %886 = vperm.xlu0 %885, %v868
  %v887 = vpop.permute.xlu0 %886
  %890 = vset.pattern.permute.xlu0 0
  %891 = vperm.xlu0 %890, %v869
  %v892 = vpop.permute.xlu0 %891
  %895 = vset.pattern.permute.xlu0 0
  %896 = vperm.xlu0 %895, %v870
  %v897 = vpop.permute.xlu0 %896
  %900 = vset.pattern.permute.xlu0 0
  %901 = vperm.xlu0 %900, %v871
  %v902 = vpop.permute.xlu0 %901
  %905 = vset.pattern.permute.xlu0 0
  %906 = vperm.xlu0 %905, %v872
  %v907 = vpop.permute.xlu0 %906
  %910 = vset.pattern.permute.xlu0 0
  %911 = vperm.xlu0 %910, %v873
  %v912 = vpop.permute.xlu0 %911
  %v914 = vadd.f32 %v858, %v877
  %v915 = vadd.f32 %v859, %v882
  %v916 = vadd.f32 %v860, %v887
  %v917 = vadd.f32 %v861, %v892
  %v918 = vadd.f32 %v862, %v897
  %v919 = vadd.f32 %v863, %v902
  %v920 = vadd.f32 %v864, %v907
  %v921 = vadd.f32 %v865, %v912
  %v922 = vmax.f32 %v914, 0.0
  %v923 = vmax.f32 %v915, 0.0
  %v924 = vmax.f32 %v916, 0.0
  %v925 = vmax.f32 %v917, 0.0
  %v926 = vmax.f32 %v918, 0.0
  %v927 = vmax.f32 %v919, 0.0
  %v928 = vmax.f32 %v920, 0.0
  %v929 = vmax.f32 %v921, 0.0
  %v930 = vpack.c.bf16 %v923, %v922
  %v931 = vpack.c.bf16 %v925, %v924
  %v932 = vpack.c.bf16 %v927, %v926
  %v933 = vpack.c.bf16 %v929, %v928
  %v938 = vunpack.c.l.b16 %v930
  %v939 = vunpack.c.h.b16 %v930
  %v940 = vunpack.c.l.b16 %v931
  %v941 = vunpack.c.h.b16 %v931
  %v942 = vunpack.c.l.b16 %v932
  %v943 = vunpack.c.h.b16 %v932
  %v944 = vunpack.c.l.b16 %v933
  %v945 = vunpack.c.h.b16 %v933
  %v946 = vpack.c.b16 %v938, %v938
  %v947 = vpack.c.b16 %v939, %v939
  %v948 = vpack.c.b16 %v940, %v940
  %v949 = vpack.c.b16 %v941, %v941
  %v950 = vpack.c.b16 %v942, %v942
  %v951 = vpack.c.b16 %v943, %v943
  %v952 = vpack.c.b16 %v944, %v944
  %v953 = vpack.c.b16 %v945, %v945
  %vm962 = vcmask 60416
  %963 = vst.msk [vmem:[%s3] sm:$0xf] %vm962, %v946
  %964 = vst.msk [vmem:[%s3 + $0x4] sm:$0xf] %vm962, %v947
  %965 = vst.msk [vmem:[%s3 + $0x8] sm:$0xf] %vm962, %v948
  %966 = vst.msk [vmem:[%s3 + $0xc] sm:$0xf] %vm962, %v949
  %967 = vst.msk [vmem:[%s3 + $0x10] sm:$0xf] %vm962, %v950
  %968 = vst.msk [vmem:[%s3 + $0x14] sm:$0xf] %vm962, %v951
  %969 = vst.msk [vmem:[%s3 + $0x18] sm:$0xf] %vm962, %v952
  %970 = vst.msk [vmem:[%s3 + $0x1c] sm:$0xf] %vm962, %v953
  // Predicated region
  $region14: #{multi_input_forward.6} parent=0 // pred_check
    _
  $region15: #{multi_input_forward.6} parent=0 // pred_check_branch
    %972 = sbr.rel (0) target = $region17
  $region16: #{multi_input_forward.6} parent=0 // pred_region
    _
  $region17: #{multi_input_forward.6} parent=0 // pred_fallthru
    _
  // Predicated region
  $region18: #{multi_input_forward.6} parent=0 // pred_check
    _
  $region19: #{multi_input_forward.6} parent=0 // pred_check_branch
    %974 = sbr.rel (0) target = $region21
  $region20: #{multi_input_forward.6} parent=0 // pred_region
    _
  $region21: #{multi_input_forward.6} parent=0 // pred_fallthru
    _

// kernel: multi_input_forward.7
$region0: #{multi_input_forward.7}
  #allocation0 [shape = 'u32[]', space=smem, size = 0x4, offset = 0x4, fixed_abs, tag = 'smem constant byte address 0x4 - core index']
  #allocation1 [shape = 'u32[144,128]{1,0:T(1,128)}', space=vmem, size = 0x12000, scoped, tag = 'internal scratch']
  %s0 = inlined_call_operand.vmem [shape: bf16[2,2304], index: 0, kind: input, shape index: {}]
  %s1 = inlined_call_operand.vmem [shape: bf16[2304,512], index: 1, kind: input, shape index: {}]
  %s2 = inlined_call_operand.vmem [shape: f32[1,512], index: 2, kind: input, shape index: {}]
  %s3 = inlined_call_operand.vmem [shape: bf16[512,10], index: 3, kind: input, shape index: {}]
  %s4 = inlined_call_operand.vmem [shape: f32[2,2,10], index: 4, kind: output, shape index: {}]
  %s5 = sld [smem:[#allocation0]]
  $region87: #{multi_input_forward.7} parent=0
    _
  %s7 = ssub.s32 1, %s5
  %s8 = scalar_select 0, %s7, %s5
  $region1: #{multi_input_forward.7} parent=0
    #allocation2 [shape = 'u8[2359296]{0}', space=vmem, size = 0x240000, scoped, tag = 'input window, operand 1']
    loop: start=0, step=1, limit=4
    $region2: #{multi_input_forward.7} parent=1 // loop_pre_header
      _
    $region3: #{multi_input_forward.7} parent=1 // loop_header
      %s10 = sphi 0, %s14
      %p11 = scmp.ge.s32.totalorder %s10, 4
      %s18 = sphi 0, %s18
      %s20 = sphi 0, %s18
      %s21 = sphi 0, %s20
      %s35 = sphi 0, %s21
      %s41 = sphi 0, %s43
      %s44 = sphi 0, %s41
      %s45 = sphi 0, %s44
      %s61 = sphi 0, %s45
      %s67 = sphi 0, %s69
      %s70 = sphi 0, %s67
      %s71 = sphi 0, %s70
      %s87 = sphi 0, %s71
      %s93 = sphi 0, %s95
      %s96 = sphi 0, %s93
      %s97 = sphi 0, %s96
      %s113 = sphi 0, %s97
      %s119 = sphi 0, %s121
      %s122 = sphi 0, %s119
      %s123 = sphi 0, %s122
      %s139 = sphi 0, %s123
    $region4: #{multi_input_forward.7} parent=1 // loop_header_branch
      %13 = sbr.rel (%p11) target = $region8
    $region5: #{multi_input_forward.7} parent=1 // loop_body
      %s15 = ssub.s32 %s10, 1
      %s16 = ssub.s32 %s10, 2
      %s17 = sadd.s32 %s10, 1
      %s19 = sadd.s32 %s18, 1
      %p22 = scmp.eq.s32.totalorder %s10, 1
      %p23 = scmp.ne.s32.totalorder %s18, %s20
      %p24 = scmp.eq.s32.totalorder %s10, 0
      %p25 = por %p23, %p24
      %p26 = scmp.ne.s32.totalorder %s18, %s20
      %p27 = scmp.eq.s32.totalorder %s15, 1
      %p28 = por %p26, %p27
      %p29 = scmp.ne.s32.totalorder %s20, %s21
      %p30 = scmp.eq.s32.totalorder %s15, 0
      %p31 = por %p29, %p30
      %p32 = scmp.ne.s32.totalorder %s20, %s21
      %p33 = scmp.eq.s32.totalorder %s16, 1
      %p34 = por %p32, %p33
      %p36 = scmp.ne.s32.totalorder %s21, %s35
      %p37 = scmp.eq.s32.totalorder %s16, 0
      %p38 = por %p36, %p37
      %s39 = ssub.s32 %s10, %s17
      %p40 = scmp.eq.s32.totalorder %s39, 0
      %s42 = sadd.s32 %s41, 1
      %s43 = scalar_select %p40, %s41, %s42
      %p46 = pneg %p40
      %p47 = scmp.eq.s32.totalorder %s10, 1
      %p48 = por %p46, %p47
      %p49 = scmp.ne.s32.totalorder %s41, %s44
      %p50 = scmp.eq.s32.totalorder %s10, 0
      %p51 = por %p49, %p50
      %p52 = scmp.ne.s32.totalorder %s41, %s44
      %p53 = scmp.eq.s32.totalorder %s15, 1
      %p54 = por %p52, %p53
      %p55 = scmp.ne.s32.totalorder %s44, %s45
      %p56 = scmp.eq.s32.totalorder %s15, 0
      %p57 = por %p55, %p56
      %p58 = scmp.ne.s32.totalorder %s44, %s45
      %p59 = scmp.eq.s32.totalorder %s16, 1
      %p60 = por %p58, %p59
      %p62 = scmp.ne.s32.totalorder %s45, %s61
      %p63 = scmp.eq.s32.totalorder %s16, 0
      %p64 = por %p62, %p63
      %s65 = ssub.s32 %s10, %s17
      %p66 = scmp.eq.s32.totalorder %s65, 0
      %s68 = sadd.s32 %s67, 1
      %s69 = scalar_select %p66, %s67, %s68
      %p72 = pneg %p66
      %p73 = scmp.eq.s32.totalorder %s10, 1
      %p74 = por %p72, %p73
      %p75 = scmp.ne.s32.totalorder %s67, %s70
      %p76 = scmp.eq.s32.totalorder %s10, 0
      %p77 = por %p75, %p76
      %p78 = scmp.ne.s32.totalorder %s67, %s70
      %p79 = scmp.eq.s32.totalorder %s15, 1
      %p80 = por %p78, %p79
      %p81 = scmp.ne.s32.totalorder %s70, %s71
      %p82 = scmp.eq.s32.totalorder %s15, 0
      %p83 = por %p81, %p82
      %p84 = scmp.ne.s32.totalorder %s70, %s71
      %p85 = scmp.eq.s32.totalorder %s16, 1
      %p86 = por %p84, %p85
      %p88 = scmp.ne.s32.totalorder %s71, %s87
      %p89 = scmp.eq.s32.totalorder %s16, 0
      %p90 = por %p88, %p89
      %s91 = ssub.s32 %s10, %s17
      %p92 = scmp.eq.s32.totalorder %s91, 0
      %s94 = sadd.s32 %s93, 1
      %s95 = scalar_select %p92, %s93, %s94
      %p98 = pneg %p92
      %p99 = scmp.eq.s32.totalorder %s10, 1
      %p100 = por %p98, %p99
      %p101 = scmp.ne.s32.totalorder %s93, %s96
      %p102 = scmp.eq.s32.totalorder %s10, 0
      %p103 = por %p101, %p102
      %p104 = scmp.ne.s32.totalorder %s93, %s96
      %p105 = scmp.eq.s32.totalorder %s15, 1
      %p106 = por %p104, %p105
      %p107 = scmp.ne.s32.totalorder %s96, %s97
      %p108 = scmp.eq.s32.totalorder %s15, 0
      %p109 = por %p107, %p108
      %p110 = scmp.ne.s32.totalorder %s96, %s97
      %p111 = scmp.eq.s32.totalorder %s16, 1
      %p112 = por %p110, %p111
      %p114 = scmp.ne.s32.totalorder %s97, %s113
      %p115 = scmp.eq.s32.totalorder %s16, 0
      %p116 = por %p114, %p115
      %s117 = ssub.s32 %s10, %s17
      %p118 = scmp.eq.s32.totalorder %s117, 0
      %s120 = sadd.s32 %s119, 1
      %s121 = scalar_select %p118, %s119, %s120
      %p124 = pneg %p118
      %p125 = scmp.eq.s32.totalorder %s10, 1
      %p126 = por %p124, %p125
      %p127 = scmp.ne.s32.totalorder %s119, %s122
      %p128 = scmp.eq.s32.totalorder %s10, 0
      %p129 = por %p127, %p128
      %p130 = scmp.ne.s32.totalorder %s119, %s122
      %p131 = scmp.eq.s32.totalorder %s15, 1
      %p132 = por %p130, %p131
      %p133 = scmp.ne.s32.totalorder %s122, %s123
      %p134 = scmp.eq.s32.totalorder %s15, 0
      %p135 = por %p133, %p134
      %p136 = scmp.ne.s32.totalorder %s122, %s123
      %p137 = scmp.eq.s32.totalorder %s16, 1
      %p138 = por %p136, %p137
      %p140 = scmp.ne.s32.totalorder %s123, %s139
      %p141 = scmp.eq.s32.totalorder %s16, 0
      %p142 = por %p140, %p141
      %p143 = scmp.le.s32.totalorder 1, %s10
      %p144 = scmp.lt.s32.totalorder %s10, 3
      %p145 = pnand %p143, %p144
      %p146 = pneg %p145
      // Predicated region
      $region9: #{multi_input_forward.7} parent=5 // pred_check
        _
      $region10: #{multi_input_forward.7} parent=5 // pred_check_branch
        %148 = sbr.rel (%p145) target = $region12
      $region11: #{multi_input_forward.7} parent=5 // pred_region
        %s149 = ssub.s32 %s10, 1
        // Predicated region
        $region13: #{multi_input_forward.7} parent=11 // pred_check
          %p150 = pneg %p31
        $region14: #{multi_input_forward.7} parent=11 // pred_check_branch
          %152 = sbr.rel (%p150) target = $region16
        $region15: #{multi_input_forward.7} parent=11 // pred_region
          _
        $region16: #{multi_input_forward.7} parent=11 // pred_fallthru
          _
      $region12: #{multi_input_forward.7} parent=5 // pred_fallthru
        _
      %p153 = scmp.lt.s32.totalorder %s10, 2
      // Predicated region
      $region17: #{multi_input_forward.7} parent=5 // pred_check
        %p154 = pneg %p153
      $region18: #{multi_input_forward.7} parent=5 // pred_check_branch
        %156 = sbr.rel (%p154) target = $region20
      $region19: #{multi_input_forward.7} parent=5 // pred_region
        // Predicated region
        $region21: #{multi_input_forward.7} parent=19 // pred_check
          %p157 = pneg %p51
        $region22: #{multi_input_forward.7} parent=19 // pred_check_branch
          %159 = sbr.rel (%p157) target = $region24
        $region23: #{multi_input_forward.7} parent=19 // pred_region
          %s160 = sand.u32 %s41, 1
          %s161 = sand.u32 %s41, 1
          %s162 = smul.addr %s161, 2304
          %s163 = scalar_lea.vmem [#allocation2], %s162
          %s164 = smul.u32 2, %s10
          %s165 = smul.addr %s164, 4
          %s166 = scalar_lea.vmem %s1, %s165
          // Predicated region
          $region25: #{multi_input_forward.7} parent=23 // pred_check
            _
          $region26: #{multi_input_forward.7} parent=23 // pred_check_branch
            %168 = sbr.rel (0) target = $region28
          $region27: #{multi_input_forward.7} parent=23 // pred_region
            // Predicated region
            $region29: #{multi_input_forward.7} parent=27 // pred_check
              _
            $region30: #{multi_input_forward.7} parent=27 // pred_check_branch
              %170 = sbr.rel (0) target = $region32
            $region31: #{multi_input_forward.7} parent=27 // pred_region
              // Predicated region
              $region44: #{multi_input_forward.7} parent=31 // pred_check
                _
              $region45: #{multi_input_forward.7} parent=31 // pred_check_branch
                %759 = sbr.rel (0) target = $region47
              $region46: #{multi_input_forward.7} parent=31 // pred_region
                loop: start=0, step=1, limit=1
                $region48: #{multi_input_forward.7} parent=46 // loop_pre_header
                  _
                $region49: #{multi_input_forward.7} parent=46 // loop_header
                  %s761 = sphi 0, %s765
                  %p762 = scmp.ge.s32.totalorder %s761, 1
                  %s766 = sphi %s166, %s166
                  %s767 = sphi %s163, %s163
                $region50: #{multi_input_forward.7} parent=46 // loop_header_branch
                  %764 = sbr.rel (%p762) target = $region54
                $region51: #{multi_input_forward.7} parent=46 // loop_body
                  %v768 = vld [vmem:[%s766] sm:$0xff]
                  %769 = vst [vmem:[%s767] sm:$0xff] %v768
                  %v770 = vld [vmem:[%s766 + $0x10] sm:$0xff]
                  %771 = vst [vmem:[%s767 + $0x8] sm:$0xff] %v770
                  %v772 = vld [vmem:[%s766 + $0x20] sm:$0xff]
                  %773 = vst [vmem:[%s767 + $0x10] sm:$0xff] %v772
                  %v774 = vld [vmem:[%s766 + $0x30] sm:$0xff]
                  %775 = vst [vmem:[%s767 + $0x18] sm:$0xff] %v774
                  %v776 = vld [vmem:[%s766 + $0x40] sm:$0xff]
                  %777 = vst [vmem:[%s767 + $0x20] sm:$0xff] %v776
                  %v778 = vld [vmem:[%s766 + $0x50] sm:$0xff]
                  %779 = vst [vmem:[%s767 + $0x28] sm:$0xff] %v778
                  %v780 = vld [vmem:[%s766 + $0x60] sm:$0xff]
                  %781 = vst [vmem:[%s767 + $0x30] sm:$0xff] %v780
                  %v782 = vld [vmem:[%s766 + $0x70] sm:$0xff]
                  %783 = vst [vmem:[%s767 + $0x38] sm:$0xff] %v782
                  %v784 = vld [vmem:[%s766 + $0x80] sm:$0xff]
                  %785 = vst [vmem:[%s767 + $0x40] sm:$0xff] %v784
                  %v786 = vld [vmem:[%s766 + $0x90] sm:$0xff]
                  %787 = vst [vmem:[%s767 + $0x48] sm:$0xff] %v786
                  %v788 = vld [vmem:[%s766 + $0xa0] sm:$0xff]
                  %789 = vst [vmem:[%s767 + $0x50] sm:$0xff] %v788
                  %v790 = vld [vmem:[%s766 + $0xb0] sm:$0xff]
                  %791 = vst [vmem:[%s767 + $0x58] sm:$0xff] %v790
                  %v792 = vld [vmem:[%s766 + $0xc0] sm:$0xff]
                  %793 = vst [vmem:[%s767 + $0x60] sm:$0xff] %v792
                  %v794 = vld [vmem:[%s766 + $0xd0] sm:$0xff]
                  %795 = vst [vmem:[%s767 + $0x68] sm:$0xff] %v794
                  %v796 = vld [vmem:[%s766 + $0xe0] sm:$0xff]
                  %797 = vst [vmem:[%s767 + $0x70] sm:$0xff] %v796
                  %v798 = vld [vmem:[%s766 + $0xf0] sm:$0xff]
                  %799 = vst [vmem:[%s767 + $0x78] sm:$0xff] %v798
                  %v800 = vld [vmem:[%s766 + $0x100] sm:$0xff]
                  %801 = vst [vmem:[%s767 + $0x80] sm:$0xff] %v800
                  %v802 = vld [vmem:[%s766 + $0x110] sm:$0xff]
                  %803 = vst [vmem:[%s767 + $0x88] sm:$0xff] %v802
                  %v804 = vld [vmem:[%s766 + $0x120] sm:$0xff]
                  %805 = vst [vmem:[%s767 + $0x90] sm:$0xff] %v804
                  %v806 = vld [vmem:[%s766 + $0x130] sm:$0xff]
                  %807 = vst [vmem:[%s767 + $0x98] sm:$0xff] %v806
                  %v808 = vld [vmem:[%s766 + $0x140] sm:$0xff]
                  %809 = vst [vmem:[%s767 + $0xa0] sm:$0xff] %v808
                  %v810 = vld [vmem:[%s766 + $0x150] sm:$0xff]
                  %811 = vst [vmem:[%s767 + $0xa8] sm:$0xff] %v810
                  %v812 = vld [vmem:[%s766 + $0x160] sm:$0xff]
                  %813 = vst [vmem:[%s767 + $0xb0] sm:$0xff] %v812
                  %v814 = vld [vmem:[%s766 + $0x170] sm:$0xff]
                  %815 = vst [vmem:[%s767 + $0xb8] sm:$0xff] %v814
                  %v816 = vld [vmem:[%s766 + $0x180] sm:$0xff]
                  %817 = vst [vmem:[%s767 + $0xc0] sm:$0xff] %v816
                  %v818 = vld [vmem:[%s766 + $0x190] sm:$0xff]
                  %819 = vst [vmem:[%s767 + $0xc8] sm:$0xff] %v818
                  %v820 = vld [vmem:[%s766 + $0x1a0] sm:$0xff]
                  %821 = vst [vmem:[%s767 + $0xd0] sm:$0xff] %v820
                  %v822 = vld [vmem:[%s766 + $0x1b0] sm:$0xff]
                  %823 = vst [vmem:[%s767 + $0xd8] sm:$0xff] %v822
                  %v824 = vld [vmem:[%s766 + $0x1c0] sm:$0xff]
                  %825 = vst [vmem:[%s767 + $0xe0] sm:$0xff] %v824
                  %v826 = vld [vmem:[%s766 + $0x1d0] sm:$0xff]
                  %827 = vst [vmem:[%s767 + $0xe8] sm:$0xff] %v826
                  %v828 = vld [vmem:[%s766 + $0x1e0] sm:$0xff]
                  %829 = vst [vmem:[%s767 + $0xf0] sm:$0xff] %v828
                  %v830 = vld [vmem:[%s766 + $0x1f0] sm:$0xff]
                  %831 = vst [vmem:[%s767 + $0xf8] sm:$0xff] %v830
                  %v832 = vld [vmem:[%s766 + $0x200] sm:$0xff]
                  %833 = vst [vmem:[%s767 + $0x100] sm:$0xff] %v832
                  %v834 = vld [vmem:[%s766 + $0x210] sm:$0xff]
                  %835 = vst [vmem:[%s767 + $0x108] sm:$0xff] %v834
                  %v836 = vld [vmem:[%s766 + $0x220] sm:$0xff]
                  %837 = vst [vmem:[%s767 + $0x110] sm:$0xff] %v836
                  %v838 = vld [vmem:[%s766 + $0x230] sm:$0xff]
                  %839 = vst [vmem:[%s767 + $0x118] sm:$0xff] %v838
                  %v840 = vld [vmem:[%s766 + $0x240] sm:$0xff]
                  %841 = vst [vmem:[%s767 + $0x120] sm:$0xff] %v840
                  %v842 = vld [vmem:[%s766 + $0x250] sm:$0xff]
                  %843 = vst [vmem:[%s767 + $0x128] sm:$0xff] %v842
                  %v844 = vld [vmem:[%s766 + $0x260] sm:$0xff]
                  %845 = vst [vmem:[%s767 + $0x130] sm:$0xff] %v844
                  %v846 = vld [vmem:[%s766 + $0x270] sm:$0xff]
                  %847 = vst [vmem:[%s767 + $0x138] sm:$0xff] %v846
                  %v848 = vld [vmem:[%s766 + $0x280] sm:$0xff]
                  %849 = vst [vmem:[%s767 + $0x140] sm:$0xff] %v848
                  %v850 = vld [vmem:[%s766 + $0x290] sm:$0xff]
                  %851 = vst [vmem:[%s767 + $0x148] sm:$0xff] %v850
                  %v852 = vld [vmem:[%s766 + $0x2a0] sm:$0xff]
                  %853 = vst [vmem:[%s767 + $0x150] sm:$0xff] %v852
                  %v854 = vld [vmem:[%s766 + $0x2b0] sm:$0xff]
                  %855 = vst [vmem:[%s767 + $0x158] sm:$0xff] %v854
                  %v856 = vld [vmem:[%s766 + $0x2c0] sm:$0xff]
                  %857 = vst [vmem:[%s767 + $0x160] sm:$0xff] %v856
                  %v858 = vld [vmem:[%s766 + $0x2d0] sm:$0xff]
                  %859 = vst [vmem:[%s767 + $0x168] sm:$0xff] %v858
                  %v860 = vld [vmem:[%s766 + $0x2e0] sm:$0xff]
                  %861 = vst [vmem:[%s767 + $0x170] sm:$0xff] %v860
                  %v862 = vld [vmem:[%s766 + $0x2f0] sm:$0xff]
                  %863 = vst [vmem:[%s767 + $0x178] sm:$0xff] %v862
                  %v864 = vld [vmem:[%s766 + $0x300] sm:$0xff]
                  %865 = vst [vmem:[%s767 + $0x180] sm:$0xff] %v864
                  %v866 = vld [vmem:[%s766 + $0x310] sm:$0xff]
                  %867 = vst [vmem:[%s767 + $0x188] sm:$0xff] %v866
                  %v868 = vld [vmem:[%s766 + $0x320] sm:$0xff]
                  %869 = vst [vmem:[%s767 + $0x190] sm:$0xff] %v868
                  %v870 = vld [vmem:[%s766 + $0x330] sm:$0xff]
                  %871 = vst [vmem:[%s767 + $0x198] sm:$0xff] %v870
                  %v872 = vld [vmem:[%s766 + $0x340] sm:$0xff]
                  %873 = vst [vmem:[%s767 + $0x1a0] sm:$0xff] %v872
                  %v874 = vld [vmem:[%s766 + $0x350] sm:$0xff]
                  %875 = vst [vmem:[%s767 + $0x1a8] sm:$0xff] %v874
                  %v876 = vld [vmem:[%s766 + $0x360] sm:$0xff]
                  %877 = vst [vmem:[%s767 + $0x1b0] sm:$0xff] %v876
                  %v878 = vld [vmem:[%s766 + $0x370] sm:$0xff]
                  %879 = vst [vmem:[%s767 + $0x1b8] sm:$0xff] %v878
                  %v880 = vld [vmem:[%s766 + $0x380] sm:$0xff]
                  %881 = vst [vmem:[%s767 + $0x1c0] sm:$0xff] %v880
                  %v882 = vld [vmem:[%s766 + $0x390] sm:$0xff]
                  %883 = vst [vmem:[%s767 + $0x1c8] sm:$0xff] %v882
                  %v884 = vld [vmem:[%s766 + $0x3a0] sm:$0xff]
                  %885 = vst [vmem:[%s767 + $0x1d0] sm:$0xff] %v884
                  %v886 = vld [vmem:[%s766 + $0x3b0] sm:$0xff]
                  %887 = vst [vmem:[%s767 + $0x1d8] sm:$0xff] %v886
                  %v888 = vld [vmem:[%s766 + $0x3c0] sm:$0xff]
                  %889 = vst [vmem:[%s767 + $0x1e0] sm:$0xff] %v888
                  %v890 = vld [vmem:[%s766 + $0x3d0] sm:$0xff]
                  %891 = vst [vmem:[%s767 + $0x1e8] sm:$0xff] %v890
                  %v892 = vld [vmem:[%s766 + $0x3e0] sm:$0xff]
                  %893 = vst [vmem:[%s767 + $0x1f0] sm:$0xff] %v892
                  %v894 = vld [vmem:[%s766 + $0x3f0] sm:$0xff]
                  %895 = vst [vmem:[%s767 + $0x1f8] sm:$0xff] %v894
                  %v896 = vld [vmem:[%s766 + $0x400] sm:$0xff]
                  %897 = vst [vmem:[%s767 + $0x200] sm:$0xff] %v896
                  %v898 = vld [vmem:[%s766 + $0x410] sm:$0xff]
                  %899 = vst [vmem:[%s767 + $0x208] sm:$0xff] %v898
                  %v900 = vld [vmem:[%s766 + $0x420] sm:$0xff]
                  %901 = vst [vmem:[%s767 + $0x210] sm:$0xff] %v900
                  %v902 = vld [vmem:[%s766 + $0x430] sm:$0xff]
                  %903 = vst [vmem:[%s767 + $0x218] sm:$0xff] %v902
                  %v904 = vld [vmem:[%s766 + $0x440] sm:$0xff]
                  %905 = vst [vmem:[%s767 + $0x220] sm:$0xff] %v904
                  %v906 = vld [vmem:[%s766 + $0x450] sm:$0xff]
                  %907 = vst [vmem:[%s767 + $0x228] sm:$0xff] %v906
                  %v908 = vld [vmem:[%s766 + $0x460] sm:$0xff]
                  %909 = vst [vmem:[%s767 + $0x230] sm:$0xff] %v908
                  %v910 = vld [vmem:[%s766 + $0x470] sm:$0xff]
                  %911 = vst [vmem:[%s767 + $0x238] sm:$0xff] %v910
                  %v912 = vld [vmem:[%s766 + $0x480] sm:$0xff]
                  %913 = vst [vmem:[%s767 + $0x240] sm:$0xff] %v912
                  %v914 = vld [vmem:[%s766 + $0x490] sm:$0xff]
                  %915 = vst [vmem:[%s767 + $0x248] sm:$0xff] %v914
                  %v916 = vld [vmem:[%s766 + $0x4a0] sm:$0xff]
                  %917 = vst [vmem:[%s767 + $0x250] sm:$0xff] %v916
                  %v918 = vld [vmem:[%s766 + $0x4b0] sm:$0xff]
                  %919 = vst [vmem:[%s767 + $0x258] sm:$0xff] %v918
                  %v920 = vld [vmem:[%s766 + $0x4c0] sm:$0xff]
                  %921 = vst [vmem:[%s767 + $0x260] sm:$0xff] %v920
                  %v922 = vld [vmem:[%s766 + $0x4d0] sm:$0xff]
                  %923 = vst [vmem:[%s767 + $0x268] sm:$0xff] %v922
                  %v924 = vld [vmem:[%s766 + $0x4e0] sm:$0xff]
                  %925 = vst [vmem:[%s767 + $0x270] sm:$0xff] %v924
                  %v926 = vld [vmem:[%s766 + $0x4f0] sm:$0xff]
                  %927 = vst [vmem:[%s767 + $0x278] sm:$0xff] %v926
                  %v928 = vld [vmem:[%s766 + $0x500] sm:$0xff]
                  %929 = vst [vmem:[%s767 + $0x280] sm:$0xff] %v928
                  %v930 = vld [vmem:[%s766 + $0x510] sm:$0xff]
                  %931 = vst [vmem:[%s767 + $0x288] sm:$0xff] %v930
                  %v932 = vld [vmem:[%s766 + $0x520] sm:$0xff]
                  %933 = vst [vmem:[%s767 + $0x290] sm:$0xff] %v932
                  %v934 = vld [vmem:[%s766 + $0x530] sm:$0xff]
                  %935 = vst [vmem:[%s767 + $0x298] sm:$0xff] %v934
                  %v936 = vld [vmem:[%s766 + $0x540] sm:$0xff]
                  %937 = vst [vmem:[%s767 + $0x2a0] sm:$0xff] %v936
                  %v938 = vld [vmem:[%s766 + $0x550] sm:$0xff]
                  %939 = vst [vmem:[%s767 + $0x2a8] sm:$0xff] %v938
                  %v940 = vld [vmem:[%s766 + $0x560] sm:$0xff]
                  %941 = vst [vmem:[%s767 + $0x2b0] sm:$0xff] %v940
                  %v942 = vld [vmem:[%s766 + $0x570] sm:$0xff]
                  %943 = vst [vmem:[%s767 + $0x2b8] sm:$0xff] %v942
                  %v944 = vld [vmem:[%s766 + $0x580] sm:$0xff]
                  %945 = vst [vmem:[%s767 + $0x2c0] sm:$0xff] %v944
                  %v946 = vld [vmem:[%s766 + $0x590] sm:$0xff]
                  %947 = vst [vmem:[%s767 + $0x2c8] sm:$0xff] %v946
                  %v948 = vld [vmem:[%s766 + $0x5a0] sm:$0xff]
                  %949 = vst [vmem:[%s767 + $0x2d0] sm:$0xff] %v948
                  %v950 = vld [vmem:[%s766 + $0x5b0] sm:$0xff]
                  %951 = vst [vmem:[%s767 + $0x2d8] sm:$0xff] %v950
                  %v952 = vld [vmem:[%s766 + $0x5c0] sm:$0xff]
                  %953 = vst [vmem:[%s767 + $0x2e0] sm:$0xff] %v952
                  %v954 = vld [vmem:[%s766 + $0x5d0] sm:$0xff]
                  %955 = vst [vmem:[%s767 + $0x2e8] sm:$0xff] %v954
                  %v956 = vld [vmem:[%s766 + $0x5e0] sm:$0xff]
                  %957 = vst [vmem:[%s767 + $0x2f0] sm:$0xff] %v956
                  %v958 = vld [vmem:[%s766 + $0x5f0] sm:$0xff]
                  %959 = vst [vmem:[%s767 + $0x2f8] sm:$0xff] %v958
                  %v960 = vld [vmem:[%s766 + $0x600] sm:$0xff]
                  %961 = vst [vmem:[%s767 + $0x300] sm:$0xff] %v960
                  %v962 = vld [vmem:[%s766 + $0x610] sm:$0xff]
                  %963 = vst [vmem:[%s767 + $0x308] sm:$0xff] %v962
                  %v964 = vld [vmem:[%s766 + $0x620] sm:$0xff]
                  %965 = vst [vmem:[%s767 + $0x310] sm:$0xff] %v964
                  %v966 = vld [vmem:[%s766 + $0x630] sm:$0xff]
                  %967 = vst [vmem:[%s767 + $0x318] sm:$0xff] %v966
                  %v968 = vld [vmem:[%s766 + $0x640] sm:$0xff]
                  %969 = vst [vmem:[%s767 + $0x320] sm:$0xff] %v968
                  %v970 = vld [vmem:[%s766 + $0x650] sm:$0xff]
                  %971 = vst [vmem:[%s767 + $0x328] sm:$0xff] %v970
                  %v972 = vld [vmem:[%s766 + $0x660] sm:$0xff]
                  %973 = vst [vmem:[%s767 + $0x330] sm:$0xff] %v972
                  %v974 = vld [vmem:[%s766 + $0x670] sm:$0xff]
                  %975 = vst [vmem:[%s767 + $0x338] sm:$0xff] %v974
                  %v976 = vld [vmem:[%s766 + $0x680] sm:$0xff]
                  %977 = vst [vmem:[%s767 + $0x340] sm:$0xff] %v976
                  %v978 = vld [vmem:[%s766 + $0x690] sm:$0xff]
                  %979 = vst [vmem:[%s767 + $0x348] sm:$0xff] %v978
                  %v980 = vld [vmem:[%s766 + $0x6a0] sm:$0xff]
                  %981 = vst [vmem:[%s767 + $0x350] sm:$0xff] %v980
                  %v982 = vld [vmem:[%s766 + $0x6b0] sm:$0xff]
                  %983 = vst [vmem:[%s767 + $0x358] sm:$0xff] %v982
                  %v984 = vld [vmem:[%s766 + $0x6c0] sm:$0xff]
                  %985 = vst [vmem:[%s767 + $0x360] sm:$0xff] %v984
                  %v986 = vld [vmem:[%s766 + $0x6d0] sm:$0xff]
                  %987 = vst [vmem:[%s767 + $0x368] sm:$0xff] %v986
                  %v988 = vld [vmem:[%s766 + $0x6e0] sm:$0xff]
                  %989 = vst [vmem:[%s767 + $0x370] sm:$0xff] %v988
                  %v990 = vld [vmem:[%s766 + $0x6f0] sm:$0xff]
                  %991 = vst [vmem:[%s767 + $0x378] sm:$0xff] %v990
                  %v992 = vld [vmem:[%s766 + $0x700] sm:$0xff]
                  %993 = vst [vmem:[%s767 + $0x380] sm:$0xff] %v992
                  %v994 = vld [vmem:[%s766 + $0x710] sm:$0xff]
                  %995 = vst [vmem:[%s767 + $0x388] sm:$0xff] %v994
                  %v996 = vld [vmem:[%s766 + $0x720] sm:$0xff]
                  %997 = vst [vmem:[%s767 + $0x390] sm:$0xff] %v996
                  %v998 = vld [vmem:[%s766 + $0x730] sm:$0xff]
                  %999 = vst [vmem:[%s767 + $0x398] sm:$0xff] %v998
                  %v1000 = vld [vmem:[%s766 + $0x740] sm:$0xff]
                  %1001 = vst [vmem:[%s767 + $0x3a0] sm:$0xff] %v1000
                  %v1002 = vld [vmem:[%s766 + $0x750] sm:$0xff]
                  %1003 = vst [vmem:[%s767 + $0x3a8] sm:$0xff] %v1002
                  %v1004 = vld [vmem:[%s766 + $0x760] sm:$0xff]
                  %1005 = vst [vmem:[%s767 + $0x3b0] sm:$0xff] %v1004
                  %v1006 = vld [vmem:[%s766 + $0x770] sm:$0xff]
                  %1007 = vst [vmem:[%s767 + $0x3b8] sm:$0xff] %v1006
                  %v1008 = vld [vmem:[%s766 + $0x780] sm:$0xff]
                  %1009 = vst [vmem:[%s767 + $0x3c0] sm:$0xff] %v1008
                  %v1010 = vld [vmem:[%s766 + $0x790] sm:$0xff]
                  %1011 = vst [vmem:[%s767 + $0x3c8] sm:$0xff] %v1010
                  %v1012 = vld [vmem:[%s766 + $0x7a0] sm:$0xff]
                  %1013 = vst [vmem:[%s767 + $0x3d0] sm:$0xff] %v1012
                  %v1014 = vld [vmem:[%s766 + $0x7b0] sm:$0xff]
                  %1015 = vst [vmem:[%s767 + $0x3d8] sm:$0xff] %v1014
                  %v1016 = vld [vmem:[%s766 + $0x7c0] sm:$0xff]
                  %1017 = vst [vmem:[%s767 + $0x3e0] sm:$0xff] %v1016
                  %v1018 = vld [vmem:[%s766 + $0x7d0] sm:$0xff]
                  %1019 = vst [vmem:[%s767 + $0x3e8] sm:$0xff] %v1018
                  %v1020 = vld [vmem:[%s766 + $0x7e0] sm:$0xff]
                  %1021 = vst [vmem:[%s767 + $0x3f0] sm:$0xff] %v1020
                  %v1022 = vld [vmem:[%s766 + $0x7f0] sm:$0xff]
                  %1023 = vst [vmem:[%s767 + $0x3f8] sm:$0xff] %v1022
                  %v1024 = vld [vmem:[%s766 + $0x800] sm:$0xff]
                  %1025 = vst [vmem:[%s767 + $0x400] sm:$0xff] %v1024
                  %v1026 = vld [vmem:[%s766 + $0x810] sm:$0xff]
                  %1027 = vst [vmem:[%s767 + $0x408] sm:$0xff] %v1026
                  %v1028 = vld [vmem:[%s766 + $0x820] sm:$0xff]
                  %1029 = vst [vmem:[%s767 + $0x410] sm:$0xff] %v1028
                  %v1030 = vld [vmem:[%s766 + $0x830] sm:$0xff]
                  %1031 = vst [vmem:[%s767 + $0x418] sm:$0xff] %v1030
                  %v1032 = vld [vmem:[%s766 + $0x840] sm:$0xff]
                  %1033 = vst [vmem:[%s767 + $0x420] sm:$0xff] %v1032
                  %v1034 = vld [vmem:[%s766 + $0x850] sm:$0xff]
                  %1035 = vst [vmem:[%s767 + $0x428] sm:$0xff] %v1034
                  %v1036 = vld [vmem:[%s766 + $0x860] sm:$0xff]
                  %1037 = vst [vmem:[%s767 + $0x430] sm:$0xff] %v1036
                  %v1038 = vld [vmem:[%s766 + $0x870] sm:$0xff]
                  %1039 = vst [vmem:[%s767 + $0x438] sm:$0xff] %v1038
                  %v1040 = vld [vmem:[%s766 + $0x880] sm:$0xff]
                  %1041 = vst [vmem:[%s767 + $0x440] sm:$0xff] %v1040
                  %v1042 = vld [vmem:[%s766 + $0x890] sm:$0xff]
                  %1043 = vst [vmem:[%s767 + $0x448] sm:$0xff] %v1042
                  %v1044 = vld [vmem:[%s766 + $0x8a0] sm:$0xff]
                  %1045 = vst [vmem:[%s767 + $0x450] sm:$0xff] %v1044
                  %v1046 = vld [vmem:[%s766 + $0x8b0] sm:$0xff]
                  %1047 = vst [vmem:[%s767 + $0x458] sm:$0xff] %v1046
                  %v1048 = vld [vmem:[%s766 + $0x8c0] sm:$0xff]
                  %1049 = vst [vmem:[%s767 + $0x460] sm:$0xff] %v1048
                  %v1050 = vld [vmem:[%s766 + $0x8d0] sm:$0xff]
                  %1051 = vst [vmem:[%s767 + $0x468] sm:$0xff] %v1050
                  %v1052 = vld [vmem:[%s766 + $0x8e0] sm:$0xff]
                  %1053 = vst [vmem:[%s767 + $0x470] sm:$0xff] %v1052
                  %v1054 = vld [vmem:[%s766 + $0x8f0] sm:$0xff]
                  %1055 = vst [vmem:[%s767 + $0x478] sm:$0xff] %v1054
                  %v1056 = vld [vmem:[%s766 + $0x900] sm:$0xff]
                  %1057 = vst [vmem:[%s767 + $0x480] sm:$0xff] %v1056
                  %v1058 = vld [vmem:[%s766 + $0x910] sm:$0xff]
                  %1059 = vst [vmem:[%s767 + $0x488] sm:$0xff] %v1058
                  %v1060 = vld [vmem:[%s766 + $0x920] sm:$0xff]
                  %1061 = vst [vmem:[%s767 + $0x490] sm:$0xff] %v1060
                  %v1062 = vld [vmem:[%s766 + $0x930] sm:$0xff]
                  %1063 = vst [vmem:[%s767 + $0x498] sm:$0xff] %v1062
                  %v1064 = vld [vmem:[%s766 + $0x940] sm:$0xff]
                  %1065 = vst [vmem:[%s767 + $0x4a0] sm:$0xff] %v1064
                  %v1066 = vld [vmem:[%s766 + $0x950] sm:$0xff]
                  %1067 = vst [vmem:[%s767 + $0x4a8] sm:$0xff] %v1066
                  %v1068 = vld [vmem:[%s766 + $0x960] sm:$0xff]
                  %1069 = vst [vmem:[%s767 + $0x4b0] sm:$0xff] %v1068
                  %v1070 = vld [vmem:[%s766 + $0x970] sm:$0xff]
                  %1071 = vst [vmem:[%s767 + $0x4b8] sm:$0xff] %v1070
                  %v1072 = vld [vmem:[%s766 + $0x980] sm:$0xff]
                  %1073 = vst [vmem:[%s767 + $0x4c0] sm:$0xff] %v1072
                  %v1074 = vld [vmem:[%s766 + $0x990] sm:$0xff]
                  %1075 = vst [vmem:[%s767 + $0x4c8] sm:$0xff] %v1074
                  %v1076 = vld [vmem:[%s766 + $0x9a0] sm:$0xff]
                  %1077 = vst [vmem:[%s767 + $0x4d0] sm:$0xff] %v1076
                  %v1078 = vld [vmem:[%s766 + $0x9b0] sm:$0xff]
                  %1079 = vst [vmem:[%s767 + $0x4d8] sm:$0xff] %v1078
                  %v1080 = vld [vmem:[%s766 + $0x9c0] sm:$0xff]
                  %1081 = vst [vmem:[%s767 + $0x4e0] sm:$0xff] %v1080
                  %v1082 = vld [vmem:[%s766 + $0x9d0] sm:$0xff]
                  %1083 = vst [vmem:[%s767 + $0x4e8] sm:$0xff] %v1082
                  %v1084 = vld [vmem:[%s766 + $0x9e0] sm:$0xff]
                  %1085 = vst [vmem:[%s767 + $0x4f0] sm:$0xff] %v1084
                  %v1086 = vld [vmem:[%s766 + $0x9f0] sm:$0xff]
                  %1087 = vst [vmem:[%s767 + $0x4f8] sm:$0xff] %v1086
                  %v1088 = vld [vmem:[%s766 + $0xa00] sm:$0xff]
                  %1089 = vst [vmem:[%s767 + $0x500] sm:$0xff] %v1088
                  %v1090 = vld [vmem:[%s766 + $0xa10] sm:$0xff]
                  %1091 = vst [vmem:[%s767 + $0x508] sm:$0xff] %v1090
                  %v1092 = vld [vmem:[%s766 + $0xa20] sm:$0xff]
                  %1093 = vst [vmem:[%s767 + $0x510] sm:$0xff] %v1092
                  %v1094 = vld [vmem:[%s766 + $0xa30] sm:$0xff]
                  %1095 = vst [vmem:[%s767 + $0x518] sm:$0xff] %v1094
                  %v1096 = vld [vmem:[%s766 + $0xa40] sm:$0xff]
                  %1097 = vst [vmem:[%s767 + $0x520] sm:$0xff] %v1096
                  %v1098 = vld [vmem:[%s766 + $0xa50] sm:$0xff]
                  %1099 = vst [vmem:[%s767 + $0x528] sm:$0xff] %v1098
                  %v1100 = vld [vmem:[%s766 + $0xa60] sm:$0xff]
                  %1101 = vst [vmem:[%s767 + $0x530] sm:$0xff] %v1100
                  %v1102 = vld [vmem:[%s766 + $0xa70] sm:$0xff]
                  %1103 = vst [vmem:[%s767 + $0x538] sm:$0xff] %v1102
                  %v1104 = vld [vmem:[%s766 + $0xa80] sm:$0xff]
                  %1105 = vst [vmem:[%s767 + $0x540] sm:$0xff] %v1104
                  %v1106 = vld [vmem:[%s766 + $0xa90] sm:$0xff]
                  %1107 = vst [vmem:[%s767 + $0x548] sm:$0xff] %v1106
                  %v1108 = vld [vmem:[%s766 + $0xaa0] sm:$0xff]
                  %1109 = vst [vmem:[%s767 + $0x550] sm:$0xff] %v1108
                  %v1110 = vld [vmem:[%s766 + $0xab0] sm:$0xff]
                  %1111 = vst [vmem:[%s767 + $0x558] sm:$0xff] %v1110
                  %v1112 = vld [vmem:[%s766 + $0xac0] sm:$0xff]
                  %1113 = vst [vmem:[%s767 + $0x560] sm:$0xff] %v1112
                  %v1114 = vld [vmem:[%s766 + $0xad0] sm:$0xff]
                  %1115 = vst [vmem:[%s767 + $0x568] sm:$0xff] %v1114
                  %v1116 = vld [vmem:[%s766 + $0xae0] sm:$0xff]
                  %1117 = vst [vmem:[%s767 + $0x570] sm:$0xff] %v1116
                  %v1118 = vld [vmem:[%s766 + $0xaf0] sm:$0xff]
                  %1119 = vst [vmem:[%s767 + $0x578] sm:$0xff] %v1118
                  %v1120 = vld [vmem:[%s766 + $0xb00] sm:$0xff]
                  %1121 = vst [vmem:[%s767 + $0x580] sm:$0xff] %v1120
                  %v1122 = vld [vmem:[%s766 + $0xb10] sm:$0xff]
                  %1123 = vst [vmem:[%s767 + $0x588] sm:$0xff] %v1122
                  %v1124 = vld [vmem:[%s766 + $0xb20] sm:$0xff]
                  %1125 = vst [vmem:[%s767 + $0x590] sm:$0xff] %v1124
                  %v1126 = vld [vmem:[%s766 + $0xb30] sm:$0xff]
                  %1127 = vst [vmem:[%s767 + $0x598] sm:$0xff] %v1126
                  %v1128 = vld [vmem:[%s766 + $0xb40] sm:$0xff]
                  %1129 = vst [vmem:[%s767 + $0x5a0] sm:$0xff] %v1128
                  %v1130 = vld [vmem:[%s766 + $0xb50] sm:$0xff]
                  %1131 = vst [vmem:[%s767 + $0x5a8] sm:$0xff] %v1130
                  %v1132 = vld [vmem:[%s766 + $0xb60] sm:$0xff]
                  %1133 = vst [vmem:[%s767 + $0x5b0] sm:$0xff] %v1132
                  %v1134 = vld [vmem:[%s766 + $0xb70] sm:$0xff]
                  %1135 = vst [vmem:[%s767 + $0x5b8] sm:$0xff] %v1134
                  %v1136 = vld [vmem:[%s766 + $0xb80] sm:$0xff]
                  %1137 = vst [vmem:[%s767 + $0x5c0] sm:$0xff] %v1136
                  %v1138 = vld [vmem:[%s766 + $0xb90] sm:$0xff]
                  %1139 = vst [vmem:[%s767 + $0x5c8] sm:$0xff] %v1138
                  %v1140 = vld [vmem:[%s766 + $0xba0] sm:$0xff]
                  %1141 = vst [vmem:[%s767 + $0x5d0] sm:$0xff] %v1140
                  %v1142 = vld [vmem:[%s766 + $0xbb0] sm:$0xff]
                  %1143 = vst [vmem:[%s767 + $0x5d8] sm:$0xff] %v1142
                  %v1144 = vld [vmem:[%s766 + $0xbc0] sm:$0xff]
                  %1145 = vst [vmem:[%s767 + $0x5e0] sm:$0xff] %v1144
                  %v1146 = vld [vmem:[%s766 + $0xbd0] sm:$0xff]
                  %1147 = vst [vmem:[%s767 + $0x5e8] sm:$0xff] %v1146
                  %v1148 = vld [vmem:[%s766 + $0xbe0] sm:$0xff]
                  %1149 = vst [vmem:[%s767 + $0x5f0] sm:$0xff] %v1148
                  %v1150 = vld [vmem:[%s766 + $0xbf0] sm:$0xff]
                  %1151 = vst [vmem:[%s767 + $0x5f8] sm:$0xff] %v1150
                  %v1152 = vld [vmem:[%s766 + $0xc00] sm:$0xff]
                  %1153 = vst [vmem:[%s767 + $0x600] sm:$0xff] %v1152
                  %v1154 = vld [vmem:[%s766 + $0xc10] sm:$0xff]
                  %1155 = vst [vmem:[%s767 + $0x608] sm:$0xff] %v1154
                  %v1156 = vld [vmem:[%s766 + $0xc20] sm:$0xff]
                  %1157 = vst [vmem:[%s767 + $0x610] sm:$0xff] %v1156
                  %v1158 = vld [vmem:[%s766 + $0xc30] sm:$0xff]
                  %1159 = vst [vmem:[%s767 + $0x618] sm:$0xff] %v1158
                  %v1160 = vld [vmem:[%s766 + $0xc40] sm:$0xff]
                  %1161 = vst [vmem:[%s767 + $0x620] sm:$0xff] %v1160
                  %v1162 = vld [vmem:[%s766 + $0xc50] sm:$0xff]
                  %1163 = vst [vmem:[%s767 + $0x628] sm:$0xff] %v1162
                  %v1164 = vld [vmem:[%s766 + $0xc60] sm:$0xff]
                  %1165 = vst [vmem:[%s767 + $0x630] sm:$0xff] %v1164
                  %v1166 = vld [vmem:[%s766 + $0xc70] sm:$0xff]
                  %1167 = vst [vmem:[%s767 + $0x638] sm:$0xff] %v1166
                  %v1168 = vld [vmem:[%s766 + $0xc80] sm:$0xff]
                  %1169 = vst [vmem:[%s767 + $0x640] sm:$0xff] %v1168
                  %v1170 = vld [vmem:[%s766 + $0xc90] sm:$0xff]
                  %1171 = vst [vmem:[%s767 + $0x648] sm:$0xff] %v1170
                  %v1172 = vld [vmem:[%s766 + $0xca0] sm:$0xff]
                  %1173 = vst [vmem:[%s767 + $0x650] sm:$0xff] %v1172
                  %v1174 = vld [vmem:[%s766 + $0xcb0] sm:$0xff]
                  %1175 = vst [vmem:[%s767 + $0x658] sm:$0xff] %v1174
                  %v1176 = vld [vmem:[%s766 + $0xcc0] sm:$0xff]
                  %1177 = vst [vmem:[%s767 + $0x660] sm:$0xff] %v1176
                  %v1178 = vld [vmem:[%s766 + $0xcd0] sm:$0xff]
                  %1179 = vst [vmem:[%s767 + $0x668] sm:$0xff] %v1178
                  %v1180 = vld [vmem:[%s766 + $0xce0] sm:$0xff]
                  %1181 = vst [vmem:[%s767 + $0x670] sm:$0xff] %v1180
                  %v1182 = vld [vmem:[%s766 + $0xcf0] sm:$0xff]
                  %1183 = vst [vmem:[%s767 + $0x678] sm:$0xff] %v1182
                  %v1184 = vld [vmem:[%s766 + $0xd00] sm:$0xff]
                  %1185 = vst [vmem:[%s767 + $0x680] sm:$0xff] %v1184
                  %v1186 = vld [vmem:[%s766 + $0xd10] sm:$0xff]
                  %1187 = vst [vmem:[%s767 + $0x688] sm:$0xff] %v1186
                  %v1188 = vld [vmem:[%s766 + $0xd20] sm:$0xff]
                  %1189 = vst [vmem:[%s767 + $0x690] sm:$0xff] %v1188
                  %v1190 = vld [vmem:[%s766 + $0xd30] sm:$0xff]
                  %1191 = vst [vmem:[%s767 + $0x698] sm:$0xff] %v1190
                  %v1192 = vld [vmem:[%s766 + $0xd40] sm:$0xff]
                  %1193 = vst [vmem:[%s767 + $0x6a0] sm:$0xff] %v1192
                  %v1194 = vld [vmem:[%s766 + $0xd50] sm:$0xff]
                  %1195 = vst [vmem:[%s767 + $0x6a8] sm:$0xff] %v1194
                  %v1196 = vld [vmem:[%s766 + $0xd60] sm:$0xff]
                  %1197 = vst [vmem:[%s767 + $0x6b0] sm:$0xff] %v1196
                  %v1198 = vld [vmem:[%s766 + $0xd70] sm:$0xff]
                  %1199 = vst [vmem:[%s767 + $0x6b8] sm:$0xff] %v1198
                  %v1200 = vld [vmem:[%s766 + $0xd80] sm:$0xff]
                  %1201 = vst [vmem:[%s767 + $0x6c0] sm:$0xff] %v1200
                  %v1202 = vld [vmem:[%s766 + $0xd90] sm:$0xff]
                  %1203 = vst [vmem:[%s767 + $0x6c8] sm:$0xff] %v1202
                  %v1204 = vld [vmem:[%s766 + $0xda0] sm:$0xff]
                  %1205 = vst [vmem:[%s767 + $0x6d0] sm:$0xff] %v1204
                  %v1206 = vld [vmem:[%s766 + $0xdb0] sm:$0xff]
                  %1207 = vst [vmem:[%s767 + $0x6d8] sm:$0xff] %v1206
                  %v1208 = vld [vmem:[%s766 + $0xdc0] sm:$0xff]
                  %1209 = vst [vmem:[%s767 + $0x6e0] sm:$0xff] %v1208
                  %v1210 = vld [vmem:[%s766 + $0xdd0] sm:$0xff]
                  %1211 = vst [vmem:[%s767 + $0x6e8] sm:$0xff] %v1210
                  %v1212 = vld [vmem:[%s766 + $0xde0] sm:$0xff]
                  %1213 = vst [vmem:[%s767 + $0x6f0] sm:$0xff] %v1212
                  %v1214 = vld [vmem:[%s766 + $0xdf0] sm:$0xff]
                  %1215 = vst [vmem:[%s767 + $0x6f8] sm:$0xff] %v1214
                  %v1216 = vld [vmem:[%s766 + $0xe00] sm:$0xff]
                  %1217 = vst [vmem:[%s767 + $0x700] sm:$0xff] %v1216
                  %v1218 = vld [vmem:[%s766 + $0xe10] sm:$0xff]
                  %1219 = vst [vmem:[%s767 + $0x708] sm:$0xff] %v1218
                  %v1220 = vld [vmem:[%s766 + $0xe20] sm:$0xff]
                  %1221 = vst [vmem:[%s767 + $0x710] sm:$0xff] %v1220
                  %v1222 = vld [vmem:[%s766 + $0xe30] sm:$0xff]
                  %1223 = vst [vmem:[%s767 + $0x718] sm:$0xff] %v1222
                  %v1224 = vld [vmem:[%s766 + $0xe40] sm:$0xff]
                  %1225 = vst [vmem:[%s767 + $0x720] sm:$0xff] %v1224
                  %v1226 = vld [vmem:[%s766 + $0xe50] sm:$0xff]
                  %1227 = vst [vmem:[%s767 + $0x728] sm:$0xff] %v1226
                  %v1228 = vld [vmem:[%s766 + $0xe60] sm:$0xff]
                  %1229 = vst [vmem:[%s767 + $0x730] sm:$0xff] %v1228
                  %v1230 = vld [vmem:[%s766 + $0xe70] sm:$0xff]
                  %1231 = vst [vmem:[%s767 + $0x738] sm:$0xff] %v1230
                  %v1232 = vld [vmem:[%s766 + $0xe80] sm:$0xff]
                  %1233 = vst [vmem:[%s767 + $0x740] sm:$0xff] %v1232
                  %v1234 = vld [vmem:[%s766 + $0xe90] sm:$0xff]
                  %1235 = vst [vmem:[%s767 + $0x748] sm:$0xff] %v1234
                  %v1236 = vld [vmem:[%s766 + $0xea0] sm:$0xff]
                  %1237 = vst [vmem:[%s767 + $0x750] sm:$0xff] %v1236
                  %v1238 = vld [vmem:[%s766 + $0xeb0] sm:$0xff]
                  %1239 = vst [vmem:[%s767 + $0x758] sm:$0xff] %v1238
                  %v1240 = vld [vmem:[%s766 + $0xec0] sm:$0xff]
                  %1241 = vst [vmem:[%s767 + $0x760] sm:$0xff] %v1240
                  %v1242 = vld [vmem:[%s766 + $0xed0] sm:$0xff]
                  %1243 = vst [vmem:[%s767 + $0x768] sm:$0xff] %v1242
                  %v1244 = vld [vmem:[%s766 + $0xee0] sm:$0xff]
                  %1245 = vst [vmem:[%s767 + $0x770] sm:$0xff] %v1244
                  %v1246 = vld [vmem:[%s766 + $0xef0] sm:$0xff]
                  %1247 = vst [vmem:[%s767 + $0x778] sm:$0xff] %v1246
                  %v1248 = vld [vmem:[%s766 + $0xf00] sm:$0xff]
                  %1249 = vst [vmem:[%s767 + $0x780] sm:$0xff] %v1248
                  %v1250 = vld [vmem:[%s766 + $0xf10] sm:$0xff]
                  %1251 = vst [vmem:[%s767 + $0x788] sm:$0xff] %v1250
                  %v1252 = vld [vmem:[%s766 + $0xf20] sm:$0xff]
                  %1253 = vst [vmem:[%s767 + $0x790] sm:$0xff] %v1252
                  %v1254 = vld [vmem:[%s766 + $0xf30] sm:$0xff]
                  %1255 = vst [vmem:[%s767 + $0x798] sm:$0xff] %v1254
                  %v1256 = vld [vmem:[%s766 + $0xf40] sm:$0xff]
                  %1257 = vst [vmem:[%s767 + $0x7a0] sm:$0xff] %v1256
                  %v1258 = vld [vmem:[%s766 + $0xf50] sm:$0xff]
                  %1259 = vst [vmem:[%s767 + $0x7a8] sm:$0xff] %v1258
                  %v1260 = vld [vmem:[%s766 + $0xf60] sm:$0xff]
                  %1261 = vst [vmem:[%s767 + $0x7b0] sm:$0xff] %v1260
                  %v1262 = vld [vmem:[%s766 + $0xf70] sm:$0xff]
                  %1263 = vst [vmem:[%s767 + $0x7b8] sm:$0xff] %v1262
                  %v1264 = vld [vmem:[%s766 + $0xf80] sm:$0xff]
                  %1265 = vst [vmem:[%s767 + $0x7c0] sm:$0xff] %v1264
                  %v1266 = vld [vmem:[%s766 + $0xf90] sm:$0xff]
                  %1267 = vst [vmem:[%s767 + $0x7c8] sm:$0xff] %v1266
                  %v1268 = vld [vmem:[%s766 + $0xfa0] sm:$0xff]
                  %1269 = vst [vmem:[%s767 + $0x7d0] sm:$0xff] %v1268
                  %v1270 = vld [vmem:[%s766 + $0xfb0] sm:$0xff]
                  %1271 = vst [vmem:[%s767 + $0x7d8] sm:$0xff] %v1270
                  %v1272 = vld [vmem:[%s766 + $0xfc0] sm:$0xff]
                  %1273 = vst [vmem:[%s767 + $0x7e0] sm:$0xff] %v1272
                  %v1274 = vld [vmem:[%s766 + $0xfd0] sm:$0xff]
                  %1275 = vst [vmem:[%s767 + $0x7e8] sm:$0xff] %v1274
                  %v1276 = vld [vmem:[%s766 + $0xfe0] sm:$0xff]
                  %1277 = vst [vmem:[%s767 + $0x7f0] sm:$0xff] %v1276
                  %v1278 = vld [vmem:[%s766 + $0xff0] sm:$0xff]
                  %1279 = vst [vmem:[%s767 + $0x7f8] sm:$0xff] %v1278
                  %v1280 = vld [vmem:[%s766 + $0x1000] sm:$0xff]
                  %1281 = vst [vmem:[%s767 + $0x800] sm:$0xff] %v1280
                  %v1282 = vld [vmem:[%s766 + $0x1010] sm:$0xff]
                  %1283 = vst [vmem:[%s767 + $0x808] sm:$0xff] %v1282
                  %v1284 = vld [vmem:[%s766 + $0x1020] sm:$0xff]
                  %1285 = vst [vmem:[%s767 + $0x810] sm:$0xff] %v1284
                  %v1286 = vld [vmem:[%s766 + $0x1030] sm:$0xff]
                  %1287 = vst [vmem:[%s767 + $0x818] sm:$0xff] %v1286
                  %v1288 = vld [vmem:[%s766 + $0x1040] sm:$0xff]
                  %1289 = vst [vmem:[%s767 + $0x820] sm:$0xff] %v1288
                  %v1290 = vld [vmem:[%s766 + $0x1050] sm:$0xff]
                  %1291 = vst [vmem:[%s767 + $0x828] sm:$0xff] %v1290
                  %v1292 = vld [vmem:[%s766 + $0x1060] sm:$0xff]
                  %1293 = vst [vmem:[%s767 + $0x830] sm:$0xff] %v1292
                  %v1294 = vld [vmem:[%s766 + $0x1070] sm:$0xff]
                  %1295 = vst [vmem:[%s767 + $0x838] sm:$0xff] %v1294
                  %v1296 = vld [vmem:[%s766 + $0x1080] sm:$0xff]
                  %1297 = vst [vmem:[%s767 + $0x840] sm:$0xff] %v1296
                  %v1298 = vld [vmem:[%s766 + $0x1090] sm:$0xff]
                  %1299 = vst [vmem:[%s767 + $0x848] sm:$0xff] %v1298
                  %v1300 = vld [vmem:[%s766 + $0x10a0] sm:$0xff]
                  %1301 = vst [vmem:[%s767 + $0x850] sm:$0xff] %v1300
                  %v1302 = vld [vmem:[%s766 + $0x10b0] sm:$0xff]
                  %1303 = vst [vmem:[%s767 + $0x858] sm:$0xff] %v1302
                  %v1304 = vld [vmem:[%s766 + $0x10c0] sm:$0xff]
                  %1305 = vst [vmem:[%s767 + $0x860] sm:$0xff] %v1304
                  %v1306 = vld [vmem:[%s766 + $0x10d0] sm:$0xff]
                  %1307 = vst [vmem:[%s767 + $0x868] sm:$0xff] %v1306
                  %v1308 = vld [vmem:[%s766 + $0x10e0] sm:$0xff]
                  %1309 = vst [vmem:[%s767 + $0x870] sm:$0xff] %v1308
                  %v1310 = vld [vmem:[%s766 + $0x10f0] sm:$0xff]
                  %1311 = vst [vmem:[%s767 + $0x878] sm:$0xff] %v1310
                  %v1312 = vld [vmem:[%s766 + $0x1100] sm:$0xff]
                  %1313 = vst [vmem:[%s767 + $0x880] sm:$0xff] %v1312
                  %v1314 = vld [vmem:[%s766 + $0x1110] sm:$0xff]
                  %1315 = vst [vmem:[%s767 + $0x888] sm:$0xff] %v1314
                  %v1316 = vld [vmem:[%s766 + $0x1120] sm:$0xff]
                  %1317 = vst [vmem:[%s767 + $0x890] sm:$0xff] %v1316
                  %v1318 = vld [vmem:[%s766 + $0x1130] sm:$0xff]
                  %1319 = vst [vmem:[%s767 + $0x898] sm:$0xff] %v1318
                  %v1320 = vld [vmem:[%s766 + $0x1140] sm:$0xff]
                  %1321 = vst [vmem:[%s767 + $0x8a0] sm:$0xff] %v1320
                  %v1322 = vld [vmem:[%s766 + $0x1150] sm:$0xff]
                  %1323 = vst [vmem:[%s767 + $0x8a8] sm:$0xff] %v1322
                  %v1324 = vld [vmem:[%s766 + $0x1160] sm:$0xff]
                  %1325 = vst [vmem:[%s767 + $0x8b0] sm:$0xff] %v1324
                  %v1326 = vld [vmem:[%s766 + $0x1170] sm:$0xff]
                  %1327 = vst [vmem:[%s767 + $0x8b8] sm:$0xff] %v1326
                  %v1328 = vld [vmem:[%s766 + $0x1180] sm:$0xff]
                  %1329 = vst [vmem:[%s767 + $0x8c0] sm:$0xff] %v1328
                  %v1330 = vld [vmem:[%s766 + $0x1190] sm:$0xff]
                  %1331 = vst [vmem:[%s767 + $0x8c8] sm:$0xff] %v1330
                  %v1332 = vld [vmem:[%s766 + $0x11a0] sm:$0xff]
                  %1333 = vst [vmem:[%s767 + $0x8d0] sm:$0xff] %v1332
                  %v1334 = vld [vmem:[%s766 + $0x11b0] sm:$0xff]
                  %1335 = vst [vmem:[%s767 + $0x8d8] sm:$0xff] %v1334
                  %v1336 = vld [vmem:[%s766 + $0x11c0] sm:$0xff]
                  %1337 = vst [vmem:[%s767 + $0x8e0] sm:$0xff] %v1336
                  %v1338 = vld [vmem:[%s766 + $0x11d0] sm:$0xff]
                  %1339 = vst [vmem:[%s767 + $0x8e8] sm:$0xff] %v1338
                  %v1340 = vld [vmem:[%s766 + $0x11e0] sm:$0xff]
                  %1341 = vst [vmem:[%s767 + $0x8f0] sm:$0xff] %v1340
                  %v1342 = vld [vmem:[%s766 + $0x11f0] sm:$0xff]
                  %1343 = vst [vmem:[%s767 + $0x8f8] sm:$0xff] %v1342
                $region52: #{multi_input_forward.7} parent=46 // loop_footer
                  %s765 = sadd.s32 1, %s761
                $region53: #{multi_input_forward.7} parent=46 // loop_footer_branch
                  %760 = sbr.rel target = $region49
                $region54: #{multi_input_forward.7} parent=46 // loop_exit
                  _
              $region47: #{multi_input_forward.7} parent=31 // pred_fallthru
                _
              // Predicated region
              $region55: #{multi_input_forward.7} parent=31 // pred_check
                _
              $region56: #{multi_input_forward.7} parent=31 // pred_check_branch
                %1345 = sbr.rel target = $region58
              $region57: #{multi_input_forward.7} parent=31 // pred_region
                _
              $region58: #{multi_input_forward.7} parent=31 // pred_fallthru
                _
            $region32: #{multi_input_forward.7} parent=27 // pred_fallthru
              _
            // Predicated region
            $region33: #{multi_input_forward.7} parent=27 // pred_check
              _
            $region34: #{multi_input_forward.7} parent=27 // pred_check_branch
              %172 = sbr.rel target = $region36
            $region35: #{multi_input_forward.7} parent=27 // pred_region
              loop: start=0, step=1, limit=1
              $region37: #{multi_input_forward.7} parent=35 // loop_pre_header
                _
              $region38: #{multi_input_forward.7} parent=35 // loop_header
                %s175 = sphi 0, %s179
                %p176 = scmp.ge.s32.totalorder %s175, 1
                %s180 = sphi %s166, %s166
                %s181 = sphi %s163, %s163
              $region39: #{multi_input_forward.7} parent=35 // loop_header_branch
                %178 = sbr.rel (%p176) target = $region43
              $region40: #{multi_input_forward.7} parent=35 // loop_body
                %v182 = vld [vmem:[%s180] sm:$0xff]
                %183 = vst [vmem:[%s181] sm:$0xff] %v182
                %v184 = vld [vmem:[%s180 + $0x10] sm:$0xff]
                %185 = vst [vmem:[%s181 + $0x8] sm:$0xff] %v184
                %v186 = vld [vmem:[%s180 + $0x20] sm:$0xff]
                %187 = vst [vmem:[%s181 + $0x10] sm:$0xff] %v186
                %v188 = vld [vmem:[%s180 + $0x30] sm:$0xff]
                %189 = vst [vmem:[%s181 + $0x18] sm:$0xff] %v188
                %v190 = vld [vmem:[%s180 + $0x40] sm:$0xff]
                %191 = vst [vmem:[%s181 + $0x20] sm:$0xff] %v190
                %v192 = vld [vmem:[%s180 + $0x50] sm:$0xff]
                %193 = vst [vmem:[%s181 + $0x28] sm:$0xff] %v192
                %v194 = vld [vmem:[%s180 + $0x60] sm:$0xff]
                %195 = vst [vmem:[%s181 + $0x30] sm:$0xff] %v194
                %v196 = vld [vmem:[%s180 + $0x70] sm:$0xff]
                %197 = vst [vmem:[%s181 + $0x38] sm:$0xff] %v196
                %v198 = vld [vmem:[%s180 + $0x80] sm:$0xff]
                %199 = vst [vmem:[%s181 + $0x40] sm:$0xff] %v198
                %v200 = vld [vmem:[%s180 + $0x90] sm:$0xff]
                %201 = vst [vmem:[%s181 + $0x48] sm:$0xff] %v200
                %v202 = vld [vmem:[%s180 + $0xa0] sm:$0xff]
                %203 = vst [vmem:[%s181 + $0x50] sm:$0xff] %v202
                %v204 = vld [vmem:[%s180 + $0xb0] sm:$0xff]
                %205 = vst [vmem:[%s181 + $0x58] sm:$0xff] %v204
                %v206 = vld [vmem:[%s180 + $0xc0] sm:$0xff]
                %207 = vst [vmem:[%s181 + $0x60] sm:$0xff] %v206
                %v208 = vld [vmem:[%s180 + $0xd0] sm:$0xff]
                %209 = vst [vmem:[%s181 + $0x68] sm:$0xff] %v208
                %v210 = vld [vmem:[%s180 + $0xe0] sm:$0xff]
                %211 = vst [vmem:[%s181 + $0x70] sm:$0xff] %v210
                %v212 = vld [vmem:[%s180 + $0xf0] sm:$0xff]
                %213 = vst [vmem:[%s181 + $0x78] sm:$0xff] %v212
                %v214 = vld [vmem:[%s180 + $0x100] sm:$0xff]
                %215 = vst [vmem:[%s181 + $0x80] sm:$0xff] %v214
                %v216 = vld [vmem:[%s180 + $0x110] sm:$0xff]
                %217 = vst [vmem:[%s181 + $0x88] sm:$0xff] %v216
                %v218 = vld [vmem:[%s180 + $0x120] sm:$0xff]
                %219 = vst [vmem:[%s181 + $0x90] sm:$0xff] %v218
                %v220 = vld [vmem:[%s180 + $0x130] sm:$0xff]
                %221 = vst [vmem:[%s181 + $0x98] sm:$0xff] %v220
                %v222 = vld [vmem:[%s180 + $0x140] sm:$0xff]
                %223 = vst [vmem:[%s181 + $0xa0] sm:$0xff] %v222
                %v224 = vld [vmem:[%s180 + $0x150] sm:$0xff]
                %225 = vst [vmem:[%s181 + $0xa8] sm:$0xff] %v224
                %v226 = vld [vmem:[%s180 + $0x160] sm:$0xff]
                %227 = vst [vmem:[%s181 + $0xb0] sm:$0xff] %v226
                %v228 = vld [vmem:[%s180 + $0x170] sm:$0xff]
                %229 = vst [vmem:[%s181 + $0xb8] sm:$0xff] %v228
                %v230 = vld [vmem:[%s180 + $0x180] sm:$0xff]
                %231 = vst [vmem:[%s181 + $0xc0] sm:$0xff] %v230
                %v232 = vld [vmem:[%s180 + $0x190] sm:$0xff]
                %233 = vst [vmem:[%s181 + $0xc8] sm:$0xff] %v232
                %v234 = vld [vmem:[%s180 + $0x1a0] sm:$0xff]
                %235 = vst [vmem:[%s181 + $0xd0] sm:$0xff] %v234
                %v236 = vld [vmem:[%s180 + $0x1b0] sm:$0xff]
                %237 = vst [vmem:[%s181 + $0xd8] sm:$0xff] %v236
                %v238 = vld [vmem:[%s180 + $0x1c0] sm:$0xff]
                %239 = vst [vmem:[%s181 + $0xe0] sm:$0xff] %v238
                %v240 = vld [vmem:[%s180 + $0x1d0] sm:$0xff]
                %241 = vst [vmem:[%s181 + $0xe8] sm:$0xff] %v240
                %v242 = vld [vmem:[%s180 + $0x1e0] sm:$0xff]
                %243 = vst [vmem:[%s181 + $0xf0] sm:$0xff] %v242
                %v244 = vld [vmem:[%s180 + $0x1f0] sm:$0xff]
                %245 = vst [vmem:[%s181 + $0xf8] sm:$0xff] %v244
                %v246 = vld [vmem:[%s180 + $0x200] sm:$0xff]
                %247 = vst [vmem:[%s181 + $0x100] sm:$0xff] %v246
                %v248 = vld [vmem:[%s180 + $0x210] sm:$0xff]
                %249 = vst [vmem:[%s181 + $0x108] sm:$0xff] %v248
                %v250 = vld [vmem:[%s180 + $0x220] sm:$0xff]
                %251 = vst [vmem:[%s181 + $0x110] sm:$0xff] %v250
                %v252 = vld [vmem:[%s180 + $0x230] sm:$0xff]
                %253 = vst [vmem:[%s181 + $0x118] sm:$0xff] %v252
                %v254 = vld [vmem:[%s180 + $0x240] sm:$0xff]
                %255 = vst [vmem:[%s181 + $0x120] sm:$0xff] %v254
                %v256 = vld [vmem:[%s180 + $0x250] sm:$0xff]
                %257 = vst [vmem:[%s181 + $0x128] sm:$0xff] %v256
                %v258 = vld [vmem:[%s180 + $0x260] sm:$0xff]
                %259 = vst [vmem:[%s181 + $0x130] sm:$0xff] %v258
                %v260 = vld [vmem:[%s180 + $0x270] sm:$0xff]
                %261 = vst [vmem:[%s181 + $0x138] sm:$0xff] %v260
                %v262 = vld [vmem:[%s180 + $0x280] sm:$0xff]
                %263 = vst [vmem:[%s181 + $0x140] sm:$0xff] %v262
                %v264 = vld [vmem:[%s180 + $0x290] sm:$0xff]
                %265 = vst [vmem:[%s181 + $0x148] sm:$0xff] %v264
                %v266 = vld [vmem:[%s180 + $0x2a0] sm:$0xff]
                %267 = vst [vmem:[%s181 + $0x150] sm:$0xff] %v266
                %v268 = vld [vmem:[%s180 + $0x2b0] sm:$0xff]
                %269 = vst [vmem:[%s181 + $0x158] sm:$0xff] %v268
                %v270 = vld [vmem:[%s180 + $0x2c0] sm:$0xff]
                %271 = vst [vmem:[%s181 + $0x160] sm:$0xff] %v270
                %v272 = vld [vmem:[%s180 + $0x2d0] sm:$0xff]
                %273 = vst [vmem:[%s181 + $0x168] sm:$0xff] %v272
                %v274 = vld [vmem:[%s180 + $0x2e0] sm:$0xff]
                %275 = vst [vmem:[%s181 + $0x170] sm:$0xff] %v274
                %v276 = vld [vmem:[%s180 + $0x2f0] sm:$0xff]
                %277 = vst [vmem:[%s181 + $0x178] sm:$0xff] %v276
                %v278 = vld [vmem:[%s180 + $0x300] sm:$0xff]
                %279 = vst [vmem:[%s181 + $0x180] sm:$0xff] %v278
                %v280 = vld [vmem:[%s180 + $0x310] sm:$0xff]
                %281 = vst [vmem:[%s181 + $0x188] sm:$0xff] %v280
                %v282 = vld [vmem:[%s180 + $0x320] sm:$0xff]
                %283 = vst [vmem:[%s181 + $0x190] sm:$0xff] %v282
                %v284 = vld [vmem:[%s180 + $0x330] sm:$0xff]
                %285 = vst [vmem:[%s181 + $0x198] sm:$0xff] %v284
                %v286 = vld [vmem:[%s180 + $0x340] sm:$0xff]
                %287 = vst [vmem:[%s181 + $0x1a0] sm:$0xff] %v286
                %v288 = vld [vmem:[%s180 + $0x350] sm:$0xff]
                %289 = vst [vmem:[%s181 + $0x1a8] sm:$0xff] %v288
                %v290 = vld [vmem:[%s180 + $0x360] sm:$0xff]
                %291 = vst [vmem:[%s181 + $0x1b0] sm:$0xff] %v290
                %v292 = vld [vmem:[%s180 + $0x370] sm:$0xff]
                %293 = vst [vmem:[%s181 + $0x1b8] sm:$0xff] %v292
                %v294 = vld [vmem:[%s180 + $0x380] sm:$0xff]
                %295 = vst [vmem:[%s181 + $0x1c0] sm:$0xff] %v294
                %v296 = vld [vmem:[%s180 + $0x390] sm:$0xff]
                %297 = vst [vmem:[%s181 + $0x1c8] sm:$0xff] %v296
                %v298 = vld [vmem:[%s180 + $0x3a0] sm:$0xff]
                %299 = vst [vmem:[%s181 + $0x1d0] sm:$0xff] %v298
                %v300 = vld [vmem:[%s180 + $0x3b0] sm:$0xff]
                %301 = vst [vmem:[%s181 + $0x1d8] sm:$0xff] %v300
                %v302 = vld [vmem:[%s180 + $0x3c0] sm:$0xff]
                %303 = vst [vmem:[%s181 + $0x1e0] sm:$0xff] %v302
                %v304 = vld [vmem:[%s180 + $0x3d0] sm:$0xff]
                %305 = vst [vmem:[%s181 + $0x1e8] sm:$0xff] %v304
                %v306 = vld [vmem:[%s180 + $0x3e0] sm:$0xff]
                %307 = vst [vmem:[%s181 + $0x1f0] sm:$0xff] %v306
                %v308 = vld [vmem:[%s180 + $0x3f0] sm:$0xff]
                %309 = vst [vmem:[%s181 + $0x1f8] sm:$0xff] %v308
                %v310 = vld [vmem:[%s180 + $0x400] sm:$0xff]
                %311 = vst [vmem:[%s181 + $0x200] sm:$0xff] %v310
                %v312 = vld [vmem:[%s180 + $0x410] sm:$0xff]
                %313 = vst [vmem:[%s181 + $0x208] sm:$0xff] %v312
                %v314 = vld [vmem:[%s180 + $0x420] sm:$0xff]
                %315 = vst [vmem:[%s181 + $0x210] sm:$0xff] %v314
                %v316 = vld [vmem:[%s180 + $0x430] sm:$0xff]
                %317 = vst [vmem:[%s181 + $0x218] sm:$0xff] %v316
                %v318 = vld [vmem:[%s180 + $0x440] sm:$0xff]
                %319 = vst [vmem:[%s181 + $0x220] sm:$0xff] %v318
                %v320 = vld [vmem:[%s180 + $0x450] sm:$0xff]
                %321 = vst [vmem:[%s181 + $0x228] sm:$0xff] %v320
                %v322 = vld [vmem:[%s180 + $0x460] sm:$0xff]
                %323 = vst [vmem:[%s181 + $0x230] sm:$0xff] %v322
                %v324 = vld [vmem:[%s180 + $0x470] sm:$0xff]
                %325 = vst [vmem:[%s181 + $0x238] sm:$0xff] %v324
                %v326 = vld [vmem:[%s180 + $0x480] sm:$0xff]
                %327 = vst [vmem:[%s181 + $0x240] sm:$0xff] %v326
                %v328 = vld [vmem:[%s180 + $0x490] sm:$0xff]
                %329 = vst [vmem:[%s181 + $0x248] sm:$0xff] %v328
                %v330 = vld [vmem:[%s180 + $0x4a0] sm:$0xff]
                %331 = vst [vmem:[%s181 + $0x250] sm:$0xff] %v330
                %v332 = vld [vmem:[%s180 + $0x4b0] sm:$0xff]
                %333 = vst [vmem:[%s181 + $0x258] sm:$0xff] %v332
                %v334 = vld [vmem:[%s180 + $0x4c0] sm:$0xff]
                %335 = vst [vmem:[%s181 + $0x260] sm:$0xff] %v334
                %v336 = vld [vmem:[%s180 + $0x4d0] sm:$0xff]
                %337 = vst [vmem:[%s181 + $0x268] sm:$0xff] %v336
                %v338 = vld [vmem:[%s180 + $0x4e0] sm:$0xff]
                %339 = vst [vmem:[%s181 + $0x270] sm:$0xff] %v338
                %v340 = vld [vmem:[%s180 + $0x4f0] sm:$0xff]
                %341 = vst [vmem:[%s181 + $0x278] sm:$0xff] %v340
                %v342 = vld [vmem:[%s180 + $0x500] sm:$0xff]
                %343 = vst [vmem:[%s181 + $0x280] sm:$0xff] %v342
                %v344 = vld [vmem:[%s180 + $0x510] sm:$0xff]
                %345 = vst [vmem:[%s181 + $0x288] sm:$0xff] %v344
                %v346 = vld [vmem:[%s180 + $0x520] sm:$0xff]
                %347 = vst [vmem:[%s181 + $0x290] sm:$0xff] %v346
                %v348 = vld [vmem:[%s180 + $0x530] sm:$0xff]
                %349 = vst [vmem:[%s181 + $0x298] sm:$0xff] %v348
                %v350 = vld [vmem:[%s180 + $0x540] sm:$0xff]
                %351 = vst [vmem:[%s181 + $0x2a0] sm:$0xff] %v350
                %v352 = vld [vmem:[%s180 + $0x550] sm:$0xff]
                %353 = vst [vmem:[%s181 + $0x2a8] sm:$0xff] %v352
                %v354 = vld [vmem:[%s180 + $0x560] sm:$0xff]
                %355 = vst [vmem:[%s181 + $0x2b0] sm:$0xff] %v354
                %v356 = vld [vmem:[%s180 + $0x570] sm:$0xff]
                %357 = vst [vmem:[%s181 + $0x2b8] sm:$0xff] %v356
                %v358 = vld [vmem:[%s180 + $0x580] sm:$0xff]
                %359 = vst [vmem:[%s181 + $0x2c0] sm:$0xff] %v358
                %v360 = vld [vmem:[%s180 + $0x590] sm:$0xff]
                %361 = vst [vmem:[%s181 + $0x2c8] sm:$0xff] %v360
                %v362 = vld [vmem:[%s180 + $0x5a0] sm:$0xff]
                %363 = vst [vmem:[%s181 + $0x2d0] sm:$0xff] %v362
                %v364 = vld [vmem:[%s180 + $0x5b0] sm:$0xff]
                %365 = vst [vmem:[%s181 + $0x2d8] sm:$0xff] %v364
                %v366 = vld [vmem:[%s180 + $0x5c0] sm:$0xff]
                %367 = vst [vmem:[%s181 + $0x2e0] sm:$0xff] %v366
                %v368 = vld [vmem:[%s180 + $0x5d0] sm:$0xff]
                %369 = vst [vmem:[%s181 + $0x2e8] sm:$0xff] %v368
                %v370 = vld [vmem:[%s180 + $0x5e0] sm:$0xff]
                %371 = vst [vmem:[%s181 + $0x2f0] sm:$0xff] %v370
                %v372 = vld [vmem:[%s180 + $0x5f0] sm:$0xff]
                %373 = vst [vmem:[%s181 + $0x2f8] sm:$0xff] %v372
                %v374 = vld [vmem:[%s180 + $0x600] sm:$0xff]
                %375 = vst [vmem:[%s181 + $0x300] sm:$0xff] %v374
                %v376 = vld [vmem:[%s180 + $0x610] sm:$0xff]
                %377 = vst [vmem:[%s181 + $0x308] sm:$0xff] %v376
                %v378 = vld [vmem:[%s180 + $0x620] sm:$0xff]
                %379 = vst [vmem:[%s181 + $0x310] sm:$0xff] %v378
                %v380 = vld [vmem:[%s180 + $0x630] sm:$0xff]
                %381 = vst [vmem:[%s181 + $0x318] sm:$0xff] %v380
                %v382 = vld [vmem:[%s180 + $0x640] sm:$0xff]
                %383 = vst [vmem:[%s181 + $0x320] sm:$0xff] %v382
                %v384 = vld [vmem:[%s180 + $0x650] sm:$0xff]
                %385 = vst [vmem:[%s181 + $0x328] sm:$0xff] %v384
                %v386 = vld [vmem:[%s180 + $0x660] sm:$0xff]
                %387 = vst [vmem:[%s181 + $0x330] sm:$0xff] %v386
                %v388 = vld [vmem:[%s180 + $0x670] sm:$0xff]
                %389 = vst [vmem:[%s181 + $0x338] sm:$0xff] %v388
                %v390 = vld [vmem:[%s180 + $0x680] sm:$0xff]
                %391 = vst [vmem:[%s181 + $0x340] sm:$0xff] %v390
                %v392 = vld [vmem:[%s180 + $0x690] sm:$0xff]
                %393 = vst [vmem:[%s181 + $0x348] sm:$0xff] %v392
                %v394 = vld [vmem:[%s180 + $0x6a0] sm:$0xff]
                %395 = vst [vmem:[%s181 + $0x350] sm:$0xff] %v394
                %v396 = vld [vmem:[%s180 + $0x6b0] sm:$0xff]
                %397 = vst [vmem:[%s181 + $0x358] sm:$0xff] %v396
                %v398 = vld [vmem:[%s180 + $0x6c0] sm:$0xff]
                %399 = vst [vmem:[%s181 + $0x360] sm:$0xff] %v398
                %v400 = vld [vmem:[%s180 + $0x6d0] sm:$0xff]
                %401 = vst [vmem:[%s181 + $0x368] sm:$0xff] %v400
                %v402 = vld [vmem:[%s180 + $0x6e0] sm:$0xff]
                %403 = vst [vmem:[%s181 + $0x370] sm:$0xff] %v402
                %v404 = vld [vmem:[%s180 + $0x6f0] sm:$0xff]
                %405 = vst [vmem:[%s181 + $0x378] sm:$0xff] %v404
                %v406 = vld [vmem:[%s180 + $0x700] sm:$0xff]
                %407 = vst [vmem:[%s181 + $0x380] sm:$0xff] %v406
                %v408 = vld [vmem:[%s180 + $0x710] sm:$0xff]
                %409 = vst [vmem:[%s181 + $0x388] sm:$0xff] %v408
                %v410 = vld [vmem:[%s180 + $0x720] sm:$0xff]
                %411 = vst [vmem:[%s181 + $0x390] sm:$0xff] %v410
                %v412 = vld [vmem:[%s180 + $0x730] sm:$0xff]
                %413 = vst [vmem:[%s181 + $0x398] sm:$0xff] %v412
                %v414 = vld [vmem:[%s180 + $0x740] sm:$0xff]
                %415 = vst [vmem:[%s181 + $0x3a0] sm:$0xff] %v414
                %v416 = vld [vmem:[%s180 + $0x750] sm:$0xff]
                %417 = vst [vmem:[%s181 + $0x3a8] sm:$0xff] %v416
                %v418 = vld [vmem:[%s180 + $0x760] sm:$0xff]
                %419 = vst [vmem:[%s181 + $0x3b0] sm:$0xff] %v418
                %v420 = vld [vmem:[%s180 + $0x770] sm:$0xff]
                %421 = vst [vmem:[%s181 + $0x3b8] sm:$0xff] %v420
                %v422 = vld [vmem:[%s180 + $0x780] sm:$0xff]
                %423 = vst [vmem:[%s181 + $0x3c0] sm:$0xff] %v422
                %v424 = vld [vmem:[%s180 + $0x790] sm:$0xff]
                %425 = vst [vmem:[%s181 + $0x3c8] sm:$0xff] %v424
                %v426 = vld [vmem:[%s180 + $0x7a0] sm:$0xff]
                %427 = vst [vmem:[%s181 + $0x3d0] sm:$0xff] %v426
                %v428 = vld [vmem:[%s180 + $0x7b0] sm:$0xff]
                %429 = vst [vmem:[%s181 + $0x3d8] sm:$0xff] %v428
                %v430 = vld [vmem:[%s180 + $0x7c0] sm:$0xff]
                %431 = vst [vmem:[%s181 + $0x3e0] sm:$0xff] %v430
                %v432 = vld [vmem:[%s180 + $0x7d0] sm:$0xff]
                %433 = vst [vmem:[%s181 + $0x3e8] sm:$0xff] %v432
                %v434 = vld [vmem:[%s180 + $0x7e0] sm:$0xff]
                %435 = vst [vmem:[%s181 + $0x3f0] sm:$0xff] %v434
                %v436 = vld [vmem:[%s180 + $0x7f0] sm:$0xff]
                %437 = vst [vmem:[%s181 + $0x3f8] sm:$0xff] %v436
                %v438 = vld [vmem:[%s180 + $0x800] sm:$0xff]
                %439 = vst [vmem:[%s181 + $0x400] sm:$0xff] %v438
                %v440 = vld [vmem:[%s180 + $0x810] sm:$0xff]
                %441 = vst [vmem:[%s181 + $0x408] sm:$0xff] %v440
                %v442 = vld [vmem:[%s180 + $0x820] sm:$0xff]
                %443 = vst [vmem:[%s181 + $0x410] sm:$0xff] %v442
                %v444 = vld [vmem:[%s180 + $0x830] sm:$0xff]
                %445 = vst [vmem:[%s181 + $0x418] sm:$0xff] %v444
                %v446 = vld [vmem:[%s180 + $0x840] sm:$0xff]
                %447 = vst [vmem:[%s181 + $0x420] sm:$0xff] %v446
                %v448 = vld [vmem:[%s180 + $0x850] sm:$0xff]
                %449 = vst [vmem:[%s181 + $0x428] sm:$0xff] %v448
                %v450 = vld [vmem:[%s180 + $0x860] sm:$0xff]
                %451 = vst [vmem:[%s181 + $0x430] sm:$0xff] %v450
                %v452 = vld [vmem:[%s180 + $0x870] sm:$0xff]
                %453 = vst [vmem:[%s181 + $0x438] sm:$0xff] %v452
                %v454 = vld [vmem:[%s180 + $0x880] sm:$0xff]
                %455 = vst [vmem:[%s181 + $0x440] sm:$0xff] %v454
                %v456 = vld [vmem:[%s180 + $0x890] sm:$0xff]
                %457 = vst [vmem:[%s181 + $0x448] sm:$0xff] %v456
                %v458 = vld [vmem:[%s180 + $0x8a0] sm:$0xff]
                %459 = vst [vmem:[%s181 + $0x450] sm:$0xff] %v458
                %v460 = vld [vmem:[%s180 + $0x8b0] sm:$0xff]
                %461 = vst [vmem:[%s181 + $0x458] sm:$0xff] %v460
                %v462 = vld [vmem:[%s180 + $0x8c0] sm:$0xff]
                %463 = vst [vmem:[%s181 + $0x460] sm:$0xff] %v462
                %v464 = vld [vmem:[%s180 + $0x8d0] sm:$0xff]
                %465 = vst [vmem:[%s181 + $0x468] sm:$0xff] %v464
                %v466 = vld [vmem:[%s180 + $0x8e0] sm:$0xff]
                %467 = vst [vmem:[%s181 + $0x470] sm:$0xff] %v466
                %v468 = vld [vmem:[%s180 + $0x8f0] sm:$0xff]
                %469 = vst [vmem:[%s181 + $0x478] sm:$0xff] %v468
                %v470 = vld [vmem:[%s180 + $0x900] sm:$0xff]
                %471 = vst [vmem:[%s181 + $0x480] sm:$0xff] %v470
                %v472 = vld [vmem:[%s180 + $0x910] sm:$0xff]
                %473 = vst [vmem:[%s181 + $0x488] sm:$0xff] %v472
                %v474 = vld [vmem:[%s180 + $0x920] sm:$0xff]
                %475 = vst [vmem:[%s181 + $0x490] sm:$0xff] %v474
                %v476 = vld [vmem:[%s180 + $0x930] sm:$0xff]
                %477 = vst [vmem:[%s181 + $0x498] sm:$0xff] %v476
                %v478 = vld [vmem:[%s180 + $0x940] sm:$0xff]
                %479 = vst [vmem:[%s181 + $0x4a0] sm:$0xff] %v478
                %v480 = vld [vmem:[%s180 + $0x950] sm:$0xff]
                %481 = vst [vmem:[%s181 + $0x4a8] sm:$0xff] %v480
                %v482 = vld [vmem:[%s180 + $0x960] sm:$0xff]
                %483 = vst [vmem:[%s181 + $0x4b0] sm:$0xff] %v482
                %v484 = vld [vmem:[%s180 + $0x970] sm:$0xff]
                %485 = vst [vmem:[%s181 + $0x4b8] sm:$0xff] %v484
                %v486 = vld [vmem:[%s180 + $0x980] sm:$0xff]
                %487 = vst [vmem:[%s181 + $0x4c0] sm:$0xff] %v486
                %v488 = vld [vmem:[%s180 + $0x990] sm:$0xff]
                %489 = vst [vmem:[%s181 + $0x4c8] sm:$0xff] %v488
                %v490 = vld [vmem:[%s180 + $0x9a0] sm:$0xff]
                %491 = vst [vmem:[%s181 + $0x4d0] sm:$0xff] %v490
                %v492 = vld [vmem:[%s180 + $0x9b0] sm:$0xff]
                %493 = vst [vmem:[%s181 + $0x4d8] sm:$0xff] %v492
                %v494 = vld [vmem:[%s180 + $0x9c0] sm:$0xff]
                %495 = vst [vmem:[%s181 + $0x4e0] sm:$0xff] %v494
                %v496 = vld [vmem:[%s180 + $0x9d0] sm:$0xff]
                %497 = vst [vmem:[%s181 + $0x4e8] sm:$0xff] %v496
                %v498 = vld [vmem:[%s180 + $0x9e0] sm:$0xff]
                %499 = vst [vmem:[%s181 + $0x4f0] sm:$0xff] %v498
                %v500 = vld [vmem:[%s180 + $0x9f0] sm:$0xff]
                %501 = vst [vmem:[%s181 + $0x4f8] sm:$0xff] %v500
                %v502 = vld [vmem:[%s180 + $0xa00] sm:$0xff]
                %503 = vst [vmem:[%s181 + $0x500] sm:$0xff] %v502
                %v504 = vld [vmem:[%s180 + $0xa10] sm:$0xff]
                %505 = vst [vmem:[%s181 + $0x508] sm:$0xff] %v504
                %v506 = vld [vmem:[%s180 + $0xa20] sm:$0xff]
                %507 = vst [vmem:[%s181 + $0x510] sm:$0xff] %v506
                %v508 = vld [vmem:[%s180 + $0xa30] sm:$0xff]
                %509 = vst [vmem:[%s181 + $0x518] sm:$0xff] %v508
                %v510 = vld [vmem:[%s180 + $0xa40] sm:$0xff]
                %511 = vst [vmem:[%s181 + $0x520] sm:$0xff] %v510
                %v512 = vld [vmem:[%s180 + $0xa50] sm:$0xff]
                %513 = vst [vmem:[%s181 + $0x528] sm:$0xff] %v512
                %v514 = vld [vmem:[%s180 + $0xa60] sm:$0xff]
                %515 = vst [vmem:[%s181 + $0x530] sm:$0xff] %v514
                %v516 = vld [vmem:[%s180 + $0xa70] sm:$0xff]
                %517 = vst [vmem:[%s181 + $0x538] sm:$0xff] %v516
                %v518 = vld [vmem:[%s180 + $0xa80] sm:$0xff]
                %519 = vst [vmem:[%s181 + $0x540] sm:$0xff] %v518
                %v520 = vld [vmem:[%s180 + $0xa90] sm:$0xff]
                %521 = vst [vmem:[%s181 + $0x548] sm:$0xff] %v520
                %v522 = vld [vmem:[%s180 + $0xaa0] sm:$0xff]
                %523 = vst [vmem:[%s181 + $0x550] sm:$0xff] %v522
                %v524 = vld [vmem:[%s180 + $0xab0] sm:$0xff]
                %525 = vst [vmem:[%s181 + $0x558] sm:$0xff] %v524
                %v526 = vld [vmem:[%s180 + $0xac0] sm:$0xff]
                %527 = vst [vmem:[%s181 + $0x560] sm:$0xff] %v526
                %v528 = vld [vmem:[%s180 + $0xad0] sm:$0xff]
                %529 = vst [vmem:[%s181 + $0x568] sm:$0xff] %v528
                %v530 = vld [vmem:[%s180 + $0xae0] sm:$0xff]
                %531 = vst [vmem:[%s181 + $0x570] sm:$0xff] %v530
                %v532 = vld [vmem:[%s180 + $0xaf0] sm:$0xff]
                %533 = vst [vmem:[%s181 + $0x578] sm:$0xff] %v532
                %v534 = vld [vmem:[%s180 + $0xb00] sm:$0xff]
                %535 = vst [vmem:[%s181 + $0x580] sm:$0xff] %v534
                %v536 = vld [vmem:[%s180 + $0xb10] sm:$0xff]
                %537 = vst [vmem:[%s181 + $0x588] sm:$0xff] %v536
                %v538 = vld [vmem:[%s180 + $0xb20] sm:$0xff]
                %539 = vst [vmem:[%s181 + $0x590] sm:$0xff] %v538
                %v540 = vld [vmem:[%s180 + $0xb30] sm:$0xff]
                %541 = vst [vmem:[%s181 + $0x598] sm:$0xff] %v540
                %v542 = vld [vmem:[%s180 + $0xb40] sm:$0xff]
                %543 = vst [vmem:[%s181 + $0x5a0] sm:$0xff] %v542
                %v544 = vld [vmem:[%s180 + $0xb50] sm:$0xff]
                %545 = vst [vmem:[%s181 + $0x5a8] sm:$0xff] %v544
                %v546 = vld [vmem:[%s180 + $0xb60] sm:$0xff]
                %547 = vst [vmem:[%s181 + $0x5b0] sm:$0xff] %v546
                %v548 = vld [vmem:[%s180 + $0xb70] sm:$0xff]
                %549 = vst [vmem:[%s181 + $0x5b8] sm:$0xff] %v548
                %v550 = vld [vmem:[%s180 + $0xb80] sm:$0xff]
                %551 = vst [vmem:[%s181 + $0x5c0] sm:$0xff] %v550
                %v552 = vld [vmem:[%s180 + $0xb90] sm:$0xff]
                %553 = vst [vmem:[%s181 + $0x5c8] sm:$0xff] %v552
                %v554 = vld [vmem:[%s180 + $0xba0] sm:$0xff]
                %555 = vst [vmem:[%s181 + $0x5d0] sm:$0xff] %v554
                %v556 = vld [vmem:[%s180 + $0xbb0] sm:$0xff]
                %557 = vst [vmem:[%s181 + $0x5d8] sm:$0xff] %v556
                %v558 = vld [vmem:[%s180 + $0xbc0] sm:$0xff]
                %559 = vst [vmem:[%s181 + $0x5e0] sm:$0xff] %v558
                %v560 = vld [vmem:[%s180 + $0xbd0] sm:$0xff]
                %561 = vst [vmem:[%s181 + $0x5e8] sm:$0xff] %v560
                %v562 = vld [vmem:[%s180 + $0xbe0] sm:$0xff]
                %563 = vst [vmem:[%s181 + $0x5f0] sm:$0xff] %v562
                %v564 = vld [vmem:[%s180 + $0xbf0] sm:$0xff]
                %565 = vst [vmem:[%s181 + $0x5f8] sm:$0xff] %v564
                %v566 = vld [vmem:[%s180 + $0xc00] sm:$0xff]
                %567 = vst [vmem:[%s181 + $0x600] sm:$0xff] %v566
                %v568 = vld [vmem:[%s180 + $0xc10] sm:$0xff]
                %569 = vst [vmem:[%s181 + $0x608] sm:$0xff] %v568
                %v570 = vld [vmem:[%s180 + $0xc20] sm:$0xff]
                %571 = vst [vmem:[%s181 + $0x610] sm:$0xff] %v570
                %v572 = vld [vmem:[%s180 + $0xc30] sm:$0xff]
                %573 = vst [vmem:[%s181 + $0x618] sm:$0xff] %v572
                %v574 = vld [vmem:[%s180 + $0xc40] sm:$0xff]
                %575 = vst [vmem:[%s181 + $0x620] sm:$0xff] %v574
                %v576 = vld [vmem:[%s180 + $0xc50] sm:$0xff]
                %577 = vst [vmem:[%s181 + $0x628] sm:$0xff] %v576
                %v578 = vld [vmem:[%s180 + $0xc60] sm:$0xff]
                %579 = vst [vmem:[%s181 + $0x630] sm:$0xff] %v578
                %v580 = vld [vmem:[%s180 + $0xc70] sm:$0xff]
                %581 = vst [vmem:[%s181 + $0x638] sm:$0xff] %v580
                %v582 = vld [vmem:[%s180 + $0xc80] sm:$0xff]
                %583 = vst [vmem:[%s181 + $0x640] sm:$0xff] %v582
                %v584 = vld [vmem:[%s180 + $0xc90] sm:$0xff]
                %585 = vst [vmem:[%s181 + $0x648] sm:$0xff] %v584
                %v586 = vld [vmem:[%s180 + $0xca0] sm:$0xff]
                %587 = vst [vmem:[%s181 + $0x650] sm:$0xff] %v586
                %v588 = vld [vmem:[%s180 + $0xcb0] sm:$0xff]
                %589 = vst [vmem:[%s181 + $0x658] sm:$0xff] %v588
                %v590 = vld [vmem:[%s180 + $0xcc0] sm:$0xff]
                %591 = vst [vmem:[%s181 + $0x660] sm:$0xff] %v590
                %v592 = vld [vmem:[%s180 + $0xcd0] sm:$0xff]
                %593 = vst [vmem:[%s181 + $0x668] sm:$0xff] %v592
                %v594 = vld [vmem:[%s180 + $0xce0] sm:$0xff]
                %595 = vst [vmem:[%s181 + $0x670] sm:$0xff] %v594
                %v596 = vld [vmem:[%s180 + $0xcf0] sm:$0xff]
                %597 = vst [vmem:[%s181 + $0x678] sm:$0xff] %v596
                %v598 = vld [vmem:[%s180 + $0xd00] sm:$0xff]
                %599 = vst [vmem:[%s181 + $0x680] sm:$0xff] %v598
                %v600 = vld [vmem:[%s180 + $0xd10] sm:$0xff]
                %601 = vst [vmem:[%s181 + $0x688] sm:$0xff] %v600
                %v602 = vld [vmem:[%s180 + $0xd20] sm:$0xff]
                %603 = vst [vmem:[%s181 + $0x690] sm:$0xff] %v602
                %v604 = vld [vmem:[%s180 + $0xd30] sm:$0xff]
                %605 = vst [vmem:[%s181 + $0x698] sm:$0xff] %v604
                %v606 = vld [vmem:[%s180 + $0xd40] sm:$0xff]
                %607 = vst [vmem:[%s181 + $0x6a0] sm:$0xff] %v606
                %v608 = vld [vmem:[%s180 + $0xd50] sm:$0xff]
                %609 = vst [vmem:[%s181 + $0x6a8] sm:$0xff] %v608
                %v610 = vld [vmem:[%s180 + $0xd60] sm:$0xff]
                %611 = vst [vmem:[%s181 + $0x6b0] sm:$0xff] %v610
                %v612 = vld [vmem:[%s180 + $0xd70] sm:$0xff]
                %613 = vst [vmem:[%s181 + $0x6b8] sm:$0xff] %v612
                %v614 = vld [vmem:[%s180 + $0xd80] sm:$0xff]
                %615 = vst [vmem:[%s181 + $0x6c0] sm:$0xff] %v614
                %v616 = vld [vmem:[%s180 + $0xd90] sm:$0xff]
                %617 = vst [vmem:[%s181 + $0x6c8] sm:$0xff] %v616
                %v618 = vld [vmem:[%s180 + $0xda0] sm:$0xff]
                %619 = vst [vmem:[%s181 + $0x6d0] sm:$0xff] %v618
                %v620 = vld [vmem:[%s180 + $0xdb0] sm:$0xff]
                %621 = vst [vmem:[%s181 + $0x6d8] sm:$0xff] %v620
                %v622 = vld [vmem:[%s180 + $0xdc0] sm:$0xff]
                %623 = vst [vmem:[%s181 + $0x6e0] sm:$0xff] %v622
                %v624 = vld [vmem:[%s180 + $0xdd0] sm:$0xff]
                %625 = vst [vmem:[%s181 + $0x6e8] sm:$0xff] %v624
                %v626 = vld [vmem:[%s180 + $0xde0] sm:$0xff]
                %627 = vst [vmem:[%s181 + $0x6f0] sm:$0xff] %v626
                %v628 = vld [vmem:[%s180 + $0xdf0] sm:$0xff]
                %629 = vst [vmem:[%s181 + $0x6f8] sm:$0xff] %v628
                %v630 = vld [vmem:[%s180 + $0xe00] sm:$0xff]
                %631 = vst [vmem:[%s181 + $0x700] sm:$0xff] %v630
                %v632 = vld [vmem:[%s180 + $0xe10] sm:$0xff]
                %633 = vst [vmem:[%s181 + $0x708] sm:$0xff] %v632
                %v634 = vld [vmem:[%s180 + $0xe20] sm:$0xff]
                %635 = vst [vmem:[%s181 + $0x710] sm:$0xff] %v634
                %v636 = vld [vmem:[%s180 + $0xe30] sm:$0xff]
                %637 = vst [vmem:[%s181 + $0x718] sm:$0xff] %v636
                %v638 = vld [vmem:[%s180 + $0xe40] sm:$0xff]
                %639 = vst [vmem:[%s181 + $0x720] sm:$0xff] %v638
                %v640 = vld [vmem:[%s180 + $0xe50] sm:$0xff]
                %641 = vst [vmem:[%s181 + $0x728] sm:$0xff] %v640
                %v642 = vld [vmem:[%s180 + $0xe60] sm:$0xff]
                %643 = vst [vmem:[%s181 + $0x730] sm:$0xff] %v642
                %v644 = vld [vmem:[%s180 + $0xe70] sm:$0xff]
                %645 = vst [vmem:[%s181 + $0x738] sm:$0xff] %v644
                %v646 = vld [vmem:[%s180 + $0xe80] sm:$0xff]
                %647 = vst [vmem:[%s181 + $0x740] sm:$0xff] %v646
                %v648 = vld [vmem:[%s180 + $0xe90] sm:$0xff]
                %649 = vst [vmem:[%s181 + $0x748] sm:$0xff] %v648
                %v650 = vld [vmem:[%s180 + $0xea0] sm:$0xff]
                %651 = vst [vmem:[%s181 + $0x750] sm:$0xff] %v650
                %v652 = vld [vmem:[%s180 + $0xeb0] sm:$0xff]
                %653 = vst [vmem:[%s181 + $0x758] sm:$0xff] %v652
                %v654 = vld [vmem:[%s180 + $0xec0] sm:$0xff]
                %655 = vst [vmem:[%s181 + $0x760] sm:$0xff] %v654
                %v656 = vld [vmem:[%s180 + $0xed0] sm:$0xff]
                %657 = vst [vmem:[%s181 + $0x768] sm:$0xff] %v656
                %v658 = vld [vmem:[%s180 + $0xee0] sm:$0xff]
                %659 = vst [vmem:[%s181 + $0x770] sm:$0xff] %v658
                %v660 = vld [vmem:[%s180 + $0xef0] sm:$0xff]
                %661 = vst [vmem:[%s181 + $0x778] sm:$0xff] %v660
                %v662 = vld [vmem:[%s180 + $0xf00] sm:$0xff]
                %663 = vst [vmem:[%s181 + $0x780] sm:$0xff] %v662
                %v664 = vld [vmem:[%s180 + $0xf10] sm:$0xff]
                %665 = vst [vmem:[%s181 + $0x788] sm:$0xff] %v664
                %v666 = vld [vmem:[%s180 + $0xf20] sm:$0xff]
                %667 = vst [vmem:[%s181 + $0x790] sm:$0xff] %v666
                %v668 = vld [vmem:[%s180 + $0xf30] sm:$0xff]
                %669 = vst [vmem:[%s181 + $0x798] sm:$0xff] %v668
                %v670 = vld [vmem:[%s180 + $0xf40] sm:$0xff]
                %671 = vst [vmem:[%s181 + $0x7a0] sm:$0xff] %v670
                %v672 = vld [vmem:[%s180 + $0xf50] sm:$0xff]
                %673 = vst [vmem:[%s181 + $0x7a8] sm:$0xff] %v672
                %v674 = vld [vmem:[%s180 + $0xf60] sm:$0xff]
                %675 = vst [vmem:[%s181 + $0x7b0] sm:$0xff] %v674
                %v676 = vld [vmem:[%s180 + $0xf70] sm:$0xff]
                %677 = vst [vmem:[%s181 + $0x7b8] sm:$0xff] %v676
                %v678 = vld [vmem:[%s180 + $0xf80] sm:$0xff]
                %679 = vst [vmem:[%s181 + $0x7c0] sm:$0xff] %v678
                %v680 = vld [vmem:[%s180 + $0xf90] sm:$0xff]
                %681 = vst [vmem:[%s181 + $0x7c8] sm:$0xff] %v680
                %v682 = vld [vmem:[%s180 + $0xfa0] sm:$0xff]
                %683 = vst [vmem:[%s181 + $0x7d0] sm:$0xff] %v682
                %v684 = vld [vmem:[%s180 + $0xfb0] sm:$0xff]
                %685 = vst [vmem:[%s181 + $0x7d8] sm:$0xff] %v684
                %v686 = vld [vmem:[%s180 + $0xfc0] sm:$0xff]
                %687 = vst [vmem:[%s181 + $0x7e0] sm:$0xff] %v686
                %v688 = vld [vmem:[%s180 + $0xfd0] sm:$0xff]
                %689 = vst [vmem:[%s181 + $0x7e8] sm:$0xff] %v688
                %v690 = vld [vmem:[%s180 + $0xfe0] sm:$0xff]
                %691 = vst [vmem:[%s181 + $0x7f0] sm:$0xff] %v690
                %v692 = vld [vmem:[%s180 + $0xff0] sm:$0xff]
                %693 = vst [vmem:[%s181 + $0x7f8] sm:$0xff] %v692
                %v694 = vld [vmem:[%s180 + $0x1000] sm:$0xff]
                %695 = vst [vmem:[%s181 + $0x800] sm:$0xff] %v694
                %v696 = vld [vmem:[%s180 + $0x1010] sm:$0xff]
                %697 = vst [vmem:[%s181 + $0x808] sm:$0xff] %v696
                %v698 = vld [vmem:[%s180 + $0x1020] sm:$0xff]
                %699 = vst [vmem:[%s181 + $0x810] sm:$0xff] %v698
                %v700 = vld [vmem:[%s180 + $0x1030] sm:$0xff]
                %701 = vst [vmem:[%s181 + $0x818] sm:$0xff] %v700
                %v702 = vld [vmem:[%s180 + $0x1040] sm:$0xff]
                %703 = vst [vmem:[%s181 + $0x820] sm:$0xff] %v702
                %v704 = vld [vmem:[%s180 + $0x1050] sm:$0xff]
                %705 = vst [vmem:[%s181 + $0x828] sm:$0xff] %v704
                %v706 = vld [vmem:[%s180 + $0x1060] sm:$0xff]
                %707 = vst [vmem:[%s181 + $0x830] sm:$0xff] %v706
                %v708 = vld [vmem:[%s180 + $0x1070] sm:$0xff]
                %709 = vst [vmem:[%s181 + $0x838] sm:$0xff] %v708
                %v710 = vld [vmem:[%s180 + $0x1080] sm:$0xff]
                %711 = vst [vmem:[%s181 + $0x840] sm:$0xff] %v710
                %v712 = vld [vmem:[%s180 + $0x1090] sm:$0xff]
                %713 = vst [vmem:[%s181 + $0x848] sm:$0xff] %v712
                %v714 = vld [vmem:[%s180 + $0x10a0] sm:$0xff]
                %715 = vst [vmem:[%s181 + $0x850] sm:$0xff] %v714
                %v716 = vld [vmem:[%s180 + $0x10b0] sm:$0xff]
                %717 = vst [vmem:[%s181 + $0x858] sm:$0xff] %v716
                %v718 = vld [vmem:[%s180 + $0x10c0] sm:$0xff]
                %719 = vst [vmem:[%s181 + $0x860] sm:$0xff] %v718
                %v720 = vld [vmem:[%s180 + $0x10d0] sm:$0xff]
                %721 = vst [vmem:[%s181 + $0x868] sm:$0xff] %v720
                %v722 = vld [vmem:[%s180 + $0x10e0] sm:$0xff]
                %723 = vst [vmem:[%s181 + $0x870] sm:$0xff] %v722
                %v724 = vld [vmem:[%s180 + $0x10f0] sm:$0xff]
                %725 = vst [vmem:[%s181 + $0x878] sm:$0xff] %v724
                %v726 = vld [vmem:[%s180 + $0x1100] sm:$0xff]
                %727 = vst [vmem:[%s181 + $0x880] sm:$0xff] %v726
                %v728 = vld [vmem:[%s180 + $0x1110] sm:$0xff]
                %729 = vst [vmem:[%s181 + $0x888] sm:$0xff] %v728
                %v730 = vld [vmem:[%s180 + $0x1120] sm:$0xff]
                %731 = vst [vmem:[%s181 + $0x890] sm:$0xff] %v730
                %v732 = vld [vmem:[%s180 + $0x1130] sm:$0xff]
                %733 = vst [vmem:[%s181 + $0x898] sm:$0xff] %v732
                %v734 = vld [vmem:[%s180 + $0x1140] sm:$0xff]
                %735 = vst [vmem:[%s181 + $0x8a0] sm:$0xff] %v734
                %v736 = vld [vmem:[%s180 + $0x1150] sm:$0xff]
                %737 = vst [vmem:[%s181 + $0x8a8] sm:$0xff] %v736
                %v738 = vld [vmem:[%s180 + $0x1160] sm:$0xff]
                %739 = vst [vmem:[%s181 + $0x8b0] sm:$0xff] %v738
                %v740 = vld [vmem:[%s180 + $0x1170] sm:$0xff]
                %741 = vst [vmem:[%s181 + $0x8b8] sm:$0xff] %v740
                %v742 = vld [vmem:[%s180 + $0x1180] sm:$0xff]
                %743 = vst [vmem:[%s181 + $0x8c0] sm:$0xff] %v742
                %v744 = vld [vmem:[%s180 + $0x1190] sm:$0xff]
                %745 = vst [vmem:[%s181 + $0x8c8] sm:$0xff] %v744
                %v746 = vld [vmem:[%s180 + $0x11a0] sm:$0xff]
                %747 = vst [vmem:[%s181 + $0x8d0] sm:$0xff] %v746
                %v748 = vld [vmem:[%s180 + $0x11b0] sm:$0xff]
                %749 = vst [vmem:[%s181 + $0x8d8] sm:$0xff] %v748
                %v750 = vld [vmem:[%s180 + $0x11c0] sm:$0xff]
                %751 = vst [vmem:[%s181 + $0x8e0] sm:$0xff] %v750
                %v752 = vld [vmem:[%s180 + $0x11d0] sm:$0xff]
                %753 = vst [vmem:[%s181 + $0x8e8] sm:$0xff] %v752
                %v754 = vld [vmem:[%s180 + $0x11e0] sm:$0xff]
                %755 = vst [vmem:[%s181 + $0x8f0] sm:$0xff] %v754
                %v756 = vld [vmem:[%s180 + $0x11f0] sm:$0xff]
                %757 = vst [vmem:[%s181 + $0x8f8] sm:$0xff] %v756
              $region41: #{multi_input_forward.7} parent=35 // loop_footer
                %s179 = sadd.s32 1, %s175
              $region42: #{multi_input_forward.7} parent=35 // loop_footer_branch
                %174 = sbr.rel target = $region38
              $region43: #{multi_input_forward.7} parent=35 // loop_exit
                _
            $region36: #{multi_input_forward.7} parent=27 // pred_fallthru
              _
          $region28: #{multi_input_forward.7} parent=23 // pred_fallthru
            _
          %1346 = vnop
        $region24: #{multi_input_forward.7} parent=19 // pred_fallthru
          _
        // Predicated region
        $region59: #{multi_input_forward.7} parent=19 // pred_check
          %p1347 = pneg %p77
        $region60: #{multi_input_forward.7} parent=19 // pred_check_branch
          %1349 = sbr.rel (%p1347) target = $region62
        $region61: #{multi_input_forward.7} parent=19 // pred_region
          %s1350 = smul.u32 2, %s10
          %p1351 = scmp.lt.s32.totalorder %s1350, 3
          %s1352 = scalar_select %p1351, %s1350, 3
          %s1353 = scalar_lea.vmem %s2, %s1352
          %s1354 = smul.u32 2, %s10
        $region62: #{multi_input_forward.7} parent=19 // pred_fallthru
          _
        // Predicated region
        $region63: #{multi_input_forward.7} parent=19 // pred_check
          %p1355 = pneg %p103
        $region64: #{multi_input_forward.7} parent=19 // pred_check_branch
          %1357 = sbr.rel (%p1355) target = $region66
        $region65: #{multi_input_forward.7} parent=19 // pred_region
          %s1358 = smul.u32 32, %s10
          %p1359 = scmp.lt.s32.totalorder %s1358, 63
          %s1360 = scalar_select %p1359, %s1358, 63
          %s1361 = smul.addr %s1360, 4
          %s1362 = scalar_lea.vmem %s3, %s1361
          %s1363 = smul.u32 32, %s10
        $region66: #{multi_input_forward.7} parent=19 // pred_fallthru
          _
      $region20: #{multi_input_forward.7} parent=5 // pred_fallthru
        _
      %p1364 = scmp.le.s32.totalorder 1, %s10
      %p1365 = scmp.lt.s32.totalorder %s10, 3
      %p1366 = pnand %p1364, %p1365
      %p1367 = pneg %p1366
      // Predicated region
      $region67: #{multi_input_forward.7} parent=5 // pred_check
        _
      $region68: #{multi_input_forward.7} parent=5 // pred_check_branch
        %1369 = sbr.rel (%p1366) target = $region70
      $region69: #{multi_input_forward.7} parent=5 // pred_region
        %s1370 = ssub.s32 %s10, 1
        %s1371 = sand.u32 %s44, 1
        %s1372 = sand.u32 %s44, 1
        %s1373 = smul.addr %s1372, 2304
        %s1374 = scalar_lea.vmem [#allocation2], %s1373
        // Predicated region
        $region71: #{multi_input_forward.7} parent=69 // pred_check
          %p1375 = pneg %p57
        $region72: #{multi_input_forward.7} parent=69 // pred_check_branch
          %1377 = sbr.rel (%p1375) target = $region74
        $region73: #{multi_input_forward.7} parent=69 // pred_region
          _
        $region74: #{multi_input_forward.7} parent=69 // pred_fallthru
          _
        %p1378 = pneg %p31
        %p1379 = pneg %p28
        %s1380 = sand.u32 %s44, 1
        %s1381 = sand.u32 %s44, 1
        %s1382 = smul.addr %s1381, 2304
        %s1383 = scalar_lea.vmem [#allocation2], %s1382
        %p1384 = pneg %p57
        %p1385 = pneg %p54
        %s1386 = smul.u32 2, %s15
        %p1387 = scmp.lt.s32.totalorder %s1386, 3
        %s1388 = scalar_select %p1387, %s1386, 3
        %s1389 = scalar_lea.vmem %s2, %s1388
        %p1390 = pneg %p83
        %p1391 = pneg %p80
        %s1392 = smul.u32 32, %s15
        %p1393 = scmp.lt.s32.totalorder %s1392, 63
        %s1394 = scalar_select %p1393, %s1392, 63
        %s1395 = smul.addr %s1394, 4
        %s1396 = scalar_lea.vmem %s3, %s1395
        %p1397 = pneg %p109
        %p1398 = pneg %p106
        %p1399 = pneg %p135
        %p1400 = pneg %p132
        %p1401 = scmp.lt.s32.totalorder %s15, 1
        %s1402 = scalar_select %p1401, %s15, 1
        %s1403 = smul.addr %s1402, 2
        %s1404 = scalar_lea.vmem %s4, %s1403
        %s1405 = smul.u32 2, %s15
        %s1406 = smul.u32 2, %s15
        %p1407 = scmp.lt.s32.totalorder %s1406, 3
        %s1408 = scalar_select %p1407, %s1406, 3
        %s1409 = scalar_lea.vmem %s2, %s1408
        %s1410 = smul.u32 2, %s15
        %s1411 = smul.u32 32, %s15
        %p1412 = scmp.lt.s32.totalorder %s1411, 63
        %s1413 = scalar_select %p1412, %s1411, 63
        %s1414 = smul.addr %s1413, 4
        %s1415 = scalar_lea.vmem %s3, %s1414
        %s1416 = smul.u32 32, %s15
        %p1417 = scmp.lt.s32.totalorder %s15, 1
        %s1418 = scalar_select %p1417, %s15, 1
        %s1419 = smul.addr %s1418, 2
        %s1420 = scalar_lea.vmem %s4, %s1419
        %v1422 = vld [vmem:[%s0] sm:$0xff]
        %v1423 = vld [vmem:[%s0 + $0x8] sm:$0xff]
        %v1424 = vld [vmem:[%s0 + $0x10] sm:$0x3]
        %v1425 = vld [vmem:[%s1374] sm:$0xff]
        %v1426 = vld [vmem:[%s1374 + $0x8] sm:$0xff]
        %v1427 = vld [vmem:[%s1374 + $0x10] sm:$0xff]
        %v1428 = vld [vmem:[%s1374 + $0x18] sm:$0xff]
        %v1429 = vld [vmem:[%s1374 + $0x20] sm:$0xff]
        %v1430 = vld [vmem:[%s1374 + $0x28] sm:$0xff]
        %v1431 = vld [vmem:[%s1374 + $0x30] sm:$0xff]
        %v1432 = vld [vmem:[%s1374 + $0x38] sm:$0xff]
        %v1433 = vld [vmem:[%s1374 + $0x40] sm:$0xff]
        %v1434 = vld [vmem:[%s1374 + $0x48] sm:$0xff]
        %v1435 = vld [vmem:[%s1374 + $0x50] sm:$0xff]
        %v1436 = vld [vmem:[%s1374 + $0x58] sm:$0xff]
        %v1437 = vld [vmem:[%s1374 + $0x60] sm:$0xff]
        %v1438 = vld [vmem:[%s1374 + $0x68] sm:$0xff]
        %v1439 = vld [vmem:[%s1374 + $0x70] sm:$0xff]
        %v1440 = vld [vmem:[%s1374 + $0x78] sm:$0xff]
        %v1441 = vld [vmem:[%s1374 + $0x80] sm:$0xff]
        %v1442 = vld [vmem:[%s1374 + $0x88] sm:$0xff]
        %v1443 = vld [vmem:[%s1374 + $0x90] sm:$0xff]
        %v1444 = vld [vmem:[%s1374 + $0x98] sm:$0xff]
        %v1445 = vld [vmem:[%s1374 + $0xa0] sm:$0xff]
        %v1446 = vld [vmem:[%s1374 + $0xa8] sm:$0xff]
        %v1447 = vld [vmem:[%s1374 + $0xb0] sm:$0xff]
        %v1448 = vld [vmem:[%s1374 + $0xb8] sm:$0xff]
        %v1449 = vld [vmem:[%s1374 + $0xc0] sm:$0xff]
        %v1450 = vld [vmem:[%s1374 + $0xc8] sm:$0xff]
        %v1451 = vld [vmem:[%s1374 + $0xd0] sm:$0xff]
        %v1452 = vld [vmem:[%s1374 + $0xd8] sm:$0xff]
        %v1453 = vld [vmem:[%s1374 + $0xe0] sm:$0xff]
        %v1454 = vld [vmem:[%s1374 + $0xe8] sm:$0xff]
        %v1455 = vld [vmem:[%s1374 + $0xf0] sm:$0xff]
        %v1456 = vld [vmem:[%s1374 + $0xf8] sm:$0xff]
        %v1457 = vld [vmem:[%s1374 + $0x100] sm:$0xff]
        %v1458 = vld [vmem:[%s1374 + $0x108] sm:$0xff]
        %v1459 = vld [vmem:[%s1374 + $0x110] sm:$0xff]
        %v1460 = vld [vmem:[%s1374 + $0x118] sm:$0xff]
        %v1461 = vld [vmem:[%s1374 + $0x120] sm:$0xff]
        %v1462 = vld [vmem:[%s1374 + $0x128] sm:$0xff]
        %v1463 = vld [vmem:[%s1374 + $0x130] sm:$0xff]
        %v1464 = vld [vmem:[%s1374 + $0x138] sm:$0xff]
        %v1465 = vld [vmem:[%s1374 + $0x140] sm:$0xff]
        %v1466 = vld [vmem:[%s1374 + $0x148] sm:$0xff]
        %v1467 = vld [vmem:[%s1374 + $0x150] sm:$0xff]
        %v1468 = vld [vmem:[%s1374 + $0x158] sm:$0xff]
        %v1469 = vld [vmem:[%s1374 + $0x160] sm:$0xff]
        %v1470 = vld [vmem:[%s1374 + $0x168] sm:$0xff]
        %v1471 = vld [vmem:[%s1374 + $0x170] sm:$0xff]
        %v1472 = vld [vmem:[%s1374 + $0x178] sm:$0xff]
        %v1473 = vld [vmem:[%s1374 + $0x180] sm:$0xff]
        %v1474 = vld [vmem:[%s1374 + $0x188] sm:$0xff]
        %v1475 = vld [vmem:[%s1374 + $0x190] sm:$0xff]
        %v1476 = vld [vmem:[%s1374 + $0x198] sm:$0xff]
        %v1477 = vld [vmem:[%s1374 + $0x1a0] sm:$0xff]
        %v1478 = vld [vmem:[%s1374 + $0x1a8] sm:$0xff]
        %v1479 = vld [vmem:[%s1374 + $0x1b0] sm:$0xff]
        %v1480 = vld [vmem:[%s1374 + $0x1b8] sm:$0xff]
        %v1481 = vld [vmem:[%s1374 + $0x1c0] sm:$0xff]
        %v1482 = vld [vmem:[%s1374 + $0x1c8] sm:$0xff]
        %v1483 = vld [vmem:[%s1374 + $0x1d0] sm:$0xff]
        %v1484 = vld [vmem:[%s1374 + $0x1d8] sm:$0xff]
        %v1485 = vld [vmem:[%s1374 + $0x1e0] sm:$0xff]
        %v1486 = vld [vmem:[%s1374 + $0x1e8] sm:$0xff]
        %v1487 = vld [vmem:[%s1374 + $0x1f0] sm:$0xff]
        %v1488 = vld [vmem:[%s1374 + $0x1f8] sm:$0xff]
        %v1489 = vld [vmem:[%s1374 + $0x200] sm:$0xff]
        %v1490 = vld [vmem:[%s1374 + $0x208] sm:$0xff]
        %v1491 = vld [vmem:[%s1374 + $0x210] sm:$0xff]
        %v1492 = vld [vmem:[%s1374 + $0x218] sm:$0xff]
        %v1493 = vld [vmem:[%s1374 + $0x220] sm:$0xff]
        %v1494 = vld [vmem:[%s1374 + $0x228] sm:$0xff]
        %v1495 = vld [vmem:[%s1374 + $0x230] sm:$0xff]
        %v1496 = vld [vmem:[%s1374 + $0x238] sm:$0xff]
        %v1497 = vld [vmem:[%s1374 + $0x240] sm:$0xff]
        %v1498 = vld [vmem:[%s1374 + $0x248] sm:$0xff]
        %v1499 = vld [vmem:[%s1374 + $0x250] sm:$0xff]
        %v1500 = vld [vmem:[%s1374 + $0x258] sm:$0xff]
        %v1501 = vld [vmem:[%s1374 + $0x260] sm:$0xff]
        %v1502 = vld [vmem:[%s1374 + $0x268] sm:$0xff]
        %v1503 = vld [vmem:[%s1374 + $0x270] sm:$0xff]
        %v1504 = vld [vmem:[%s1374 + $0x278] sm:$0xff]
        %v1505 = vld [vmem:[%s1374 + $0x280] sm:$0xff]
        %v1506 = vld [vmem:[%s1374 + $0x288] sm:$0xff]
        %v1507 = vld [vmem:[%s1374 + $0x290] sm:$0xff]
        %v1508 = vld [vmem:[%s1374 + $0x298] sm:$0xff]
        %v1509 = vld [vmem:[%s1374 + $0x2a0] sm:$0xff]
        %v1510 = vld [vmem:[%s1374 + $0x2a8] sm:$0xff]
        %v1511 = vld [vmem:[%s1374 + $0x2b0] sm:$0xff]
        %v1512 = vld [vmem:[%s1374 + $0x2b8] sm:$0xff]
        %v1513 = vld [vmem:[%s1374 + $0x2c0] sm:$0xff]
        %v1514 = vld [vmem:[%s1374 + $0x2c8] sm:$0xff]
        %v1515 = vld [vmem:[%s1374 + $0x2d0] sm:$0xff]
        %v1516 = vld [vmem:[%s1374 + $0x2d8] sm:$0xff]
        %v1517 = vld [vmem:[%s1374 + $0x2e0] sm:$0xff]
        %v1518 = vld [vmem:[%s1374 + $0x2e8] sm:$0xff]
        %v1519 = vld [vmem:[%s1374 + $0x2f0] sm:$0xff]
        %v1520 = vld [vmem:[%s1374 + $0x2f8] sm:$0xff]
        %v1521 = vld [vmem:[%s1374 + $0x300] sm:$0xff]
        %v1522 = vld [vmem:[%s1374 + $0x308] sm:$0xff]
        %v1523 = vld [vmem:[%s1374 + $0x310] sm:$0xff]
        %v1524 = vld [vmem:[%s1374 + $0x318] sm:$0xff]
        %v1525 = vld [vmem:[%s1374 + $0x320] sm:$0xff]
        %v1526 = vld [vmem:[%s1374 + $0x328] sm:$0xff]
        %v1527 = vld [vmem:[%s1374 + $0x330] sm:$0xff]
        %v1528 = vld [vmem:[%s1374 + $0x338] sm:$0xff]
        %v1529 = vld [vmem:[%s1374 + $0x340] sm:$0xff]
        %v1530 = vld [vmem:[%s1374 + $0x348] sm:$0xff]
        %v1531 = vld [vmem:[%s1374 + $0x350] sm:$0xff]
        %v1532 = vld [vmem:[%s1374 + $0x358] sm:$0xff]
        %v1533 = vld [vmem:[%s1374 + $0x360] sm:$0xff]
        %v1534 = vld [vmem:[%s1374 + $0x368] sm:$0xff]
        %v1535 = vld [vmem:[%s1374 + $0x370] sm:$0xff]
        %v1536 = vld [vmem:[%s1374 + $0x378] sm:$0xff]
        %v1537 = vld [vmem:[%s1374 + $0x380] sm:$0xff]
        %v1538 = vld [vmem:[%s1374 + $0x388] sm:$0xff]
        %v1539 = vld [vmem:[%s1374 + $0x390] sm:$0xff]
        %v1540 = vld [vmem:[%s1374 + $0x398] sm:$0xff]
        %v1541 = vld [vmem:[%s1374 + $0x3a0] sm:$0xff]
        %v1542 = vld [vmem:[%s1374 + $0x3a8] sm:$0xff]
        %v1543 = vld [vmem:[%s1374 + $0x3b0] sm:$0xff]
        %v1544 = vld [vmem:[%s1374 + $0x3b8] sm:$0xff]
        %v1545 = vld [vmem:[%s1374 + $0x3c0] sm:$0xff]
        %v1546 = vld [vmem:[%s1374 + $0x3c8] sm:$0xff]
        %v1547 = vld [vmem:[%s1374 + $0x3d0] sm:$0xff]
        %v1548 = vld [vmem:[%s1374 + $0x3d8] sm:$0xff]
        %v1549 = vld [vmem:[%s1374 + $0x3e0] sm:$0xff]
        %v1550 = vld [vmem:[%s1374 + $0x3e8] sm:$0xff]
        %v1551 = vld [vmem:[%s1374 + $0x3f0] sm:$0xff]
        %v1552 = vld [vmem:[%s1374 + $0x3f8] sm:$0xff]
        %v1553 = vld [vmem:[%s1374 + $0x400] sm:$0xff]
        %v1554 = vld [vmem:[%s1374 + $0x408] sm:$0xff]
        %v1555 = vld [vmem:[%s1374 + $0x410] sm:$0xff]
        %v1556 = vld [vmem:[%s1374 + $0x418] sm:$0xff]
        %v1557 = vld [vmem:[%s1374 + $0x420] sm:$0xff]
        %v1558 = vld [vmem:[%s1374 + $0x428] sm:$0xff]
        %v1559 = vld [vmem:[%s1374 + $0x430] sm:$0xff]
        %v1560 = vld [vmem:[%s1374 + $0x438] sm:$0xff]
        %v1561 = vld [vmem:[%s1374 + $0x440] sm:$0xff]
        %v1562 = vld [vmem:[%s1374 + $0x448] sm:$0xff]
        %v1563 = vld [vmem:[%s1374 + $0x450] sm:$0xff]
        %v1564 = vld [vmem:[%s1374 + $0x458] sm:$0xff]
        %v1565 = vld [vmem:[%s1374 + $0x460] sm:$0xff]
        %v1566 = vld [vmem:[%s1374 + $0x468] sm:$0xff]
        %v1567 = vld [vmem:[%s1374 + $0x470] sm:$0xff]
        %v1568 = vld [vmem:[%s1374 + $0x478] sm:$0xff]
        %v1569 = vld [vmem:[%s1374 + $0x480] sm:$0xff]
        %v1570 = vld [vmem:[%s1374 + $0x488] sm:$0xff]
        %v1571 = vld [vmem:[%s1374 + $0x490] sm:$0xff]
        %v1572 = vld [vmem:[%s1374 + $0x498] sm:$0xff]
        %v1573 = vld [vmem:[%s1374 + $0x4a0] sm:$0xff]
        %v1574 = vld [vmem:[%s1374 + $0x4a8] sm:$0xff]
        %v1575 = vld [vmem:[%s1374 + $0x4b0] sm:$0xff]
        %v1576 = vld [vmem:[%s1374 + $0x4b8] sm:$0xff]
        %v1577 = vld [vmem:[%s1374 + $0x4c0] sm:$0xff]
        %v1578 = vld [vmem:[%s1374 + $0x4c8] sm:$0xff]
        %v1579 = vld [vmem:[%s1374 + $0x4d0] sm:$0xff]
        %v1580 = vld [vmem:[%s1374 + $0x4d8] sm:$0xff]
        %v1581 = vld [vmem:[%s1374 + $0x4e0] sm:$0xff]
        %v1582 = vld [vmem:[%s1374 + $0x4e8] sm:$0xff]
        %v1583 = vld [vmem:[%s1374 + $0x4f0] sm:$0xff]
        %v1584 = vld [vmem:[%s1374 + $0x4f8] sm:$0xff]
        %v1585 = vld [vmem:[%s1374 + $0x500] sm:$0xff]
        %v1586 = vld [vmem:[%s1374 + $0x508] sm:$0xff]
        %v1587 = vld [vmem:[%s1374 + $0x510] sm:$0xff]
        %v1588 = vld [vmem:[%s1374 + $0x518] sm:$0xff]
        %v1589 = vld [vmem:[%s1374 + $0x520] sm:$0xff]
        %v1590 = vld [vmem:[%s1374 + $0x528] sm:$0xff]
        %v1591 = vld [vmem:[%s1374 + $0x530] sm:$0xff]
        %v1592 = vld [vmem:[%s1374 + $0x538] sm:$0xff]
        %v1593 = vld [vmem:[%s1374 + $0x540] sm:$0xff]
        %v1594 = vld [vmem:[%s1374 + $0x548] sm:$0xff]
        %v1595 = vld [vmem:[%s1374 + $0x550] sm:$0xff]
        %v1596 = vld [vmem:[%s1374 + $0x558] sm:$0xff]
        %v1597 = vld [vmem:[%s1374 + $0x560] sm:$0xff]
        %v1598 = vld [vmem:[%s1374 + $0x568] sm:$0xff]
        %v1599 = vld [vmem:[%s1374 + $0x570] sm:$0xff]
        %v1600 = vld [vmem:[%s1374 + $0x578] sm:$0xff]
        %v1601 = vld [vmem:[%s1374 + $0x580] sm:$0xff]
        %v1602 = vld [vmem:[%s1374 + $0x588] sm:$0xff]
        %v1603 = vld [vmem:[%s1374 + $0x590] sm:$0xff]
        %v1604 = vld [vmem:[%s1374 + $0x598] sm:$0xff]
        %v1605 = vld [vmem:[%s1374 + $0x5a0] sm:$0xff]
        %v1606 = vld [vmem:[%s1374 + $0x5a8] sm:$0xff]
        %v1607 = vld [vmem:[%s1374 + $0x5b0] sm:$0xff]
        %v1608 = vld [vmem:[%s1374 + $0x5b8] sm:$0xff]
        %v1609 = vld [vmem:[%s1374 + $0x5c0] sm:$0xff]
        %v1610 = vld [vmem:[%s1374 + $0x5c8] sm:$0xff]
        %v1611 = vld [vmem:[%s1374 + $0x5d0] sm:$0xff]
        %v1612 = vld [vmem:[%s1374 + $0x5d8] sm:$0xff]
        %v1613 = vld [vmem:[%s1374 + $0x5e0] sm:$0xff]
        %v1614 = vld [vmem:[%s1374 + $0x5e8] sm:$0xff]
        %v1615 = vld [vmem:[%s1374 + $0x5f0] sm:$0xff]
        %v1616 = vld [vmem:[%s1374 + $0x5f8] sm:$0xff]
        %v1617 = vld [vmem:[%s1374 + $0x600] sm:$0xff]
        %v1618 = vld [vmem:[%s1374 + $0x608] sm:$0xff]
        %v1619 = vld [vmem:[%s1374 + $0x610] sm:$0xff]
        %v1620 = vld [vmem:[%s1374 + $0x618] sm:$0xff]
        %v1621 = vld [vmem:[%s1374 + $0x620] sm:$0xff]
        %v1622 = vld [vmem:[%s1374 + $0x628] sm:$0xff]
        %v1623 = vld [vmem:[%s1374 + $0x630] sm:$0xff]
        %v1624 = vld [vmem:[%s1374 + $0x638] sm:$0xff]
        %v1625 = vld [vmem:[%s1374 + $0x640] sm:$0xff]
        %v1626 = vld [vmem:[%s1374 + $0x648] sm:$0xff]
        %v1627 = vld [vmem:[%s1374 + $0x650] sm:$0xff]
        %v1628 = vld [vmem:[%s1374 + $0x658] sm:$0xff]
        %v1629 = vld [vmem:[%s1374 + $0x660] sm:$0xff]
        %v1630 = vld [vmem:[%s1374 + $0x668] sm:$0xff]
        %v1631 = vld [vmem:[%s1374 + $0x670] sm:$0xff]
        %v1632 = vld [vmem:[%s1374 + $0x678] sm:$0xff]
        %v1633 = vld [vmem:[%s1374 + $0x680] sm:$0xff]
        %v1634 = vld [vmem:[%s1374 + $0x688] sm:$0xff]
        %v1635 = vld [vmem:[%s1374 + $0x690] sm:$0xff]
        %v1636 = vld [vmem:[%s1374 + $0x698] sm:$0xff]
        %v1637 = vld [vmem:[%s1374 + $0x6a0] sm:$0xff]
        %v1638 = vld [vmem:[%s1374 + $0x6a8] sm:$0xff]
        %v1639 = vld [vmem:[%s1374 + $0x6b0] sm:$0xff]
        %v1640 = vld [vmem:[%s1374 + $0x6b8] sm:$0xff]
        %v1641 = vld [vmem:[%s1374 + $0x6c0] sm:$0xff]
        %v1642 = vld [vmem:[%s1374 + $0x6c8] sm:$0xff]
        %v1643 = vld [vmem:[%s1374 + $0x6d0] sm:$0xff]
        %v1644 = vld [vmem:[%s1374 + $0x6d8] sm:$0xff]
        %v1645 = vld [vmem:[%s1374 + $0x6e0] sm:$0xff]
        %v1646 = vld [vmem:[%s1374 + $0x6e8] sm:$0xff]
        %v1647 = vld [vmem:[%s1374 + $0x6f0] sm:$0xff]
        %v1648 = vld [vmem:[%s1374 + $0x6f8] sm:$0xff]
        %v1649 = vld [vmem:[%s1374 + $0x700] sm:$0xff]
        %v1650 = vld [vmem:[%s1374 + $0x708] sm:$0xff]
        %v1651 = vld [vmem:[%s1374 + $0x710] sm:$0xff]
        %v1652 = vld [vmem:[%s1374 + $0x718] sm:$0xff]
        %v1653 = vld [vmem:[%s1374 + $0x720] sm:$0xff]
        %v1654 = vld [vmem:[%s1374 + $0x728] sm:$0xff]
        %v1655 = vld [vmem:[%s1374 + $0x730] sm:$0xff]
        %v1656 = vld [vmem:[%s1374 + $0x738] sm:$0xff]
        %v1657 = vld [vmem:[%s1374 + $0x740] sm:$0xff]
        %v1658 = vld [vmem:[%s1374 + $0x748] sm:$0xff]
        %v1659 = vld [vmem:[%s1374 + $0x750] sm:$0xff]
        %v1660 = vld [vmem:[%s1374 + $0x758] sm:$0xff]
        %v1661 = vld [vmem:[%s1374 + $0x760] sm:$0xff]
        %v1662 = vld [vmem:[%s1374 + $0x768] sm:$0xff]
        %v1663 = vld [vmem:[%s1374 + $0x770] sm:$0xff]
        %v1664 = vld [vmem:[%s1374 + $0x778] sm:$0xff]
        %v1665 = vld [vmem:[%s1374 + $0x780] sm:$0xff]
        %v1666 = vld [vmem:[%s1374 + $0x788] sm:$0xff]
        %v1667 = vld [vmem:[%s1374 + $0x790] sm:$0xff]
        %v1668 = vld [vmem:[%s1374 + $0x798] sm:$0xff]
        %v1669 = vld [vmem:[%s1374 + $0x7a0] sm:$0xff]
        %v1670 = vld [vmem:[%s1374 + $0x7a8] sm:$0xff]
        %v1671 = vld [vmem:[%s1374 + $0x7b0] sm:$0xff]
        %v1672 = vld [vmem:[%s1374 + $0x7b8] sm:$0xff]
        %v1673 = vld [vmem:[%s1374 + $0x7c0] sm:$0xff]
        %v1674 = vld [vmem:[%s1374 + $0x7c8] sm:$0xff]
        %v1675 = vld [vmem:[%s1374 + $0x7d0] sm:$0xff]
        %v1676 = vld [vmem:[%s1374 + $0x7d8] sm:$0xff]
        %v1677 = vld [vmem:[%s1374 + $0x7e0] sm:$0xff]
        %v1678 = vld [vmem:[%s1374 + $0x7e8] sm:$0xff]
        %v1679 = vld [vmem:[%s1374 + $0x7f0] sm:$0xff]
        %v1680 = vld [vmem:[%s1374 + $0x7f8] sm:$0xff]
        %v1681 = vld [vmem:[%s1374 + $0x800] sm:$0xff]
        %v1682 = vld [vmem:[%s1374 + $0x808] sm:$0xff]
        %v1683 = vld [vmem:[%s1374 + $0x810] sm:$0xff]
        %v1684 = vld [vmem:[%s1374 + $0x818] sm:$0xff]
        %v1685 = vld [vmem:[%s1374 + $0x820] sm:$0xff]
        %v1686 = vld [vmem:[%s1374 + $0x828] sm:$0xff]
        %v1687 = vld [vmem:[%s1374 + $0x830] sm:$0xff]
        %v1688 = vld [vmem:[%s1374 + $0x838] sm:$0xff]
        %v1689 = vld [vmem:[%s1374 + $0x840] sm:$0xff]
        %v1690 = vld [vmem:[%s1374 + $0x848] sm:$0xff]
        %v1691 = vld [vmem:[%s1374 + $0x850] sm:$0xff]
        %v1692 = vld [vmem:[%s1374 + $0x858] sm:$0xff]
        %v1693 = vld [vmem:[%s1374 + $0x860] sm:$0xff]
        %v1694 = vld [vmem:[%s1374 + $0x868] sm:$0xff]
        %v1695 = vld [vmem:[%s1374 + $0x870] sm:$0xff]
        %v1696 = vld [vmem:[%s1374 + $0x878] sm:$0xff]
        %v1697 = vld [vmem:[%s1374 + $0x880] sm:$0xff]
        %v1698 = vld [vmem:[%s1374 + $0x888] sm:$0xff]
        %v1699 = vld [vmem:[%s1374 + $0x890] sm:$0xff]
        %v1700 = vld [vmem:[%s1374 + $0x898] sm:$0xff]
        %v1701 = vld [vmem:[%s1374 + $0x8a0] sm:$0xff]
        %v1702 = vld [vmem:[%s1374 + $0x8a8] sm:$0xff]
        %v1703 = vld [vmem:[%s1374 + $0x8b0] sm:$0xff]
        %v1704 = vld [vmem:[%s1374 + $0x8b8] sm:$0xff]
        %v1705 = vld [vmem:[%s1374 + $0x8c0] sm:$0xff]
        %v1706 = vld [vmem:[%s1374 + $0x8c8] sm:$0xff]
        %v1707 = vld [vmem:[%s1374 + $0x8d0] sm:$0xff]
        %v1708 = vld [vmem:[%s1374 + $0x8d8] sm:$0xff]
        %v1709 = vld [vmem:[%s1374 + $0x8e0] sm:$0xff]
        %v1710 = vld [vmem:[%s1374 + $0x8e8] sm:$0xff]
        %v1711 = vld [vmem:[%s1374 + $0x8f0] sm:$0xff]
        %v1712 = vld [vmem:[%s1374 + $0x8f8] sm:$0xff]
        %v1713 = vld [vmem:[%s1409] sm:$0x3]
        %v1715 = vlaneseq
        %v1716 = vshrl.u32 %v1715, 7
        %v1717 = vsub.s32 0, %v1716
        %v1718 = vrot.slane %v1713, %v1717
        %v1719 = vlaneseq
        %v1720 = vshrl.u32 %v1719, 7
        %v1721 = vsub.s32 1, %v1720
        %v1722 = vrot.slane %v1713, %v1721
        %v1728 = vcombine.high %v1422, %v1422
        %v1730 = vunpack.c.l.s4 1966171168
        %v1731 = vunpack.c.0.s8 %v1730
        %v1732 = vlaneseq
        %v1733 = vshrl.u32 %v1732, 7
        %v1734 = vsub.s32 %v1731, %v1733
        %v1735 = vrot.slane %v1422, %v1734
        %v1737 = vunpack.c.l.s4 1966171168
        %v1738 = vunpack.c.0.s8 %v1737
        %v1739 = vlaneseq
        %v1740 = vshrl.u32 %v1739, 7
        %v1741 = vsub.s32 %v1738, %v1740
        %v1742 = vrot.slane %v1728, %v1741
        %v1743 = vcombine.high %v1735, %v1735
        %v1744 = vcombine.high %v1742, %v1742
        %v1746 = vunpack.c.l.s4 1966171168
        %v1747 = vunpack.c.0.s8 %v1746
        %v1748 = vlaneseq
        %v1749 = vshrl.u32 %v1748, 7
        %v1750 = vsub.s32 %v1747, %v1749
        %v1751 = vrot.slane %v1735, %v1750
        %v1753 = vunpack.c.l.s4 1966171168
        %v1754 = vunpack.c.0.s8 %v1753
        %v1755 = vlaneseq
        %v1756 = vshrl.u32 %v1755, 7
        %v1757 = vsub.s32 %v1754, %v1756
        %v1758 = vrot.slane %v1742, %v1757
        %v1760 = vunpack.c.l.s4 1966171168
        %v1761 = vunpack.c.0.s8 %v1760
        %v1762 = vlaneseq
        %v1763 = vshrl.u32 %v1762, 7
        %v1764 = vsub.s32 %v1761, %v1763
        %v1765 = vrot.slane %v1743, %v1764
        %v1767 = vunpack.c.l.s4 1966171168
        %v1768 = vunpack.c.0.s8 %v1767
        %v1769 = vlaneseq
        %v1770 = vshrl.u32 %v1769, 7
        %v1771 = vsub.s32 %v1768, %v1770
        %v1772 = vrot.slane %v1744, %v1771
        %v1773 = vcombine.high %v1751, %v1751
        %v1774 = vcombine.high %v1758, %v1758
        %v1775 = vcombine.high %v1765, %v1765
        %v1776 = vcombine.high %v1772, %v1772
        %v1777 = vcombine.high %v1423, %v1423
        %v1779 = vunpack.c.l.s4 1966171168
        %v1780 = vunpack.c.0.s8 %v1779
        %v1781 = vlaneseq
        %v1782 = vshrl.u32 %v1781, 7
        %v1783 = vsub.s32 %v1780, %v1782
        %v1784 = vrot.slane %v1423, %v1783
        %v1786 = vunpack.c.l.s4 1966171168
        %v1787 = vunpack.c.0.s8 %v1786
        %v1788 = vlaneseq
        %v1789 = vshrl.u32 %v1788, 7
        %v1790 = vsub.s32 %v1787, %v1789
        %v1791 = vrot.slane %v1777, %v1790
        %v1792 = vcombine.high %v1784, %v1784
        %v1793 = vcombine.high %v1791, %v1791
        %v1795 = vunpack.c.l.s4 1966171168
        %v1796 = vunpack.c.0.s8 %v1795
        %v1797 = vlaneseq
        %v1798 = vshrl.u32 %v1797, 7
        %v1799 = vsub.s32 %v1796, %v1798
        %v1800 = vrot.slane %v1784, %v1799
        %v1802 = vunpack.c.l.s4 1966171168
        %v1803 = vunpack.c.0.s8 %v1802
        %v1804 = vlaneseq
        %v1805 = vshrl.u32 %v1804, 7
        %v1806 = vsub.s32 %v1803, %v1805
        %v1807 = vrot.slane %v1791, %v1806
        %v1809 = vunpack.c.l.s4 1966171168
        %v1810 = vunpack.c.0.s8 %v1809
        %v1811 = vlaneseq
        %v1812 = vshrl.u32 %v1811, 7
        %v1813 = vsub.s32 %v1810, %v1812
        %v1814 = vrot.slane %v1792, %v1813
        %v1816 = vunpack.c.l.s4 1966171168
        %v1817 = vunpack.c.0.s8 %v1816
        %v1818 = vlaneseq
        %v1819 = vshrl.u32 %v1818, 7
        %v1820 = vsub.s32 %v1817, %v1819
        %v1821 = vrot.slane %v1793, %v1820
        %v1822 = vcombine.high %v1800, %v1800
        %v1823 = vcombine.high %v1807, %v1807
        %v1824 = vcombine.high %v1814, %v1814
        %v1825 = vcombine.high %v1821, %v1821
        %v1827 = vunpack.c.l.s4 1966171168
        %v1828 = vunpack.c.0.s8 %v1827
        %v1829 = vlaneseq
        %v1830 = vshrl.u32 %v1829, 7
        %v1831 = vsub.s32 %v1828, %v1830
        %v1832 = vrot.slane %v1424, %v1831
        %v1833 = vcombine.high %v1832, %v1832
        %v1835 = vunpack.c.l.s4 1966171168
        %v1836 = vunpack.c.0.s8 %v1835
        %v1837 = vlaneseq
        %v1838 = vshrl.u32 %v1837, 7
        %v1839 = vsub.s32 %v1836, %v1838
        %v1840 = vrot.slane %v1832, %v1839
        %v1842 = vunpack.c.l.s4 1966171168
        %v1843 = vunpack.c.0.s8 %v1842
        %v1844 = vlaneseq
        %v1845 = vshrl.u32 %v1844, 7
        %v1846 = vsub.s32 %v1843, %v1845
        %v1847 = vrot.slane %v1833, %v1846
        %v2154 = vunpack.c.l.b16 %v1425
        %v2155 = vunpack.c.h.b16 %v1425
        %v2156 = vunpack.c.l.b16 %v1426
        %v2157 = vunpack.c.h.b16 %v1426
        %v2158 = vunpack.c.l.b16 %v1427
        %v2159 = vunpack.c.h.b16 %v1427
        %v2160 = vunpack.c.l.b16 %v1428
        %v2161 = vunpack.c.h.b16 %v1428
        %v2162 = vunpack.c.l.b16 %v1429
        %v2163 = vunpack.c.h.b16 %v1429
        %v2164 = vunpack.c.l.b16 %v1430
        %v2165 = vunpack.c.h.b16 %v1430
        %v2166 = vunpack.c.l.b16 %v1431
        %v2167 = vunpack.c.h.b16 %v1431
        %v2168 = vunpack.c.l.b16 %v1432
        %v2169 = vunpack.c.h.b16 %v1432
        %v2170 = vunpack.c.l.b16 %v1433
        %v2171 = vunpack.c.h.b16 %v1433
        %v2172 = vunpack.c.l.b16 %v1434
        %v2173 = vunpack.c.h.b16 %v1434
        %v2174 = vunpack.c.l.b16 %v1435
        %v2175 = vunpack.c.h.b16 %v1435
        %v2176 = vunpack.c.l.b16 %v1436
        %v2177 = vunpack.c.h.b16 %v1436
        %v2178 = vunpack.c.l.b16 %v1437
        %v2179 = vunpack.c.h.b16 %v1437
        %v2180 = vunpack.c.l.b16 %v1438
        %v2181 = vunpack.c.h.b16 %v1438
        %v2182 = vunpack.c.l.b16 %v1439
        %v2183 = vunpack.c.h.b16 %v1439
        %v2184 = vunpack.c.l.b16 %v1440
        %v2185 = vunpack.c.h.b16 %v1440
        %v2186 = vunpack.c.l.b16 %v1441
        %v2187 = vunpack.c.h.b16 %v1441
        %v2188 = vunpack.c.l.b16 %v1442
        %v2189 = vunpack.c.h.b16 %v1442
        %v2190 = vunpack.c.l.b16 %v1443
        %v2191 = vunpack.c.h.b16 %v1443
        %v2192 = vunpack.c.l.b16 %v1444
        %v2193 = vunpack.c.h.b16 %v1444
        %v2194 = vunpack.c.l.b16 %v1445
        %v2195 = vunpack.c.h.b16 %v1445
        %v2196 = vunpack.c.l.b16 %v1446
        %v2197 = vunpack.c.h.b16 %v1446
        %v2198 = vunpack.c.l.b16 %v1447
        %v2199 = vunpack.c.h.b16 %v1447
        %v2200 = vunpack.c.l.b16 %v1448
        %v2201 = vunpack.c.h.b16 %v1448
        %v2202 = vunpack.c.l.b16 %v1449
        %v2203 = vunpack.c.h.b16 %v1449
        %v2204 = vunpack.c.l.b16 %v1450
        %v2205 = vunpack.c.h.b16 %v1450
        %v2206 = vunpack.c.l.b16 %v1451
        %v2207 = vunpack.c.h.b16 %v1451
        %v2208 = vunpack.c.l.b16 %v1452
        %v2209 = vunpack.c.h.b16 %v1452
        %v2210 = vunpack.c.l.b16 %v1453
        %v2211 = vunpack.c.h.b16 %v1453
        %v2212 = vunpack.c.l.b16 %v1454
        %v2213 = vunpack.c.h.b16 %v1454
        %v2214 = vunpack.c.l.b16 %v1455
        %v2215 = vunpack.c.h.b16 %v1455
        %v2216 = vunpack.c.l.b16 %v1456
        %v2217 = vunpack.c.h.b16 %v1456
        %v2218 = vunpack.c.l.b16 %v1457
        %v2219 = vunpack.c.h.b16 %v1457
        %v2220 = vunpack.c.l.b16 %v1458
        %v2221 = vunpack.c.h.b16 %v1458
        %v2222 = vunpack.c.l.b16 %v1459
        %v2223 = vunpack.c.h.b16 %v1459
        %v2224 = vunpack.c.l.b16 %v1460
        %v2225 = vunpack.c.h.b16 %v1460
        %v2226 = vunpack.c.l.b16 %v1461
        %v2227 = vunpack.c.h.b16 %v1461
        %v2228 = vunpack.c.l.b16 %v1462
        %v2229 = vunpack.c.h.b16 %v1462
        %v2230 = vunpack.c.l.b16 %v1463
        %v2231 = vunpack.c.h.b16 %v1463
        %v2232 = vunpack.c.l.b16 %v1464
        %v2233 = vunpack.c.h.b16 %v1464
        %v2234 = vunpack.c.l.b16 %v1465
        %v2235 = vunpack.c.h.b16 %v1465
        %v2236 = vunpack.c.l.b16 %v1466
        %v2237 = vunpack.c.h.b16 %v1466
        %v2238 = vunpack.c.l.b16 %v1467
        %v2239 = vunpack.c.h.b16 %v1467
        %v2240 = vunpack.c.l.b16 %v1468
        %v2241 = vunpack.c.h.b16 %v1468
        %v2242 = vunpack.c.l.b16 %v1469
        %v2243 = vunpack.c.h.b16 %v1469
        %v2244 = vunpack.c.l.b16 %v1470
        %v2245 = vunpack.c.h.b16 %v1470
        %v2246 = vunpack.c.l.b16 %v1471
        %v2247 = vunpack.c.h.b16 %v1471
        %v2248 = vunpack.c.l.b16 %v1472
        %v2249 = vunpack.c.h.b16 %v1472
        %v2250 = vunpack.c.l.b16 %v1473
        %v2251 = vunpack.c.h.b16 %v1473
        %v2252 = vunpack.c.l.b16 %v1474
        %v2253 = vunpack.c.h.b16 %v1474
        %v2254 = vunpack.c.l.b16 %v1475
        %v2255 = vunpack.c.h.b16 %v1475
        %v2256 = vunpack.c.l.b16 %v1476
        %v2257 = vunpack.c.h.b16 %v1476
        %v2258 = vunpack.c.l.b16 %v1477
        %v2259 = vunpack.c.h.b16 %v1477
        %v2260 = vunpack.c.l.b16 %v1478
        %v2261 = vunpack.c.h.b16 %v1478
        %v2262 = vunpack.c.l.b16 %v1479
        %v2263 = vunpack.c.h.b16 %v1479
        %v2264 = vunpack.c.l.b16 %v1480
        %v2265 = vunpack.c.h.b16 %v1480
        %v2266 = vunpack.c.l.b16 %v1481
        %v2267 = vunpack.c.h.b16 %v1481
        %v2268 = vunpack.c.l.b16 %v1482
        %v2269 = vunpack.c.h.b16 %v1482
        %v2270 = vunpack.c.l.b16 %v1483
        %v2271 = vunpack.c.h.b16 %v1483
        %v2272 = vunpack.c.l.b16 %v1484
        %v2273 = vunpack.c.h.b16 %v1484
        %v2274 = vunpack.c.l.b16 %v1485
        %v2275 = vunpack.c.h.b16 %v1485
        %v2276 = vunpack.c.l.b16 %v1486
        %v2277 = vunpack.c.h.b16 %v1486
        %v2278 = vunpack.c.l.b16 %v1487
        %v2279 = vunpack.c.h.b16 %v1487
        %v2280 = vunpack.c.l.b16 %v1488
        %v2281 = vunpack.c.h.b16 %v1488
        %v2282 = vunpack.c.l.b16 %v1489
        %v2283 = vunpack.c.h.b16 %v1489
        %v2284 = vunpack.c.l.b16 %v1490
        %v2285 = vunpack.c.h.b16 %v1490
        %v2286 = vunpack.c.l.b16 %v1491
        %v2287 = vunpack.c.h.b16 %v1491
        %v2288 = vunpack.c.l.b16 %v1492
        %v2289 = vunpack.c.h.b16 %v1492
        %v2290 = vunpack.c.l.b16 %v1493
        %v2291 = vunpack.c.h.b16 %v1493
        %v2292 = vunpack.c.l.b16 %v1494
        %v2293 = vunpack.c.h.b16 %v1494
        %v2294 = vunpack.c.l.b16 %v1495
        %v2295 = vunpack.c.h.b16 %v1495
        %v2296 = vunpack.c.l.b16 %v1496
        %v2297 = vunpack.c.h.b16 %v1496
        %v2298 = vunpack.c.l.b16 %v1497
        %v2299 = vunpack.c.h.b16 %v1497
        %v2300 = vunpack.c.l.b16 %v1498
        %v2301 = vunpack.c.h.b16 %v1498
        %v2302 = vunpack.c.l.b16 %v1499
        %v2303 = vunpack.c.h.b16 %v1499
        %v2304 = vunpack.c.l.b16 %v1500
        %v2305 = vunpack.c.h.b16 %v1500
        %v2306 = vunpack.c.l.b16 %v1501
        %v2307 = vunpack.c.h.b16 %v1501
        %v2308 = vunpack.c.l.b16 %v1502
        %v2309 = vunpack.c.h.b16 %v1502
        %v2310 = vunpack.c.l.b16 %v1503
        %v2311 = vunpack.c.h.b16 %v1503
        %v2312 = vunpack.c.l.b16 %v1504
        %v2313 = vunpack.c.h.b16 %v1504
        %v2314 = vunpack.c.l.b16 %v1505
        %v2315 = vunpack.c.h.b16 %v1505
        %v2316 = vunpack.c.l.b16 %v1506
        %v2317 = vunpack.c.h.b16 %v1506
        %v2318 = vunpack.c.l.b16 %v1507
        %v2319 = vunpack.c.h.b16 %v1507
        %v2320 = vunpack.c.l.b16 %v1508
        %v2321 = vunpack.c.h.b16 %v1508
        %v2322 = vunpack.c.l.b16 %v1509
        %v2323 = vunpack.c.h.b16 %v1509
        %v2324 = vunpack.c.l.b16 %v1510
        %v2325 = vunpack.c.h.b16 %v1510
        %v2326 = vunpack.c.l.b16 %v1511
        %v2327 = vunpack.c.h.b16 %v1511
        %v2328 = vunpack.c.l.b16 %v1512
        %v2329 = vunpack.c.h.b16 %v1512
        %v2330 = vunpack.c.l.b16 %v1513
        %v2331 = vunpack.c.h.b16 %v1513
        %v2332 = vunpack.c.l.b16 %v1514
        %v2333 = vunpack.c.h.b16 %v1514
        %v2334 = vunpack.c.l.b16 %v1515
        %v2335 = vunpack.c.h.b16 %v1515
        %v2336 = vunpack.c.l.b16 %v1516
        %v2337 = vunpack.c.h.b16 %v1516
        %v2338 = vunpack.c.l.b16 %v1517
        %v2339 = vunpack.c.h.b16 %v1517
        %v2340 = vunpack.c.l.b16 %v1518
        %v2341 = vunpack.c.h.b16 %v1518
        %v2342 = vunpack.c.l.b16 %v1519
        %v2343 = vunpack.c.h.b16 %v1519
        %v2344 = vunpack.c.l.b16 %v1520
        %v2345 = vunpack.c.h.b16 %v1520
        %v2346 = vunpack.c.l.b16 %v1521
        %v2347 = vunpack.c.h.b16 %v1521
        %v2348 = vunpack.c.l.b16 %v1522
        %v2349 = vunpack.c.h.b16 %v1522
        %v2350 = vunpack.c.l.b16 %v1523
        %v2351 = vunpack.c.h.b16 %v1523
        %v2352 = vunpack.c.l.b16 %v1524
        %v2353 = vunpack.c.h.b16 %v1524
        %v2354 = vunpack.c.l.b16 %v1525
        %v2355 = vunpack.c.h.b16 %v1525
        %v2356 = vunpack.c.l.b16 %v1526
        %v2357 = vunpack.c.h.b16 %v1526
        %v2358 = vunpack.c.l.b16 %v1527
        %v2359 = vunpack.c.h.b16 %v1527
        %v2360 = vunpack.c.l.b16 %v1528
        %v2361 = vunpack.c.h.b16 %v1528
        %v2362 = vunpack.c.l.b16 %v1529
        %v2363 = vunpack.c.h.b16 %v1529
        %v2364 = vunpack.c.l.b16 %v1530
        %v2365 = vunpack.c.h.b16 %v1530
        %v2366 = vunpack.c.l.b16 %v1531
        %v2367 = vunpack.c.h.b16 %v1531
        %v2368 = vunpack.c.l.b16 %v1532
        %v2369 = vunpack.c.h.b16 %v1532
        %v2370 = vunpack.c.l.b16 %v1533
        %v2371 = vunpack.c.h.b16 %v1533
        %v2372 = vunpack.c.l.b16 %v1534
        %v2373 = vunpack.c.h.b16 %v1534
        %v2374 = vunpack.c.l.b16 %v1535
        %v2375 = vunpack.c.h.b16 %v1535
        %v2376 = vunpack.c.l.b16 %v1536
        %v2377 = vunpack.c.h.b16 %v1536
        %v2378 = vunpack.c.l.b16 %v1537
        %v2379 = vunpack.c.h.b16 %v1537
        %v2380 = vunpack.c.l.b16 %v1538
        %v2381 = vunpack.c.h.b16 %v1538
        %v2382 = vunpack.c.l.b16 %v1539
        %v2383 = vunpack.c.h.b16 %v1539
        %v2384 = vunpack.c.l.b16 %v1540
        %v2385 = vunpack.c.h.b16 %v1540
        %v2386 = vunpack.c.l.b16 %v1541
        %v2387 = vunpack.c.h.b16 %v1541
        %v2388 = vunpack.c.l.b16 %v1542
        %v2389 = vunpack.c.h.b16 %v1542
        %v2390 = vunpack.c.l.b16 %v1543
        %v2391 = vunpack.c.h.b16 %v1543
        %v2392 = vunpack.c.l.b16 %v1544
        %v2393 = vunpack.c.h.b16 %v1544
        %v2394 = vunpack.c.l.b16 %v1545
        %v2395 = vunpack.c.h.b16 %v1545
        %v2396 = vunpack.c.l.b16 %v1546
        %v2397 = vunpack.c.h.b16 %v1546
        %v2398 = vunpack.c.l.b16 %v1547
        %v2399 = vunpack.c.h.b16 %v1547
        %v2400 = vunpack.c.l.b16 %v1548
        %v2401 = vunpack.c.h.b16 %v1548
        %v2402 = vunpack.c.l.b16 %v1549
        %v2403 = vunpack.c.h.b16 %v1549
        %v2404 = vunpack.c.l.b16 %v1550
        %v2405 = vunpack.c.h.b16 %v1550
        %v2406 = vunpack.c.l.b16 %v1551
        %v2407 = vunpack.c.h.b16 %v1551
        %v2408 = vunpack.c.l.b16 %v1552
        %v2409 = vunpack.c.h.b16 %v1552
        %v2410 = vunpack.c.l.b16 %v1553
        %v2411 = vunpack.c.h.b16 %v1553
        %v2412 = vunpack.c.l.b16 %v1554
        %v2413 = vunpack.c.h.b16 %v1554
        %v2414 = vunpack.c.l.b16 %v1555
        %v2415 = vunpack.c.h.b16 %v1555
        %v2416 = vunpack.c.l.b16 %v1556
        %v2417 = vunpack.c.h.b16 %v1556
        %v2418 = vunpack.c.l.b16 %v1557
        %v2419 = vunpack.c.h.b16 %v1557
        %v2420 = vunpack.c.l.b16 %v1558
        %v2421 = vunpack.c.h.b16 %v1558
        %v2422 = vunpack.c.l.b16 %v1559
        %v2423 = vunpack.c.h.b16 %v1559
        %v2424 = vunpack.c.l.b16 %v1560
        %v2425 = vunpack.c.h.b16 %v1560
        %v2426 = vunpack.c.l.b16 %v1561
        %v2427 = vunpack.c.h.b16 %v1561
        %v2428 = vunpack.c.l.b16 %v1562
        %v2429 = vunpack.c.h.b16 %v1562
        %v2430 = vunpack.c.l.b16 %v1563
        %v2431 = vunpack.c.h.b16 %v1563
        %v2432 = vunpack.c.l.b16 %v1564
        %v2433 = vunpack.c.h.b16 %v1564
        %v2434 = vunpack.c.l.b16 %v1565
        %v2435 = vunpack.c.h.b16 %v1565
        %v2436 = vunpack.c.l.b16 %v1566
        %v2437 = vunpack.c.h.b16 %v1566
        %v2438 = vunpack.c.l.b16 %v1567
        %v2439 = vunpack.c.h.b16 %v1567
        %v2440 = vunpack.c.l.b16 %v1568
        %v2441 = vunpack.c.h.b16 %v1568
        %v2442 = vunpack.c.l.b16 %v1569
        %v2443 = vunpack.c.h.b16 %v1569
        %v2444 = vunpack.c.l.b16 %v1570
        %v2445 = vunpack.c.h.b16 %v1570
        %v2446 = vunpack.c.l.b16 %v1571
        %v2447 = vunpack.c.h.b16 %v1571
        %v2448 = vunpack.c.l.b16 %v1572
        %v2449 = vunpack.c.h.b16 %v1572
        %v2450 = vunpack.c.l.b16 %v1573
        %v2451 = vunpack.c.h.b16 %v1573
        %v2452 = vunpack.c.l.b16 %v1574
        %v2453 = vunpack.c.h.b16 %v1574
        %v2454 = vunpack.c.l.b16 %v1575
        %v2455 = vunpack.c.h.b16 %v1575
        %v2456 = vunpack.c.l.b16 %v1576
        %v2457 = vunpack.c.h.b16 %v1576
        %v2458 = vunpack.c.l.b16 %v1577
        %v2459 = vunpack.c.h.b16 %v1577
        %v2460 = vunpack.c.l.b16 %v1578
        %v2461 = vunpack.c.h.b16 %v1578
        %v2462 = vunpack.c.l.b16 %v1579
        %v2463 = vunpack.c.h.b16 %v1579
        %v2464 = vunpack.c.l.b16 %v1580
        %v2465 = vunpack.c.h.b16 %v1580
        %v2466 = vunpack.c.l.b16 %v1581
        %v2467 = vunpack.c.h.b16 %v1581
        %v2468 = vunpack.c.l.b16 %v1582
        %v2469 = vunpack.c.h.b16 %v1582
        %v2470 = vunpack.c.l.b16 %v1583
        %v2471 = vunpack.c.h.b16 %v1583
        %v2472 = vunpack.c.l.b16 %v1584
        %v2473 = vunpack.c.h.b16 %v1584
        %v2474 = vunpack.c.l.b16 %v1585
        %v2475 = vunpack.c.h.b16 %v1585
        %v2476 = vunpack.c.l.b16 %v1586
        %v2477 = vunpack.c.h.b16 %v1586
        %v2478 = vunpack.c.l.b16 %v1587
        %v2479 = vunpack.c.h.b16 %v1587
        %v2480 = vunpack.c.l.b16 %v1588
        %v2481 = vunpack.c.h.b16 %v1588
        %v2482 = vunpack.c.l.b16 %v1589
        %v2483 = vunpack.c.h.b16 %v1589
        %v2484 = vunpack.c.l.b16 %v1590
        %v2485 = vunpack.c.h.b16 %v1590
        %v2486 = vunpack.c.l.b16 %v1591
        %v2487 = vunpack.c.h.b16 %v1591
        %v2488 = vunpack.c.l.b16 %v1592
        %v2489 = vunpack.c.h.b16 %v1592
        %v2490 = vunpack.c.l.b16 %v1593
        %v2491 = vunpack.c.h.b16 %v1593
        %v2492 = vunpack.c.l.b16 %v1594
        %v2493 = vunpack.c.h.b16 %v1594
        %v2494 = vunpack.c.l.b16 %v1595
        %v2495 = vunpack.c.h.b16 %v1595
        %v2496 = vunpack.c.l.b16 %v1596
        %v2497 = vunpack.c.h.b16 %v1596
        %v2498 = vunpack.c.l.b16 %v1597
        %v2499 = vunpack.c.h.b16 %v1597
        %v2500 = vunpack.c.l.b16 %v1598
        %v2501 = vunpack.c.h.b16 %v1598
        %v2502 = vunpack.c.l.b16 %v1599
        %v2503 = vunpack.c.h.b16 %v1599
        %v2504 = vunpack.c.l.b16 %v1600
        %v2505 = vunpack.c.h.b16 %v1600
        %v2506 = vunpack.c.l.b16 %v1601
        %v2507 = vunpack.c.h.b16 %v1601
        %v2508 = vunpack.c.l.b16 %v1602
        %v2509 = vunpack.c.h.b16 %v1602
        %v2510 = vunpack.c.l.b16 %v1603
        %v2511 = vunpack.c.h.b16 %v1603
        %v2512 = vunpack.c.l.b16 %v1604
        %v2513 = vunpack.c.h.b16 %v1604
        %v2514 = vunpack.c.l.b16 %v1605
        %v2515 = vunpack.c.h.b16 %v1605
        %v2516 = vunpack.c.l.b16 %v1606
        %v2517 = vunpack.c.h.b16 %v1606
        %v2518 = vunpack.c.l.b16 %v1607
        %v2519 = vunpack.c.h.b16 %v1607
        %v2520 = vunpack.c.l.b16 %v1608
        %v2521 = vunpack.c.h.b16 %v1608
        %v2522 = vunpack.c.l.b16 %v1609
        %v2523 = vunpack.c.h.b16 %v1609
        %v2524 = vunpack.c.l.b16 %v1610
        %v2525 = vunpack.c.h.b16 %v1610
        %v2526 = vunpack.c.l.b16 %v1611
        %v2527 = vunpack.c.h.b16 %v1611
        %v2528 = vunpack.c.l.b16 %v1612
        %v2529 = vunpack.c.h.b16 %v1612
        %v2530 = vunpack.c.l.b16 %v1613
        %v2531 = vunpack.c.h.b16 %v1613
        %v2532 = vunpack.c.l.b16 %v1614
        %v2533 = vunpack.c.h.b16 %v1614
        %v2534 = vunpack.c.l.b16 %v1615
        %v2535 = vunpack.c.h.b16 %v1615
        %v2536 = vunpack.c.l.b16 %v1616
        %v2537 = vunpack.c.h.b16 %v1616
        %v2538 = vunpack.c.l.b16 %v1617
        %v2539 = vunpack.c.h.b16 %v1617
        %v2540 = vunpack.c.l.b16 %v1618
        %v2541 = vunpack.c.h.b16 %v1618
        %v2542 = vunpack.c.l.b16 %v1619
        %v2543 = vunpack.c.h.b16 %v1619
        %v2544 = vunpack.c.l.b16 %v1620
        %v2545 = vunpack.c.h.b16 %v1620
        %v2546 = vunpack.c.l.b16 %v1621
        %v2547 = vunpack.c.h.b16 %v1621
        %v2548 = vunpack.c.l.b16 %v1622
        %v2549 = vunpack.c.h.b16 %v1622
        %v2550 = vunpack.c.l.b16 %v1623
        %v2551 = vunpack.c.h.b16 %v1623
        %v2552 = vunpack.c.l.b16 %v1624
        %v2553 = vunpack.c.h.b16 %v1624
        %v2554 = vunpack.c.l.b16 %v1625
        %v2555 = vunpack.c.h.b16 %v1625
        %v2556 = vunpack.c.l.b16 %v1626
        %v2557 = vunpack.c.h.b16 %v1626
        %v2558 = vunpack.c.l.b16 %v1627
        %v2559 = vunpack.c.h.b16 %v1627
        %v2560 = vunpack.c.l.b16 %v1628
        %v2561 = vunpack.c.h.b16 %v1628
        %v2562 = vunpack.c.l.b16 %v1629
        %v2563 = vunpack.c.h.b16 %v1629
        %v2564 = vunpack.c.l.b16 %v1630
        %v2565 = vunpack.c.h.b16 %v1630
        %v2566 = vunpack.c.l.b16 %v1631
        %v2567 = vunpack.c.h.b16 %v1631
        %v2568 = vunpack.c.l.b16 %v1632
        %v2569 = vunpack.c.h.b16 %v1632
        %v2570 = vunpack.c.l.b16 %v1633
        %v2571 = vunpack.c.h.b16 %v1633
        %v2572 = vunpack.c.l.b16 %v1634
        %v2573 = vunpack.c.h.b16 %v1634
        %v2574 = vunpack.c.l.b16 %v1635
        %v2575 = vunpack.c.h.b16 %v1635
        %v2576 = vunpack.c.l.b16 %v1636
        %v2577 = vunpack.c.h.b16 %v1636
        %v2578 = vunpack.c.l.b16 %v1637
        %v2579 = vunpack.c.h.b16 %v1637
        %v2580 = vunpack.c.l.b16 %v1638
        %v2581 = vunpack.c.h.b16 %v1638
        %v2582 = vunpack.c.l.b16 %v1639
        %v2583 = vunpack.c.h.b16 %v1639
        %v2584 = vunpack.c.l.b16 %v1640
        %v2585 = vunpack.c.h.b16 %v1640
        %v2586 = vunpack.c.l.b16 %v1641
        %v2587 = vunpack.c.h.b16 %v1641
        %v2588 = vunpack.c.l.b16 %v1642
        %v2589 = vunpack.c.h.b16 %v1642
        %v2590 = vunpack.c.l.b16 %v1643
        %v2591 = vunpack.c.h.b16 %v1643
        %v2592 = vunpack.c.l.b16 %v1644
        %v2593 = vunpack.c.h.b16 %v1644
        %v2594 = vunpack.c.l.b16 %v1645
        %v2595 = vunpack.c.h.b16 %v1645
        %v2596 = vunpack.c.l.b16 %v1646
        %v2597 = vunpack.c.h.b16 %v1646
        %v2598 = vunpack.c.l.b16 %v1647
        %v2599 = vunpack.c.h.b16 %v1647
        %v2600 = vunpack.c.l.b16 %v1648
        %v2601 = vunpack.c.h.b16 %v1648
        %v2602 = vunpack.c.l.b16 %v1649
        %v2603 = vunpack.c.h.b16 %v1649
        %v2604 = vunpack.c.l.b16 %v1650
        %v2605 = vunpack.c.h.b16 %v1650
        %v2606 = vunpack.c.l.b16 %v1651
        %v2607 = vunpack.c.h.b16 %v1651
        %v2608 = vunpack.c.l.b16 %v1652
        %v2609 = vunpack.c.h.b16 %v1652
        %v2610 = vunpack.c.l.b16 %v1653
        %v2611 = vunpack.c.h.b16 %v1653
        %v2612 = vunpack.c.l.b16 %v1654
        %v2613 = vunpack.c.h.b16 %v1654
        %v2614 = vunpack.c.l.b16 %v1655
        %v2615 = vunpack.c.h.b16 %v1655
        %v2616 = vunpack.c.l.b16 %v1656
        %v2617 = vunpack.c.h.b16 %v1656
        %v2618 = vunpack.c.l.b16 %v1657
        %v2619 = vunpack.c.h.b16 %v1657
        %v2620 = vunpack.c.l.b16 %v1658
        %v2621 = vunpack.c.h.b16 %v1658
        %v2622 = vunpack.c.l.b16 %v1659
        %v2623 = vunpack.c.h.b16 %v1659
        %v2624 = vunpack.c.l.b16 %v1660
        %v2625 = vunpack.c.h.b16 %v1660
        %v2626 = vunpack.c.l.b16 %v1661
        %v2627 = vunpack.c.h.b16 %v1661
        %v2628 = vunpack.c.l.b16 %v1662
        %v2629 = vunpack.c.h.b16 %v1662
        %v2630 = vunpack.c.l.b16 %v1663
        %v2631 = vunpack.c.h.b16 %v1663
        %v2632 = vunpack.c.l.b16 %v1664
        %v2633 = vunpack.c.h.b16 %v1664
        %v2634 = vunpack.c.l.b16 %v1665
        %v2635 = vunpack.c.h.b16 %v1665
        %v2636 = vunpack.c.l.b16 %v1666
        %v2637 = vunpack.c.h.b16 %v1666
        %v2638 = vunpack.c.l.b16 %v1667
        %v2639 = vunpack.c.h.b16 %v1667
        %v2640 = vunpack.c.l.b16 %v1668
        %v2641 = vunpack.c.h.b16 %v1668
        %v2642 = vunpack.c.l.b16 %v1669
        %v2643 = vunpack.c.h.b16 %v1669
        %v2644 = vunpack.c.l.b16 %v1670
        %v2645 = vunpack.c.h.b16 %v1670
        %v2646 = vunpack.c.l.b16 %v1671
        %v2647 = vunpack.c.h.b16 %v1671
        %v2648 = vunpack.c.l.b16 %v1672
        %v2649 = vunpack.c.h.b16 %v1672
        %v2650 = vunpack.c.l.b16 %v1673
        %v2651 = vunpack.c.h.b16 %v1673
        %v2652 = vunpack.c.l.b16 %v1674
        %v2653 = vunpack.c.h.b16 %v1674
        %v2654 = vunpack.c.l.b16 %v1675
        %v2655 = vunpack.c.h.b16 %v1675
        %v2656 = vunpack.c.l.b16 %v1676
        %v2657 = vunpack.c.h.b16 %v1676
        %v2658 = vunpack.c.l.b16 %v1677
        %v2659 = vunpack.c.h.b16 %v1677
        %v2660 = vunpack.c.l.b16 %v1678
        %v2661 = vunpack.c.h.b16 %v1678
        %v2662 = vunpack.c.l.b16 %v1679
        %v2663 = vunpack.c.h.b16 %v1679
        %v2664 = vunpack.c.l.b16 %v1680
        %v2665 = vunpack.c.h.b16 %v1680
        %v2666 = vunpack.c.l.b16 %v1681
        %v2667 = vunpack.c.h.b16 %v1681
        %v2668 = vunpack.c.l.b16 %v1682
        %v2669 = vunpack.c.h.b16 %v1682
        %v2670 = vunpack.c.l.b16 %v1683
        %v2671 = vunpack.c.h.b16 %v1683
        %v2672 = vunpack.c.l.b16 %v1684
        %v2673 = vunpack.c.h.b16 %v1684
        %v2674 = vunpack.c.l.b16 %v1685
        %v2675 = vunpack.c.h.b16 %v1685
        %v2676 = vunpack.c.l.b16 %v1686
        %v2677 = vunpack.c.h.b16 %v1686
        %v2678 = vunpack.c.l.b16 %v1687
        %v2679 = vunpack.c.h.b16 %v1687
        %v2680 = vunpack.c.l.b16 %v1688
        %v2681 = vunpack.c.h.b16 %v1688
        %v2682 = vunpack.c.l.b16 %v1689
        %v2683 = vunpack.c.h.b16 %v1689
        %v2684 = vunpack.c.l.b16 %v1690
        %v2685 = vunpack.c.h.b16 %v1690
        %v2686 = vunpack.c.l.b16 %v1691
        %v2687 = vunpack.c.h.b16 %v1691
        %v2688 = vunpack.c.l.b16 %v1692
        %v2689 = vunpack.c.h.b16 %v1692
        %v2690 = vunpack.c.l.b16 %v1693
        %v2691 = vunpack.c.h.b16 %v1693
        %v2692 = vunpack.c.l.b16 %v1694
        %v2693 = vunpack.c.h.b16 %v1694
        %v2694 = vunpack.c.l.b16 %v1695
        %v2695 = vunpack.c.h.b16 %v1695
        %v2696 = vunpack.c.l.b16 %v1696
        %v2697 = vunpack.c.h.b16 %v1696
        %v2698 = vunpack.c.l.b16 %v1697
        %v2699 = vunpack.c.h.b16 %v1697
        %v2700 = vunpack.c.l.b16 %v1698
        %v2701 = vunpack.c.h.b16 %v1698
        %v2702 = vunpack.c.l.b16 %v1699
        %v2703 = vunpack.c.h.b16 %v1699
        %v2704 = vunpack.c.l.b16 %v1700
        %v2705 = vunpack.c.h.b16 %v1700
        %v2706 = vunpack.c.l.b16 %v1701
        %v2707 = vunpack.c.h.b16 %v1701
        %v2708 = vunpack.c.l.b16 %v1702
        %v2709 = vunpack.c.h.b16 %v1702
        %v2710 = vunpack.c.l.b16 %v1703
        %v2711 = vunpack.c.h.b16 %v1703
        %v2712 = vunpack.c.l.b16 %v1704
        %v2713 = vunpack.c.h.b16 %v1704
        %v2714 = vunpack.c.l.b16 %v1705
        %v2715 = vunpack.c.h.b16 %v1705
        %v2716 = vunpack.c.l.b16 %v1706
        %v2717 = vunpack.c.h.b16 %v1706
        %v2718 = vunpack.c.l.b16 %v1707
        %v2719 = vunpack.c.h.b16 %v1707
        %v2720 = vunpack.c.l.b16 %v1708
        %v2721 = vunpack.c.h.b16 %v1708
        %v2722 = vunpack.c.l.b16 %v1709
        %v2723 = vunpack.c.h.b16 %v1709
        %v2724 = vunpack.c.l.b16 %v1710
        %v2725 = vunpack.c.h.b16 %v1710
        %v2726 = vunpack.c.l.b16 %v1711
        %v2727 = vunpack.c.h.b16 %v1711
        %v2728 = vunpack.c.l.b16 %v1712
        %v2729 = vunpack.c.h.b16 %v1712
        %v2730 = vpack.c.b16 %v2156, %v2154
        %v2731 = vpack.c.b16 %v2157, %v2155
        %v2732 = vpack.c.b16 %v2160, %v2158
        %v2733 = vpack.c.b16 %v2161, %v2159
        %v2734 = vpack.c.b16 %v2164, %v2162
        %v2735 = vpack.c.b16 %v2165, %v2163
        %v2736 = vpack.c.b16 %v2168, %v2166
        %v2737 = vpack.c.b16 %v2169, %v2167
        %v2738 = vpack.c.b16 %v2172, %v2170
        %v2739 = vpack.c.b16 %v2173, %v2171
        %v2740 = vpack.c.b16 %v2176, %v2174
        %v2741 = vpack.c.b16 %v2177, %v2175
        %v2742 = vpack.c.b16 %v2180, %v2178
        %v2743 = vpack.c.b16 %v2181, %v2179
        %v2744 = vpack.c.b16 %v2184, %v2182
        %v2745 = vpack.c.b16 %v2185, %v2183
        %v2746 = vpack.c.b16 %v2188, %v2186
        %v2747 = vpack.c.b16 %v2189, %v2187
        %v2748 = vpack.c.b16 %v2192, %v2190
        %v2749 = vpack.c.b16 %v2193, %v2191
        %v2750 = vpack.c.b16 %v2196, %v2194
        %v2751 = vpack.c.b16 %v2197, %v2195
        %v2752 = vpack.c.b16 %v2200, %v2198
        %v2753 = vpack.c.b16 %v2201, %v2199
        %v2754 = vpack.c.b16 %v2204, %v2202
        %v2755 = vpack.c.b16 %v2205, %v2203
        %v2756 = vpack.c.b16 %v2208, %v2206
        %v2757 = vpack.c.b16 %v2209, %v2207
        %v2758 = vpack.c.b16 %v2212, %v2210
        %v2759 = vpack.c.b16 %v2213, %v2211
        %v2760 = vpack.c.b16 %v2216, %v2214
        %v2761 = vpack.c.b16 %v2217, %v2215
        %v2762 = vpack.c.b16 %v2220, %v2218
        %v2763 = vpack.c.b16 %v2221, %v2219
        %v2764 = vpack.c.b16 %v2224, %v2222
        %v2765 = vpack.c.b16 %v2225, %v2223
        %v2766 = vpack.c.b16 %v2228, %v2226
        %v2767 = vpack.c.b16 %v2229, %v2227
        %v2768 = vpack.c.b16 %v2232, %v2230
        %v2769 = vpack.c.b16 %v2233, %v2231
        %v2770 = vpack.c.b16 %v2236, %v2234
        %v2771 = vpack.c.b16 %v2237, %v2235
        %v2772 = vpack.c.b16 %v2240, %v2238
        %v2773 = vpack.c.b16 %v2241, %v2239
        %v2774 = vpack.c.b16 %v2244, %v2242
        %v2775 = vpack.c.b16 %v2245, %v2243
        %v2776 = vpack.c.b16 %v2248, %v2246
        %v2777 = vpack.c.b16 %v2249, %v2247
        %v2778 = vpack.c.b16 %v2252, %v2250
        %v2779 = vpack.c.b16 %v2253, %v2251
        %v2780 = vpack.c.b16 %v2256, %v2254
        %v2781 = vpack.c.b16 %v2257, %v2255
        %v2782 = vpack.c.b16 %v2260, %v2258
        %v2783 = vpack.c.b16 %v2261, %v2259
        %v2784 = vpack.c.b16 %v2264, %v2262
        %v2785 = vpack.c.b16 %v2265, %v2263
        %v2786 = vpack.c.b16 %v2268, %v2266
        %v2787 = vpack.c.b16 %v2269, %v2267
        %v2788 = vpack.c.b16 %v2272, %v2270
        %v2789 = vpack.c.b16 %v2273, %v2271
        %v2790 = vpack.c.b16 %v2276, %v2274
        %v2791 = vpack.c.b16 %v2277, %v2275
        %v2792 = vpack.c.b16 %v2280, %v2278
        %v2793 = vpack.c.b16 %v2281, %v2279
        %v2794 = vpack.c.b16 %v2284, %v2282
        %v2795 = vpack.c.b16 %v2285, %v2283
        %v2796 = vpack.c.b16 %v2288, %v2286
        %v2797 = vpack.c.b16 %v2289, %v2287
        %v2798 = vpack.c.b16 %v2292, %v2290
        %v2799 = vpack.c.b16 %v2293, %v2291
        %v2800 = vpack.c.b16 %v2296, %v2294
        %v2801 = vpack.c.b16 %v2297, %v2295
        %v2802 = vpack.c.b16 %v2300, %v2298
        %v2803 = vpack.c.b16 %v2301, %v2299
        %v2804 = vpack.c.b16 %v2304, %v2302
        %v2805 = vpack.c.b16 %v2305, %v2303
        %v2806 = vpack.c.b16 %v2308, %v2306
        %v2807 = vpack.c.b16 %v2309, %v2307
        %v2808 = vpack.c.b16 %v2312, %v2310
        %v2809 = vpack.c.b16 %v2313, %v2311
        %v2810 = vpack.c.b16 %v2316, %v2314
        %v2811 = vpack.c.b16 %v2317, %v2315
        %v2812 = vpack.c.b16 %v2320, %v2318
        %v2813 = vpack.c.b16 %v2321, %v2319
        %v2814 = vpack.c.b16 %v2324, %v2322
        %v2815 = vpack.c.b16 %v2325, %v2323
        %v2816 = vpack.c.b16 %v2328, %v2326
        %v2817 = vpack.c.b16 %v2329, %v2327
        %v2818 = vpack.c.b16 %v2332, %v2330
        %v2819 = vpack.c.b16 %v2333, %v2331
        %v2820 = vpack.c.b16 %v2336, %v2334
        %v2821 = vpack.c.b16 %v2337, %v2335
        %v2822 = vpack.c.b16 %v2340, %v2338
        %v2823 = vpack.c.b16 %v2341, %v2339
        %v2824 = vpack.c.b16 %v2344, %v2342
        %v2825 = vpack.c.b16 %v2345, %v2343
        %v2826 = vpack.c.b16 %v2348, %v2346
        %v2827 = vpack.c.b16 %v2349, %v2347
        %v2828 = vpack.c.b16 %v2352, %v2350
        %v2829 = vpack.c.b16 %v2353, %v2351
        %v2830 = vpack.c.b16 %v2356, %v2354
        %v2831 = vpack.c.b16 %v2357, %v2355
        %v2832 = vpack.c.b16 %v2360, %v2358
        %v2833 = vpack.c.b16 %v2361, %v2359
        %v2834 = vpack.c.b16 %v2364, %v2362
        %v2835 = vpack.c.b16 %v2365, %v2363
        %v2836 = vpack.c.b16 %v2368, %v2366
        %v2837 = vpack.c.b16 %v2369, %v2367
        %v2838 = vpack.c.b16 %v2372, %v2370
        %v2839 = vpack.c.b16 %v2373, %v2371
        %v2840 = vpack.c.b16 %v2376, %v2374
        %v2841 = vpack.c.b16 %v2377, %v2375
        %v2842 = vpack.c.b16 %v2380, %v2378
        %v2843 = vpack.c.b16 %v2381, %v2379
        %v2844 = vpack.c.b16 %v2384, %v2382
        %v2845 = vpack.c.b16 %v2385, %v2383
        %v2846 = vpack.c.b16 %v2388, %v2386
        %v2847 = vpack.c.b16 %v2389, %v2387
        %v2848 = vpack.c.b16 %v2392, %v2390
        %v2849 = vpack.c.b16 %v2393, %v2391
        %v2850 = vpack.c.b16 %v2396, %v2394
        %v2851 = vpack.c.b16 %v2397, %v2395
        %v2852 = vpack.c.b16 %v2400, %v2398
        %v2853 = vpack.c.b16 %v2401, %v2399
        %v2854 = vpack.c.b16 %v2404, %v2402
        %v2855 = vpack.c.b16 %v2405, %v2403
        %v2856 = vpack.c.b16 %v2408, %v2406
        %v2857 = vpack.c.b16 %v2409, %v2407
        %v2858 = vpack.c.b16 %v2412, %v2410
        %v2859 = vpack.c.b16 %v2413, %v2411
        %v2860 = vpack.c.b16 %v2416, %v2414
        %v2861 = vpack.c.b16 %v2417, %v2415
        %v2862 = vpack.c.b16 %v2420, %v2418
        %v2863 = vpack.c.b16 %v2421, %v2419
        %v2864 = vpack.c.b16 %v2424, %v2422
        %v2865 = vpack.c.b16 %v2425, %v2423
        %v2866 = vpack.c.b16 %v2428, %v2426
        %v2867 = vpack.c.b16 %v2429, %v2427
        %v2868 = vpack.c.b16 %v2432, %v2430
        %v2869 = vpack.c.b16 %v2433, %v2431
        %v2870 = vpack.c.b16 %v2436, %v2434
        %v2871 = vpack.c.b16 %v2437, %v2435
        %v2872 = vpack.c.b16 %v2440, %v2438
        %v2873 = vpack.c.b16 %v2441, %v2439
        %v2874 = vpack.c.b16 %v2444, %v2442
        %v2875 = vpack.c.b16 %v2445, %v2443
        %v2876 = vpack.c.b16 %v2448, %v2446
        %v2877 = vpack.c.b16 %v2449, %v2447
        %v2878 = vpack.c.b16 %v2452, %v2450
        %v2879 = vpack.c.b16 %v2453, %v2451
        %v2880 = vpack.c.b16 %v2456, %v2454
        %v2881 = vpack.c.b16 %v2457, %v2455
        %v2882 = vpack.c.b16 %v2460, %v2458
        %v2883 = vpack.c.b16 %v2461, %v2459
        %v2884 = vpack.c.b16 %v2464, %v2462
        %v2885 = vpack.c.b16 %v2465, %v2463
        %v2886 = vpack.c.b16 %v2468, %v2466
        %v2887 = vpack.c.b16 %v2469, %v2467
        %v2888 = vpack.c.b16 %v2472, %v2470
        %v2889 = vpack.c.b16 %v2473, %v2471
        %v2890 = vpack.c.b16 %v2476, %v2474
        %v2891 = vpack.c.b16 %v2477, %v2475
        %v2892 = vpack.c.b16 %v2480, %v2478
        %v2893 = vpack.c.b16 %v2481, %v2479
        %v2894 = vpack.c.b16 %v2484, %v2482
        %v2895 = vpack.c.b16 %v2485, %v2483
        %v2896 = vpack.c.b16 %v2488, %v2486
        %v2897 = vpack.c.b16 %v2489, %v2487
        %v2898 = vpack.c.b16 %v2492, %v2490
        %v2899 = vpack.c.b16 %v2493, %v2491
        %v2900 = vpack.c.b16 %v2496, %v2494
        %v2901 = vpack.c.b16 %v2497, %v2495
        %v2902 = vpack.c.b16 %v2500, %v2498
        %v2903 = vpack.c.b16 %v2501, %v2499
        %v2904 = vpack.c.b16 %v2504, %v2502
        %v2905 = vpack.c.b16 %v2505, %v2503
        %v2906 = vpack.c.b16 %v2508, %v2506
        %v2907 = vpack.c.b16 %v2509, %v2507
        %v2908 = vpack.c.b16 %v2512, %v2510
        %v2909 = vpack.c.b16 %v2513, %v2511
        %v2910 = vpack.c.b16 %v2516, %v2514
        %v2911 = vpack.c.b16 %v2517, %v2515
        %v2912 = vpack.c.b16 %v2520, %v2518
        %v2913 = vpack.c.b16 %v2521, %v2519
        %v2914 = vpack.c.b16 %v2524, %v2522
        %v2915 = vpack.c.b16 %v2525, %v2523
        %v2916 = vpack.c.b16 %v2528, %v2526
        %v2917 = vpack.c.b16 %v2529, %v2527
        %v2918 = vpack.c.b16 %v2532, %v2530
        %v2919 = vpack.c.b16 %v2533, %v2531
        %v2920 = vpack.c.b16 %v2536, %v2534
        %v2921 = vpack.c.b16 %v2537, %v2535
        %v2922 = vpack.c.b16 %v2540, %v2538
        %v2923 = vpack.c.b16 %v2541, %v2539
        %v2924 = vpack.c.b16 %v2544, %v2542
        %v2925 = vpack.c.b16 %v2545, %v2543
        %v2926 = vpack.c.b16 %v2548, %v2546
        %v2927 = vpack.c.b16 %v2549, %v2547
        %v2928 = vpack.c.b16 %v2552, %v2550
        %v2929 = vpack.c.b16 %v2553, %v2551
        %v2930 = vpack.c.b16 %v2556, %v2554
        %v2931 = vpack.c.b16 %v2557, %v2555
        %v2932 = vpack.c.b16 %v2560, %v2558
        %v2933 = vpack.c.b16 %v2561, %v2559
        %v2934 = vpack.c.b16 %v2564, %v2562
        %v2935 = vpack.c.b16 %v2565, %v2563
        %v2936 = vpack.c.b16 %v2568, %v2566
        %v2937 = vpack.c.b16 %v2569, %v2567
        %v2938 = vpack.c.b16 %v2572, %v2570
        %v2939 = vpack.c.b16 %v2573, %v2571
        %v2940 = vpack.c.b16 %v2576, %v2574
        %v2941 = vpack.c.b16 %v2577, %v2575
        %v2942 = vpack.c.b16 %v2580, %v2578
        %v2943 = vpack.c.b16 %v2581, %v2579
        %v2944 = vpack.c.b16 %v2584, %v2582
        %v2945 = vpack.c.b16 %v2585, %v2583
        %v2946 = vpack.c.b16 %v2588, %v2586
        %v2947 = vpack.c.b16 %v2589, %v2587
        %v2948 = vpack.c.b16 %v2592, %v2590
        %v2949 = vpack.c.b16 %v2593, %v2591
        %v2950 = vpack.c.b16 %v2596, %v2594
        %v2951 = vpack.c.b16 %v2597, %v2595
        %v2952 = vpack.c.b16 %v2600, %v2598
        %v2953 = vpack.c.b16 %v2601, %v2599
        %v2954 = vpack.c.b16 %v2604, %v2602
        %v2955 = vpack.c.b16 %v2605, %v2603
        %v2956 = vpack.c.b16 %v2608, %v2606
        %v2957 = vpack.c.b16 %v2609, %v2607
        %v2958 = vpack.c.b16 %v2612, %v2610
        %v2959 = vpack.c.b16 %v2613, %v2611
        %v2960 = vpack.c.b16 %v2616, %v2614
        %v2961 = vpack.c.b16 %v2617, %v2615
        %v2962 = vpack.c.b16 %v2620, %v2618
        %v2963 = vpack.c.b16 %v2621, %v2619
        %v2964 = vpack.c.b16 %v2624, %v2622
        %v2965 = vpack.c.b16 %v2625, %v2623
        %v2966 = vpack.c.b16 %v2628, %v2626
        %v2967 = vpack.c.b16 %v2629, %v2627
        %v2968 = vpack.c.b16 %v2632, %v2630
        %v2969 = vpack.c.b16 %v2633, %v2631
        %v2970 = vpack.c.b16 %v2636, %v2634
        %v2971 = vpack.c.b16 %v2637, %v2635
        %v2972 = vpack.c.b16 %v2640, %v2638
        %v2973 = vpack.c.b16 %v2641, %v2639
        %v2974 = vpack.c.b16 %v2644, %v2642
        %v2975 = vpack.c.b16 %v2645, %v2643
        %v2976 = vpack.c.b16 %v2648, %v2646
        %v2977 = vpack.c.b16 %v2649, %v2647
        %v2978 = vpack.c.b16 %v2652, %v2650
        %v2979 = vpack.c.b16 %v2653, %v2651
        %v2980 = vpack.c.b16 %v2656, %v2654
        %v2981 = vpack.c.b16 %v2657, %v2655
        %v2982 = vpack.c.b16 %v2660, %v2658
        %v2983 = vpack.c.b16 %v2661, %v2659
        %v2984 = vpack.c.b16 %v2664, %v2662
        %v2985 = vpack.c.b16 %v2665, %v2663
        %v2986 = vpack.c.b16 %v2668, %v2666
        %v2987 = vpack.c.b16 %v2669, %v2667
        %v2988 = vpack.c.b16 %v2672, %v2670
        %v2989 = vpack.c.b16 %v2673, %v2671
        %v2990 = vpack.c.b16 %v2676, %v2674
        %v2991 = vpack.c.b16 %v2677, %v2675
        %v2992 = vpack.c.b16 %v2680, %v2678
        %v2993 = vpack.c.b16 %v2681, %v2679
        %v2994 = vpack.c.b16 %v2684, %v2682
        %v2995 = vpack.c.b16 %v2685, %v2683
        %v2996 = vpack.c.b16 %v2688, %v2686
        %v2997 = vpack.c.b16 %v2689, %v2687
        %v2998 = vpack.c.b16 %v2692, %v2690
        %v2999 = vpack.c.b16 %v2693, %v2691
        %v3000 = vpack.c.b16 %v2696, %v2694
        %v3001 = vpack.c.b16 %v2697, %v2695
        %v3002 = vpack.c.b16 %v2700, %v2698
        %v3003 = vpack.c.b16 %v2701, %v2699
        %v3004 = vpack.c.b16 %v2704, %v2702
        %v3005 = vpack.c.b16 %v2705, %v2703
        %v3006 = vpack.c.b16 %v2708, %v2706
        %v3007 = vpack.c.b16 %v2709, %v2707
        %v3008 = vpack.c.b16 %v2712, %v2710
        %v3009 = vpack.c.b16 %v2713, %v2711
        %v3010 = vpack.c.b16 %v2716, %v2714
        %v3011 = vpack.c.b16 %v2717, %v2715
        %v3012 = vpack.c.b16 %v2720, %v2718
        %v3013 = vpack.c.b16 %v2721, %v2719
        %v3014 = vpack.c.b16 %v2724, %v2722
        %v3015 = vpack.c.b16 %v2725, %v2723
        %v3016 = vpack.c.b16 %v2728, %v2726
        %v3017 = vpack.c.b16 %v2729, %v2727
        %3306 = vmatprep.subr.bf16.mxu0 %v2731
        %3307 = vmatpush1.bf16.msra.mxu0 %v2730
        %3308 = vmatprep.subr.bf16.mxu0 %v2733
        %3309 = vmatpush1.bf16.msra.mxu0 %v2732
        %3310 = vmatprep.subr.bf16.mxu0 %v2735
        %3311 = vmatpush1.bf16.msra.mxu0 %v2734
        %3312 = vmatprep.subr.bf16.mxu0 %v2737
        %3313 = vmatpush1.bf16.msra.mxu0 %v2736
        %3314 = vmatprep.subr.bf16.mxu0 %v2739
        %3315 = vmatpush1.bf16.msra.mxu0 %v2738
        %3316 = vmatprep.subr.bf16.mxu0 %v2741
        %3317 = vmatpush1.bf16.msra.mxu0 %v2740
        %3318 = vmatprep.subr.bf16.mxu0 %v2743
        %3319 = vmatpush1.bf16.msra.mxu0 %v2742
        %3320 = vmatprep.subr.bf16.mxu0 %v2745
        %3321 = vmatpush1.bf16.msra.mxu0 %v2744
        %3322 = vmatprep.subr.bf16.mxu0 %v2747
        %3323 = vmatpush1.bf16.msra.mxu0 %v2746
        %3324 = vmatprep.subr.bf16.mxu0 %v2749
        %3325 = vmatpush1.bf16.msra.mxu0 %v2748
        %3326 = vmatprep.subr.bf16.mxu0 %v2751
        %3327 = vmatpush1.bf16.msra.mxu0 %v2750
        %3328 = vmatprep.subr.bf16.mxu0 %v2753
        %3329 = vmatpush1.bf16.msra.mxu0 %v2752
        %3330 = vmatprep.subr.bf16.mxu0 %v2755
        %3331 = vmatpush1.bf16.msra.mxu0 %v2754
        %3332 = vmatprep.subr.bf16.mxu0 %v2757
        %3333 = vmatpush1.bf16.msra.mxu0 %v2756
        %3334 = vmatprep.subr.bf16.mxu0 %v2759
        %3335 = vmatpush1.bf16.msra.mxu0 %v2758
        %3336 = vmatprep.subr.bf16.mxu0 %v2761
        %3337 = vmatpush1.bf16.msra.mxu0 %v2760
        %3338 = vmatprep.mubr.bf16.mxu0 %v1765
        %3339 = vmatmul.mubr.bf16.gmra.mrb[0].mxu0 %v1751
        %v3340 = vpop.f32.mrb[0].mxu0
        %v3341 = vadd.f32 %v1718, %v3340
        %v3342 = vpop.f32.mrb[0].mxu0
        %v3343 = vadd.f32 %v1722, %v3342
        %v3344 = vpop.f32.mrb[0].mxu0
        %v3345 = vpop.f32.mrb[0].mxu0
        %3346 = vdwg.mxu0
        %3347 = vmatprep.subr.bf16.mxu0 %v2763
        %3348 = vmatpush1.bf16.msra.mxu0 %v2762
        %3349 = vmatprep.subr.bf16.mxu0 %v2765
        %3350 = vmatpush1.bf16.msra.mxu0 %v2764
        %3351 = vmatprep.subr.bf16.mxu0 %v2767
        %3352 = vmatpush1.bf16.msra.mxu0 %v2766
        %3353 = vmatprep.subr.bf16.mxu0 %v2769
        %3354 = vmatpush1.bf16.msra.mxu0 %v2768
        %3355 = vmatprep.subr.bf16.mxu0 %v2771
        %3356 = vmatpush1.bf16.msra.mxu0 %v2770
        %3357 = vmatprep.subr.bf16.mxu0 %v2773
        %3358 = vmatpush1.bf16.msra.mxu0 %v2772
        %3359 = vmatprep.subr.bf16.mxu0 %v2775
        %3360 = vmatpush1.bf16.msra.mxu0 %v2774
        %3361 = vmatprep.subr.bf16.mxu0 %v2777
        %3362 = vmatpush1.bf16.msra.mxu0 %v2776
        %3363 = vmatprep.subr.bf16.mxu0 %v2779
        %3364 = vmatpush1.bf16.msra.mxu0 %v2778
        %3365 = vmatprep.subr.bf16.mxu0 %v2781
        %3366 = vmatpush1.bf16.msra.mxu0 %v2780
        %3367 = vmatprep.subr.bf16.mxu0 %v2783
        %3368 = vmatpush1.bf16.msra.mxu0 %v2782
        %3369 = vmatprep.subr.bf16.mxu0 %v2785
        %3370 = vmatpush1.bf16.msra.mxu0 %v2784
        %3371 = vmatprep.subr.bf16.mxu0 %v2787
        %3372 = vmatpush1.bf16.msra.mxu0 %v2786
        %3373 = vmatprep.subr.bf16.mxu0 %v2789
        %3374 = vmatpush1.bf16.msra.mxu0 %v2788
        %3375 = vmatprep.subr.bf16.mxu0 %v2791
        %3376 = vmatpush1.bf16.msra.mxu0 %v2790
        %3377 = vmatprep.subr.bf16.mxu0 %v2793
        %3378 = vmatpush1.bf16.msra.mxu0 %v2792
        %3379 = vmatprep.mubr.bf16.mxu0 %v1775
        %3380 = vmatmul.mubr.bf16.gmra.mrb[0].mxu0 %v1773
        %v3381 = vpop.f32.mrb[0].mxu0
        %v3382 = vadd.f32 %v3341, %v3381
        %v3383 = vpop.f32.mrb[0].mxu0
        %v3384 = vadd.f32 %v3343, %v3383
        %v3385 = vpop.f32.mrb[0].mxu0
        %v3386 = vpop.f32.mrb[0].mxu0
        %3387 = vdwg.mxu0
        %3388 = vmatprep.subr.bf16.mxu0 %v2795
        %3389 = vmatpush1.bf16.msra.mxu0 %v2794
        %3390 = vmatprep.subr.bf16.mxu0 %v2797
        %3391 = vmatpush1.bf16.msra.mxu0 %v2796
        %3392 = vmatprep.subr.bf16.mxu0 %v2799
        %3393 = vmatpush1.bf16.msra.mxu0 %v2798
        %3394 = vmatprep.subr.bf16.mxu0 %v2801
        %3395 = vmatpush1.bf16.msra.mxu0 %v2800
        %3396 = vmatprep.subr.bf16.mxu0 %v2803
        %3397 = vmatpush1.bf16.msra.mxu0 %v2802
        %3398 = vmatprep.subr.bf16.mxu0 %v2805
        %3399 = vmatpush1.bf16.msra.mxu0 %v2804
        %3400 = vmatprep.subr.bf16.mxu0 %v2807
        %3401 = vmatpush1.bf16.msra.mxu0 %v2806
        %3402 = vmatprep.subr.bf16.mxu0 %v2809
        %3403 = vmatpush1.bf16.msra.mxu0 %v2808
        %3404 = vmatprep.subr.bf16.mxu0 %v2811
        %3405 = vmatpush1.bf16.msra.mxu0 %v2810
        %3406 = vmatprep.subr.bf16.mxu0 %v2813
        %3407 = vmatpush1.bf16.msra.mxu0 %v2812
        %3408 = vmatprep.subr.bf16.mxu0 %v2815
        %3409 = vmatpush1.bf16.msra.mxu0 %v2814
        %3410 = vmatprep.subr.bf16.mxu0 %v2817
        %3411 = vmatpush1.bf16.msra.mxu0 %v2816
        %3412 = vmatprep.subr.bf16.mxu0 %v2819
        %3413 = vmatpush1.bf16.msra.mxu0 %v2818
        %3414 = vmatprep.subr.bf16.mxu0 %v2821
        %3415 = vmatpush1.bf16.msra.mxu0 %v2820
        %3416 = vmatprep.subr.bf16.mxu0 %v2823
        %3417 = vmatpush1.bf16.msra.mxu0 %v2822
        %3418 = vmatprep.subr.bf16.mxu0 %v2825
        %3419 = vmatpush1.bf16.msra.mxu0 %v2824
        %3420 = vmatprep.mubr.bf16.mxu0 %v1772
        %3421 = vmatmul.mubr.bf16.gmra.mrb[0].mxu0 %v1758
        %v3422 = vpop.f32.mrb[0].mxu0
        %v3423 = vadd.f32 %v3382, %v3422
        %v3424 = vpop.f32.mrb[0].mxu0
        %v3425 = vadd.f32 %v3384, %v3424
        %v3426 = vpop.f32.mrb[0].mxu0
        %v3427 = vpop.f32.mrb[0].mxu0
        %3428 = vdwg.mxu0
        %3429 = vmatprep.subr.bf16.mxu0 %v2827
        %3430 = vmatpush1.bf16.msra.mxu0 %v2826
        %3431 = vmatprep.subr.bf16.mxu0 %v2829
        %3432 = vmatpush1.bf16.msra.mxu0 %v2828
        %3433 = vmatprep.subr.bf16.mxu0 %v2831
        %3434 = vmatpush1.bf16.msra.mxu0 %v2830
        %3435 = vmatprep.subr.bf16.mxu0 %v2833
        %3436 = vmatpush1.bf16.msra.mxu0 %v2832
        %3437 = vmatprep.subr.bf16.mxu0 %v2835
        %3438 = vmatpush1.bf16.msra.mxu0 %v2834
        %3439 = vmatprep.subr.bf16.mxu0 %v2837
        %3440 = vmatpush1.bf16.msra.mxu0 %v2836
        %3441 = vmatprep.subr.bf16.mxu0 %v2839
        %3442 = vmatpush1.bf16.msra.mxu0 %v2838
        %3443 = vmatprep.subr.bf16.mxu0 %v2841
        %3444 = vmatpush1.bf16.msra.mxu0 %v2840
        %3445 = vmatprep.subr.bf16.mxu0 %v2843
        %3446 = vmatpush1.bf16.msra.mxu0 %v2842
        %3447 = vmatprep.subr.bf16.mxu0 %v2845
        %3448 = vmatpush1.bf16.msra.mxu0 %v2844
        %3449 = vmatprep.subr.bf16.mxu0 %v2847
        %3450 = vmatpush1.bf16.msra.mxu0 %v2846
        %3451 = vmatprep.subr.bf16.mxu0 %v2849
        %3452 = vmatpush1.bf16.msra.mxu0 %v2848
        %3453 = vmatprep.subr.bf16.mxu0 %v2851
        %3454 = vmatpush1.bf16.msra.mxu0 %v2850
        %3455 = vmatprep.subr.bf16.mxu0 %v2853
        %3456 = vmatpush1.bf16.msra.mxu0 %v2852
        %3457 = vmatprep.subr.bf16.mxu0 %v2855
        %3458 = vmatpush1.bf16.msra.mxu0 %v2854
        %3459 = vmatprep.subr.bf16.mxu0 %v2857
        %3460 = vmatpush1.bf16.msra.mxu0 %v2856
        %3461 = vmatprep.mubr.bf16.mxu0 %v1776
        %3462 = vmatmul.mubr.bf16.gmra.mrb[0].mxu0 %v1774
        %v3463 = vpop.f32.mrb[0].mxu0
        %v3464 = vadd.f32 %v3423, %v3463
        %v3465 = vpop.f32.mrb[0].mxu0
        %v3466 = vadd.f32 %v3425, %v3465
        %v3467 = vpop.f32.mrb[0].mxu0
        %v3468 = vpop.f32.mrb[0].mxu0
        %3469 = vdwg.mxu0
        %3470 = vmatprep.subr.bf16.mxu0 %v2859
        %3471 = vmatpush1.bf16.msra.mxu0 %v2858
        %3472 = vmatprep.subr.bf16.mxu0 %v2861
        %3473 = vmatpush1.bf16.msra.mxu0 %v2860
        %3474 = vmatprep.subr.bf16.mxu0 %v2863
        %3475 = vmatpush1.bf16.msra.mxu0 %v2862
        %3476 = vmatprep.subr.bf16.mxu0 %v2865
        %3477 = vmatpush1.bf16.msra.mxu0 %v2864
        %3478 = vmatprep.subr.bf16.mxu0 %v2867
        %3479 = vmatpush1.bf16.msra.mxu0 %v2866
        %3480 = vmatprep.subr.bf16.mxu0 %v2869
        %3481 = vmatpush1.bf16.msra.mxu0 %v2868
        %3482 = vmatprep.subr.bf16.mxu0 %v2871
        %3483 = vmatpush1.bf16.msra.mxu0 %v2870
        %3484 = vmatprep.subr.bf16.mxu0 %v2873
        %3485 = vmatpush1.bf16.msra.mxu0 %v2872
        %3486 = vmatprep.subr.bf16.mxu0 %v2875
        %3487 = vmatpush1.bf16.msra.mxu0 %v2874
        %3488 = vmatprep.subr.bf16.mxu0 %v2877
        %3489 = vmatpush1.bf16.msra.mxu0 %v2876
        %3490 = vmatprep.subr.bf16.mxu0 %v2879
        %3491 = vmatpush1.bf16.msra.mxu0 %v2878
        %3492 = vmatprep.subr.bf16.mxu0 %v2881
        %3493 = vmatpush1.bf16.msra.mxu0 %v2880
        %3494 = vmatprep.subr.bf16.mxu0 %v2883
        %3495 = vmatpush1.bf16.msra.mxu0 %v2882
        %3496 = vmatprep.subr.bf16.mxu0 %v2885
        %3497 = vmatpush1.bf16.msra.mxu0 %v2884
        %3498 = vmatprep.subr.bf16.mxu0 %v2887
        %3499 = vmatpush1.bf16.msra.mxu0 %v2886
        %3500 = vmatprep.subr.bf16.mxu0 %v2889
        %3501 = vmatpush1.bf16.msra.mxu0 %v2888
        %3502 = vmatprep.mubr.bf16.mxu0 %v1814
        %3503 = vmatmul.mubr.bf16.gmra.mrb[0].mxu0 %v1800
        %v3504 = vpop.f32.mrb[0].mxu0
        %v3505 = vadd.f32 %v3464, %v3504
        %v3506 = vpop.f32.mrb[0].mxu0
        %v3507 = vadd.f32 %v3466, %v3506
        %v3508 = vpop.f32.mrb[0].mxu0
        %v3509 = vpop.f32.mrb[0].mxu0
        %3510 = vdwg.mxu0
        %3511 = vmatprep.subr.bf16.mxu0 %v2891
        %3512 = vmatpush1.bf16.msra.mxu0 %v2890
        %3513 = vmatprep.subr.bf16.mxu0 %v2893
        %3514 = vmatpush1.bf16.msra.mxu0 %v2892
        %3515 = vmatprep.subr.bf16.mxu0 %v2895
        %3516 = vmatpush1.bf16.msra.mxu0 %v2894
        %3517 = vmatprep.subr.bf16.mxu0 %v2897
        %3518 = vmatpush1.bf16.msra.mxu0 %v2896
        %3519 = vmatprep.subr.bf16.mxu0 %v2899
        %3520 = vmatpush1.bf16.msra.mxu0 %v2898
        %3521 = vmatprep.subr.bf16.mxu0 %v2901
        %3522 = vmatpush1.bf16.msra.mxu0 %v2900
        %3523 = vmatprep.subr.bf16.mxu0 %v2903
        %3524 = vmatpush1.bf16.msra.mxu0 %v2902
        %3525 = vmatprep.subr.bf16.mxu0 %v2905
        %3526 = vmatpush1.bf16.msra.mxu0 %v2904
        %3527 = vmatprep.subr.bf16.mxu0 %v2907
        %3528 = vmatpush1.bf16.msra.mxu0 %v2906
        %3529 = vmatprep.subr.bf16.mxu0 %v2909
        %3530 = vmatpush1.bf16.msra.mxu0 %v2908
        %3531 = vmatprep.subr.bf16.mxu0 %v2911
        %3532 = vmatpush1.bf16.msra.mxu0 %v2910
        %3533 = vmatprep.subr.bf16.mxu0 %v2913
        %3534 = vmatpush1.bf16.msra.mxu0 %v2912
        %3535 = vmatprep.subr.bf16.mxu0 %v2915
        %3536 = vmatpush1.bf16.msra.mxu0 %v2914
        %3537 = vmatprep.subr.bf16.mxu0 %v2917
        %3538 = vmatpush1.bf16.msra.mxu0 %v2916
        %3539 = vmatprep.subr.bf16.mxu0 %v2919
        %3540 = vmatpush1.bf16.msra.mxu0 %v2918
        %3541 = vmatprep.subr.bf16.mxu0 %v2921
        %3542 = vmatpush1.bf16.msra.mxu0 %v2920
        %3543 = vmatprep.mubr.bf16.mxu0 %v1824
        %3544 = vmatmul.mubr.bf16.gmra.mrb[0].mxu0 %v1822
        %v3545 = vpop.f32.mrb[0].mxu0
        %v3546 = vadd.f32 %v3505, %v3545
        %v3547 = vpop.f32.mrb[0].mxu0
        %v3548 = vadd.f32 %v3507, %v3547
        %v3549 = vpop.f32.mrb[0].mxu0
        %v3550 = vpop.f32.mrb[0].mxu0
        %3551 = vdwg.mxu0
        %3552 = vmatprep.subr.bf16.mxu0 %v2923
        %3553 = vmatpush1.bf16.msra.mxu0 %v2922
        %3554 = vmatprep.subr.bf16.mxu0 %v2925
        %3555 = vmatpush1.bf16.msra.mxu0 %v2924
        %3556 = vmatprep.subr.bf16.mxu0 %v2927
        %3557 = vmatpush1.bf16.msra.mxu0 %v2926
        %3558 = vmatprep.subr.bf16.mxu0 %v2929
        %3559 = vmatpush1.bf16.msra.mxu0 %v2928
        %3560 = vmatprep.subr.bf16.mxu0 %v2931
        %3561 = vmatpush1.bf16.msra.mxu0 %v2930
        %3562 = vmatprep.subr.bf16.mxu0 %v2933
        %3563 = vmatpush1.bf16.msra.mxu0 %v2932
        %3564 = vmatprep.subr.bf16.mxu0 %v2935
        %3565 = vmatpush1.bf16.msra.mxu0 %v2934
        %3566 = vmatprep.subr.bf16.mxu0 %v2937
        %3567 = vmatpush1.bf16.msra.mxu0 %v2936
        %3568 = vmatprep.subr.bf16.mxu0 %v2939
        %3569 = vmatpush1.bf16.msra.mxu0 %v2938
        %3570 = vmatprep.subr.bf16.mxu0 %v2941
        %3571 = vmatpush1.bf16.msra.mxu0 %v2940
        %3572 = vmatprep.subr.bf16.mxu0 %v2943
        %3573 = vmatpush1.bf16.msra.mxu0 %v2942
        %3574 = vmatprep.subr.bf16.mxu0 %v2945
        %3575 = vmatpush1.bf16.msra.mxu0 %v2944
        %3576 = vmatprep.subr.bf16.mxu0 %v2947
        %3577 = vmatpush1.bf16.msra.mxu0 %v2946
        %3578 = vmatprep.subr.bf16.mxu0 %v2949
        %3579 = vmatpush1.bf16.msra.mxu0 %v2948
        %3580 = vmatprep.subr.bf16.mxu0 %v2951
        %3581 = vmatpush1.bf16.msra.mxu0 %v2950
        %3582 = vmatprep.subr.bf16.mxu0 %v2953
        %3583 = vmatpush1.bf16.msra.mxu0 %v2952
        %3584 = vmatprep.mubr.bf16.mxu0 %v1821
        %3585 = vmatmul.mubr.bf16.gmra.mrb[0].mxu0 %v1807
        %v3586 = vpop.f32.mrb[0].mxu0
        %v3587 = vadd.f32 %v3546, %v3586
        %v3588 = vpop.f32.mrb[0].mxu0
        %v3589 = vadd.f32 %v3548, %v3588
        %v3590 = vpop.f32.mrb[0].mxu0
        %v3591 = vpop.f32.mrb[0].mxu0
        %3592 = vdwg.mxu0
        %3593 = vmatprep.subr.bf16.mxu0 %v2955
        %3594 = vmatpush1.bf16.msra.mxu0 %v2954
        %3595 = vmatprep.subr.bf16.mxu0 %v2957
        %3596 = vmatpush1.bf16.msra.mxu0 %v2956
        %3597 = vmatprep.subr.bf16.mxu0 %v2959
        %3598 = vmatpush1.bf16.msra.mxu0 %v2958
        %3599 = vmatprep.subr.bf16.mxu0 %v2961
        %3600 = vmatpush1.bf16.msra.mxu0 %v2960
        %3601 = vmatprep.subr.bf16.mxu0 %v2963
        %3602 = vmatpush1.bf16.msra.mxu0 %v2962
        %3603 = vmatprep.subr.bf16.mxu0 %v2965
        %3604 = vmatpush1.bf16.msra.mxu0 %v2964
        %3605 = vmatprep.subr.bf16.mxu0 %v2967
        %3606 = vmatpush1.bf16.msra.mxu0 %v2966
        %3607 = vmatprep.subr.bf16.mxu0 %v2969
        %3608 = vmatpush1.bf16.msra.mxu0 %v2968
        %3609 = vmatprep.subr.bf16.mxu0 %v2971
        %3610 = vmatpush1.bf16.msra.mxu0 %v2970
        %3611 = vmatprep.subr.bf16.mxu0 %v2973
        %3612 = vmatpush1.bf16.msra.mxu0 %v2972
        %3613 = vmatprep.subr.bf16.mxu0 %v2975
        %3614 = vmatpush1.bf16.msra.mxu0 %v2974
        %3615 = vmatprep.subr.bf16.mxu0 %v2977
        %3616 = vmatpush1.bf16.msra.mxu0 %v2976
        %3617 = vmatprep.subr.bf16.mxu0 %v2979
        %3618 = vmatpush1.bf16.msra.mxu0 %v2978
        %3619 = vmatprep.subr.bf16.mxu0 %v2981
        %3620 = vmatpush1.bf16.msra.mxu0 %v2980
        %3621 = vmatprep.subr.bf16.mxu0 %v2983
        %3622 = vmatpush1.bf16.msra.mxu0 %v2982
        %3623 = vmatprep.subr.bf16.mxu0 %v2985
        %3624 = vmatpush1.bf16.msra.mxu0 %v2984
        %3625 = vmatprep.mubr.bf16.mxu0 %v1825
        %3626 = vmatmul.mubr.bf16.gmra.mrb[0].mxu0 %v1823
        %v3627 = vpop.f32.mrb[0].mxu0
        %v3628 = vadd.f32 %v3587, %v3627
        %v3629 = vpop.f32.mrb[0].mxu0
        %v3630 = vadd.f32 %v3589, %v3629
        %v3631 = vpop.f32.mrb[0].mxu0
        %v3632 = vpop.f32.mrb[0].mxu0
        %3633 = vdwg.mxu0
        %3634 = vmatprep.subr.bf16.mxu0 %v2987
        %3635 = vmatpush1.bf16.msra.mxu0 %v2986
        %3636 = vmatprep.subr.bf16.mxu0 %v2989
        %3637 = vmatpush1.bf16.msra.mxu0 %v2988
        %3638 = vmatprep.subr.bf16.mxu0 %v2991
        %3639 = vmatpush1.bf16.msra.mxu0 %v2990
        %3640 = vmatprep.subr.bf16.mxu0 %v2993
        %3641 = vmatpush1.bf16.msra.mxu0 %v2992
        %3642 = vmatprep.subr.bf16.mxu0 %v2995
        %3643 = vmatpush1.bf16.msra.mxu0 %v2994
        %3644 = vmatprep.subr.bf16.mxu0 %v2997
        %3645 = vmatpush1.bf16.msra.mxu0 %v2996
        %3646 = vmatprep.subr.bf16.mxu0 %v2999
        %3647 = vmatpush1.bf16.msra.mxu0 %v2998
        %3648 = vmatprep.subr.bf16.mxu0 %v3001
        %3649 = vmatpush1.bf16.msra.mxu0 %v3000
        %3650 = vmatprep.subr.bf16.mxu0 %v3003
        %3651 = vmatpush1.bf16.msra.mxu0 %v3002
        %3652 = vmatprep.subr.bf16.mxu0 %v3005
        %3653 = vmatpush1.bf16.msra.mxu0 %v3004
        %3654 = vmatprep.subr.bf16.mxu0 %v3007
        %3655 = vmatpush1.bf16.msra.mxu0 %v3006
        %3656 = vmatprep.subr.bf16.mxu0 %v3009
        %3657 = vmatpush1.bf16.msra.mxu0 %v3008
        %3658 = vmatprep.subr.bf16.mxu0 %v3011
        %3659 = vmatpush1.bf16.msra.mxu0 %v3010
        %3660 = vmatprep.subr.bf16.mxu0 %v3013
        %3661 = vmatpush1.bf16.msra.mxu0 %v3012
        %3662 = vmatprep.subr.bf16.mxu0 %v3015
        %3663 = vmatpush1.bf16.msra.mxu0 %v3014
        %3664 = vmatprep.subr.bf16.mxu0 %v3017
        %3665 = vmatpush1.bf16.msra.mxu0 %v3016
        %3666 = vmatprep.mubr.bf16.mxu0 %v1847
        %3667 = vmatmul.mubr.bf16.gmra.mrb[0].mxu0 %v1840
        %v3668 = vpop.f32.mrb[0].mxu0
        %v3669 = vadd.f32 %v3628, %v3668
        %v3670 = vpop.f32.mrb[0].mxu0
        %v3671 = vadd.f32 %v3630, %v3670
        %v3672 = vpop.f32.mrb[0].mxu0
        %v3673 = vpop.f32.mrb[0].mxu0
        %3674 = vdwg.mxu0
        %v3675 = vmax.f32 %v3669, 0.0
        %v3676 = vmax.f32 %v3671, 0.0
        %v3677 = vpack.c.bf16 %v3675, %v3675
        %v3678 = vpack.c.bf16 %v3676, %v3676
        %v3679 = vld [vmem:[%s1415] sm:$0xf]
        %v3680 = vld [vmem:[%s1415 + $0x4] sm:$0xf]
        %v3681 = vld [vmem:[%s1415 + $0x8] sm:$0xf]
        %v3682 = vld [vmem:[%s1415 + $0xc] sm:$0xf]
        %v3683 = vld [vmem:[%s1415 + $0x10] sm:$0xf]
        %v3684 = vld [vmem:[%s1415 + $0x14] sm:$0xf]
        %v3685 = vld [vmem:[%s1415 + $0x18] sm:$0xf]
        %v3686 = vld [vmem:[%s1415 + $0x1c] sm:$0xf]
        %v3687 = vld [vmem:[%s1415 + $0x20] sm:$0xf]
        %v3688 = vld [vmem:[%s1415 + $0x24] sm:$0xf]
        %v3689 = vld [vmem:[%s1415 + $0x28] sm:$0xf]
        %v3690 = vld [vmem:[%s1415 + $0x2c] sm:$0xf]
        %v3691 = vld [vmem:[%s1415 + $0x30] sm:$0xf]
        %v3692 = vld [vmem:[%s1415 + $0x34] sm:$0xf]
        %v3693 = vld [vmem:[%s1415 + $0x38] sm:$0xf]
        %v3694 = vld [vmem:[%s1415 + $0x3c] sm:$0xf]
        %v3695 = vld [vmem:[%s1415 + $0x40] sm:$0xf]
        %v3696 = vld [vmem:[%s1415 + $0x44] sm:$0xf]
        %v3697 = vld [vmem:[%s1415 + $0x48] sm:$0xf]
        %v3698 = vld [vmem:[%s1415 + $0x4c] sm:$0xf]
        %v3699 = vld [vmem:[%s1415 + $0x50] sm:$0xf]
        %v3700 = vld [vmem:[%s1415 + $0x54] sm:$0xf]
        %v3701 = vld [vmem:[%s1415 + $0x58] sm:$0xf]
        %v3702 = vld [vmem:[%s1415 + $0x5c] sm:$0xf]
        %v3703 = vld [vmem:[%s1415 + $0x60] sm:$0xf]
        %v3704 = vld [vmem:[%s1415 + $0x64] sm:$0xf]
        %v3705 = vld [vmem:[%s1415 + $0x68] sm:$0xf]
        %v3706 = vld [vmem:[%s1415 + $0x6c] sm:$0xf]
        %v3707 = vld [vmem:[%s1415 + $0x70] sm:$0xf]
        %v3708 = vld [vmem:[%s1415 + $0x74] sm:$0xf]
        %v3709 = vld [vmem:[%s1415 + $0x78] sm:$0xf]
        %v3710 = vld [vmem:[%s1415 + $0x7c] sm:$0xf]
        %v3743 = vunpack.c.l.b16 %v3679
        %v3744 = vunpack.c.l.b16 %v3680
        %v3745 = vunpack.c.l.b16 %v3681
        %v3746 = vunpack.c.l.b16 %v3682
        %v3747 = vunpack.c.l.b16 %v3683
        %v3748 = vunpack.c.l.b16 %v3684
        %v3749 = vunpack.c.l.b16 %v3685
        %v3750 = vunpack.c.l.b16 %v3686
        %v3751 = vunpack.c.l.b16 %v3687
        %v3752 = vunpack.c.l.b16 %v3688
        %v3753 = vunpack.c.l.b16 %v3689
        %v3754 = vunpack.c.l.b16 %v3690
        %v3755 = vunpack.c.l.b16 %v3691
        %v3756 = vunpack.c.l.b16 %v3692
        %v3757 = vunpack.c.l.b16 %v3693
        %v3758 = vunpack.c.l.b16 %v3694
        %v3759 = vunpack.c.l.b16 %v3695
        %v3760 = vunpack.c.l.b16 %v3696
        %v3761 = vunpack.c.l.b16 %v3697
        %v3762 = vunpack.c.l.b16 %v3698
        %v3763 = vunpack.c.l.b16 %v3699
        %v3764 = vunpack.c.l.b16 %v3700
        %v3765 = vunpack.c.l.b16 %v3701
        %v3766 = vunpack.c.l.b16 %v3702
        %v3767 = vunpack.c.l.b16 %v3703
        %v3768 = vunpack.c.l.b16 %v3704
        %v3769 = vunpack.c.l.b16 %v3705
        %v3770 = vunpack.c.l.b16 %v3706
        %v3771 = vunpack.c.l.b16 %v3707
        %v3772 = vunpack.c.l.b16 %v3708
        %v3773 = vunpack.c.l.b16 %v3709
        %v3774 = vunpack.c.l.b16 %v3710
        %v3775 = vpack.c.b16 %v3744, %v3743
        %v3776 = vpack.c.b16 %v3746, %v3745
        %v3777 = vpack.c.b16 %v3748, %v3747
        %v3778 = vpack.c.b16 %v3750, %v3749
        %v3779 = vpack.c.b16 %v3752, %v3751
        %v3780 = vpack.c.b16 %v3754, %v3753
        %v3781 = vpack.c.b16 %v3756, %v3755
        %v3782 = vpack.c.b16 %v3758, %v3757
        %v3783 = vpack.c.b16 %v3760, %v3759
        %v3784 = vpack.c.b16 %v3762, %v3761
        %v3785 = vpack.c.b16 %v3764, %v3763
        %v3786 = vpack.c.b16 %v3766, %v3765
        %v3787 = vpack.c.b16 %v3768, %v3767
        %v3788 = vpack.c.b16 %v3770, %v3769
        %v3789 = vpack.c.b16 %v3772, %v3771
        %v3790 = vpack.c.b16 %v3774, %v3773
        %3807 = vmatprep.subr.bf16.mxu0 0
        %3808 = vmatpush1.bf16.msra.mxu0 %v3775
        %3809 = vmatprep.subr.bf16.mxu0 0
        %3810 = vmatpush1.bf16.msra.mxu0 %v3776
        %3811 = vmatprep.subr.bf16.mxu0 0
        %3812 = vmatpush1.bf16.msra.mxu0 %v3777
        %3813 = vmatprep.subr.bf16.mxu0 0
        %3814 = vmatpush1.bf16.msra.mxu0 %v3778
        %3815 = vmatprep.subr.bf16.mxu0 0
        %3816 = vmatpush1.bf16.msra.mxu0 %v3779
        %3817 = vmatprep.subr.bf16.mxu0 0
        %3818 = vmatpush1.bf16.msra.mxu0 %v3780
        %3819 = vmatprep.subr.bf16.mxu0 0
        %3820 = vmatpush1.bf16.msra.mxu0 %v3781
        %3821 = vmatprep.subr.bf16.mxu0 0
        %3822 = vmatpush1.bf16.msra.mxu0 %v3782
        %3823 = vmatprep.subr.bf16.mxu0 0
        %3824 = vmatpush1.bf16.msra.mxu0 %v3783
        %3825 = vmatprep.subr.bf16.mxu0 0
        %3826 = vmatpush1.bf16.msra.mxu0 %v3784
        %3827 = vmatprep.subr.bf16.mxu0 0
        %3828 = vmatpush1.bf16.msra.mxu0 %v3785
        %3829 = vmatprep.subr.bf16.mxu0 0
        %3830 = vmatpush1.bf16.msra.mxu0 %v3786
        %3831 = vmatprep.subr.bf16.mxu0 0
        %3832 = vmatpush1.bf16.msra.mxu0 %v3787
        %3833 = vmatprep.subr.bf16.mxu0 0
        %3834 = vmatpush1.bf16.msra.mxu0 %v3788
        %3835 = vmatprep.subr.bf16.mxu0 0
        %3836 = vmatpush1.bf16.msra.mxu0 %v3789
        %3837 = vmatprep.subr.bf16.mxu0 0
        %3838 = vmatpush1.bf16.msra.mxu0 %v3790
        %3839 = vmatprep.mubr.bf16.mxu0 %v3678
        %3840 = vmatmul.mubr.bf16.gmra.mrb[0].mxu0 %v3677
        %v3841 = vpop.f32.mrb[0].mxu0
        %v3842 = vadd.f32 0.0, %v3841
        %v3843 = vpop.f32.mrb[0].mxu0
        %v3844 = vpop.f32.mrb[0].mxu0
        %v3845 = vpop.f32.mrb[0].mxu0
        %3846 = vdwg.mxu0
        %vm3847 = vcmask 74752
        %3848 = vst.msk [vmem:[%s1420] sm:$0x3] %vm3847, %v3842
        %p3849 = scmp.lt.s32.totalorder %s15, 1
        %s3850 = scalar_select %p3849, %s15, 1
        %s3851 = smul.addr %s3850, 2
        %s3852 = scalar_lea.vmem %s4, %s3851
        // Predicated region
        $region75: #{multi_input_forward.7} parent=69 // pred_check
          %p3853 = pneg %p132
        $region76: #{multi_input_forward.7} parent=69 // pred_check_branch
          %3855 = sbr.rel (%p3853) target = $region78
        $region77: #{multi_input_forward.7} parent=69 // pred_region
          _
        $region78: #{multi_input_forward.7} parent=69 // pred_fallthru
          _
      $region70: #{multi_input_forward.7} parent=5 // pred_fallthru
        _
      %p3856 = scmp.le.s32.totalorder 2, %s10
      // Predicated region
      $region79: #{multi_input_forward.7} parent=5 // pred_check
        %p3857 = pneg %p3856
      $region80: #{multi_input_forward.7} parent=5 // pred_check_branch
        %3859 = sbr.rel (%p3857) target = $region82
      $region81: #{multi_input_forward.7} parent=5 // pred_region
        %s3860 = ssub.s32 %s10, 2
        // Predicated region
        $region83: #{multi_input_forward.7} parent=81 // pred_check
          %p3861 = pneg %p138
        $region84: #{multi_input_forward.7} parent=81 // pred_check_branch
          %3863 = sbr.rel (%p3861) target = $region86
        $region85: #{multi_input_forward.7} parent=81 // pred_region
          %p3864 = scmp.lt.s32.totalorder %s16, 1
          %s3865 = scalar_select %p3864, %s16, 1
          %s3866 = smul.addr %s3865, 2
          %s3867 = scalar_lea.vmem %s4, %s3866
        $region86: #{multi_input_forward.7} parent=81 // pred_fallthru
          _
      $region82: #{multi_input_forward.7} parent=5 // pred_fallthru
        _
    $region6: #{multi_input_forward.7} parent=1 // loop_footer
      %s14 = sadd.s32 1, %s10
    $region7: #{multi_input_forward.7} parent=1 // loop_footer_branch
      %9 = sbr.rel target = $region3
    $region8: #{multi_input_forward.7} parent=1 // loop_exit
      _

</llo_original>
